<compile_context>
chip_gen: v7x
topology: tpu7x:2x2x1
jax: 0.10.0
libtpu: 0.0.40
codegen_flags: <defaults>
</compile_context>

<pallas_src>
import math
import functools

import jax
import jax.numpy as jnp
from jax.experimental import pallas as pl
from jax.experimental.pallas import tpu as pltpu


def _layernorm(x, gamma, beta, eps=1e-5):
    # One-pass LayerNorm (var = E[x^2] - mean^2), clamped at 0 to avoid a
    # negative variance from cancellation feeding rsqrt.
    mean = jnp.mean(x, axis=-1, keepdims=True)
    mean_sq = jnp.mean(x * x, axis=-1, keepdims=True)
    var = jnp.maximum(mean_sq - mean * mean, 0.0)
    inv = jax.lax.rsqrt(var + eps)
    return (x - mean) * inv * gamma + beta


def _erf(x):
    # Abramowitz & Stegun 7.1.26 (max abs err ~1.5e-7); only exp/mul/add/select,
    # so it always lowers on the VPU+EUP (no reliance on an erf primitive rule).
    a1, a2, a3, a4, a5 = (0.254829592, -0.284496736, 1.421413741,
                          -1.453152027, 1.061405429)
    p = 0.3275911
    ax = jnp.where(x >= 0.0, x, -x)
    t = 1.0 / (1.0 + p * ax)
    poly = ((((a5 * t + a4) * t + a3) * t + a2) * t + a1) * t
    e = 1.0 - poly * jnp.exp(-ax * ax)
    return jnp.where(x >= 0.0, e, -e)


def _gelu_exact(x):
    # torch.nn.GELU default (approximate='none'): 0.5*x*(1+erf(x/sqrt(2)))
    return 0.5 * x * (1.0 + _erf(x * (1.0 / math.sqrt(2.0))))


def block_kernel(x_ref,
                 ln1_g_ref, ln1_b_ref, ln2_g_ref, ln2_b_ref, mask_ref,
                 wqkv_ref, bqkv_ref, wp_ref, bp_ref,
                 w1_ref, b1_ref, w2_ref, b2_ref,
                 o_ref, *, n_head, compute_dtype, approx_recip):
    x = x_ref[...].astype(jnp.float32)                      # (T, C)
    T, C = x.shape
    Dh = C // n_head

    def mm(a, w_ref, b_ref):
        # MXU matmul in compute_dtype with f32 accumulation, f32 bias add.
        return (jnp.dot(a.astype(compute_dtype), w_ref[...],
                        preferred_element_type=jnp.float32) + b_ref[...])

    # ---------------- attention branch ----------------
    h = _layernorm(x, ln1_g_ref[...], ln1_b_ref[...])

    # Fused QKV projection; 1/sqrt(Dh) is folded into the Q columns on the host.
    qkv = mm(h, wqkv_ref, bqkv_ref)                          # (T, 3C) f32
    qkv_c = qkv.astype(compute_dtype)                        # single cast, reused by all heads
    mask_bias = mask_ref[...]                                # (T, T) additive causal mask (0 / -1e30)

    # Per-head 2-D matmuls accumulated straight into one (T, C) f32 buffer: the
    # output projection is fused into the loop, so no (H,T,T)/(H,T,Dh)/(H,T,C)
    # stacked intermediates exist and only one (T,T) score matrix is live at a
    # time.  NOTE: the K=Dh attention contractions inherently underfill the
    # 256-deep v6e/v7x MXU; the K=C / K=4C matmuls are the efficient ones.
    att_out = jnp.zeros((T, C), jnp.float32)
    for hd in range(n_head):
        lo = hd * Dh
        q_h = qkv_c[:, lo:lo + Dh]                           # (T, Dh), already scaled
        k_h = qkv_c[:, C + lo:C + lo + Dh]                   # (T, Dh)
        v_h = qkv_c[:, 2 * C + lo:2 * C + lo + Dh]           # (T, Dh)
        # Q @ K^T without materializing a transpose (contract last dims).
        s = jax.lax.dot_general(q_h, k_h, (((1,), (1,)), ((), ())),
                                preferred_element_type=jnp.float32)  # (T, T)
        s = s + mask_bias
        s = s - jnp.max(s, axis=-1, keepdims=True)
        p = jnp.exp(s)
        denom = jnp.sum(p, axis=-1, keepdims=True)           # (T, 1), >= 1 (diag unmasked)
        # Un-normalized P@V; normalize on the (T, Dh) result, not the (T, T) matrix.
        y_h = jnp.dot(p.astype(compute_dtype), v_h,
                      preferred_element_type=jnp.float32)    # (T, Dh)
        y_h = y_h * pl.reciprocal(denom, approx=approx_recip)
        # Output projection for this head, accumulated into (T, C).
        att_out = att_out + jnp.dot(
            y_h.astype(compute_dtype), wp_ref[lo:lo + Dh, :],
            preferred_element_type=jnp.float32)
    x = x + att_out + bp_ref[...]                            # attn/resid dropout: identity (eval)

    # ---------------- MLP branch ----------------
    h2 = _layernorm(x, ln2_g_ref[...], ln2_b_ref[...])
    m = _gelu_exact(mm(h2, w1_ref, b1_ref))                  # (T, 4C)
    x = x + mm(m, w2_ref, b2_ref)                            # mlp dropout: identity (eval)

    o_ref[...] = x.astype(o_ref.dtype)


def _vmem_capacity_bytes():
    try:
        return int(pltpu.get_tpu_info().vmem_capacity_bytes)
    except Exception:
        return 64 << 20        # conservative: v7x per-TensorCore VMEM


def _build_and_call(x, kernel_inputs, n_head, compute_dtype, single_buffer_weights):
    B, T, C = x.shape
    H = 4 * C

    def full_spec(a):
        nd = a.ndim
        if single_buffer_weights:
            # Constant block index across the grid -> single-buffer (halves the
            # resident-weight VMEM footprint vs the default double-buffering).
            return pl.BlockSpec(a.shape, lambda b, _nd=nd: (0,) * _nd,
                                pipeline_mode=pl.Buffered(1))
        return pl.BlockSpec(a.shape, lambda b, _nd=nd: (0,) * _nd)

    in_specs = [pl.BlockSpec((None, T, C), lambda b: (b, 0, 0))]
    in_specs += [full_spec(a) for a in kernel_inputs]
    out_spec = pl.BlockSpec((None, T, C), lambda b: (b, 0, 0))

    # VMEM budget: weights x1 (Buffered(1)) or x2 (fallback), x/out blocks
    # double-buffered, plus the in-kernel f32 / compute-dtype working set.
    # Clamp per generation: <= capacity - 8 MiB (64 MiB/TC on v7x, 128 MiB on
    # v5e/v6e) so we never over-request VMEM on v7x.
    cd_size = jnp.dtype(compute_dtype).itemsize
    weight_bytes = sum(int(a.size) * a.dtype.itemsize for a in kernel_inputs)
    weight_bytes *= 1 if single_buffer_weights else 2
    io_bytes = 2 * 2 * T * C * x.dtype.itemsize
    ws_bytes = (4 * (6 * T * C + 2 * T * T + 3 * T * C + 2 * T * H)
                + cd_size * (3 * T * C + T * H))
    budget = weight_bytes + io_bytes + ws_bytes + (4 << 20)
    vmem_limit = int(min(max(budget, 16 << 20),
                         _vmem_capacity_bytes() - (8 << 20)))

    kernel = functools.partial(
        block_kernel, n_head=n_head, compute_dtype=compute_dtype,
        approx_recip=(compute_dtype == jnp.bfloat16))

    return pl.pallas_call(
        kernel,
        out_shape=jax.ShapeDtypeStruct((B, T, C), x.dtype),
        grid_spec=pltpu.PrefetchScalarGridSpec(
            num_scalar_prefetch=0,
            grid=(B,),                      # B >= 2 lets both v7x TensorCores work
            in_specs=in_specs,
            out_specs=out_spec,
        ),
        compiler_params=pltpu.CompilerParams(
            dimension_semantics=("parallel",),
            vmem_limit_bytes=vmem_limit),
    )(x, *kernel_inputs)


def gpt_block(x, params, n_head, *, compute_dtype=jnp.float32):
    (ln1_g, ln1_b, ln2_g, ln2_b,
     wq, bq, wk, bk, wv, bv, wp, bp, w1, b1, w2, b2) = params
    B, T, C = x.shape
    Dh = C // n_head
    scale = 1.0 / math.sqrt(Dh)
    f32 = jnp.float32

    # Host-side packing: fused QKV weight with the attention scale folded into
    # the Q columns; precomputed additive causal mask; matmul weights cast to
    # the compute dtype; biases / LN params kept in f32 (added post-accumulation).
    wqkv = jnp.concatenate([wq * scale, wk, wv], axis=1).astype(compute_dtype)  # (C, 3C)
    bqkv = jnp.concatenate([bq * scale, bk, bv], axis=1).astype(f32)            # (1, 3C)
    row = jnp.arange(T)[:, None]
    col = jnp.arange(T)[None, :]
    mask_bias = jnp.where(row >= col, 0.0, -1e30).astype(f32)                   # (T, T)

    kernel_inputs = (ln1_g.astype(f32), ln1_b.astype(f32),
                     ln2_g.astype(f32), ln2_b.astype(f32),
                     mask_bias,
                     wqkv, bqkv, wp.astype(compute_dtype), bp.astype(f32),
                     w1.astype(compute_dtype), b1.astype(f32),
                     w2.astype(compute_dtype), b2.astype(f32))

    try:
        return _build_and_call(x, kernel_inputs, n_head, compute_dtype,
                               single_buffer_weights=True)
    except Exception:
        # Fallback for jax versions without BlockSpec pipeline_mode / Buffered(1).
        return _build_and_call(x, kernel_inputs, n_head, compute_dtype,
                               single_buffer_weights=False)


def reference_block(x, params, n_head):
    (ln1_g, ln1_b, ln2_g, ln2_b,
     wq, bq, wk, bk, wv, bv, wp, bp, w1, b1, w2, b2) = params
    B, T, C = x.shape
    Dh = C // n_head

    def ln(h, g, b):
        mu = jnp.mean(h, axis=-1, keepdims=True)
        var = jnp.mean((h - mu) ** 2, axis=-1, keepdims=True)
        return (h - mu) / jnp.sqrt(var + 1e-5) * g + b

    h = ln(x, ln1_g, ln1_b)
    q = (h @ wq + bq).reshape(B, T, n_head, Dh).transpose(0, 2, 1, 3)
    k = (h @ wk + bk).reshape(B, T, n_head, Dh).transpose(0, 2, 1, 3)
    v = (h @ wv + bv).reshape(B, T, n_head, Dh).transpose(0, 2, 1, 3)
    att = jnp.einsum("bhqd,bhkd->bhqk", q, k) / math.sqrt(Dh)
    mask = jnp.tril(jnp.ones((T, T), bool))
    att = jnp.where(mask, att, -jnp.inf)
    att = jax.nn.softmax(att, axis=-1)
    y = jnp.einsum("bhqk,bhkd->bhqd", att, v).transpose(0, 2, 1, 3).reshape(B, T, C)
    x = x + (y @ wp + bp)
    h2 = ln(x, ln2_g, ln2_b)
    m = jax.nn.gelu(h2 @ w1 + b1, approximate=False)
    x = x + (m @ w2 + b2)
    return x


if __name__ == "__main__":
    B, T, C, n_head = 2, 8, 32, 4
    H = 4 * C

    key = jax.random.PRNGKey(0)
    keys = jax.random.split(key, 10)

    x = jax.random.normal(keys[0], (B, T, C), jnp.float32)

    s = 0.02
    ln1_g = jnp.ones((1, C), jnp.float32)
    ln1_b = jnp.zeros((1, C), jnp.float32)
    ln2_g = jnp.ones((1, C), jnp.float32)
    ln2_b = jnp.zeros((1, C), jnp.float32)
    wq = s * jax.random.normal(keys[1], (C, C), jnp.float32)
    wk = s * jax.random.normal(keys[2], (C, C), jnp.float32)
    wv = s * jax.random.normal(keys[3], (C, C), jnp.float32)
    wp = s * jax.random.normal(keys[4], (C, C), jnp.float32)
    bq = s * jax.random.normal(keys[5], (1, C), jnp.float32)
    bk = jnp.zeros((1, C), jnp.float32)
    bv = jnp.zeros((1, C), jnp.float32)
    bp = jnp.zeros((1, C), jnp.float32)
    w1 = s * jax.random.normal(keys[6], (C, H), jnp.float32)
    b1 = s * jax.random.normal(keys[7], (1, H), jnp.float32)
    w2 = s * jax.random.normal(keys[8], (H, C), jnp.float32)
    b2 = s * jax.random.normal(keys[9], (1, C), jnp.float32)

    params = (ln1_g, ln1_b, ln2_g, ln2_b,
              wq, bq, wk, bk, wv, bv, wp, bp, w1, b1, w2, b2)

    ref = reference_block(x, params, n_head)

    # f32 compute path: tight tolerance against the f32 reference.
    out_f32 = jax.block_until_ready(gpt_block(x, params, n_head))
    assert jnp.allclose(out_f32, ref, rtol=2e-4, atol=2e-4), "f32 mismatch vs reference"

    # bf16 MXU fast path (f32 accumulation / residual / LayerNorm): looser
    # tolerance consistent with bf16 mantissa; approx reciprocal only here.
    out_bf16 = jax.block_until_ready(
        gpt_block(x, params, n_head, compute_dtype=jnp.bfloat16))
    assert jnp.allclose(out_bf16, ref, rtol=2e-2, atol=2e-2), "bf16 mismatch vs reference"

    print("KERNEL_OK")
</pallas_src>

<mosaic_0001>
module attributes {stable_mosaic.version = 11 : i64} {
  func.func @block_kernel(%arg0: i32, %arg1: memref<1x8x32xf32, #tpu.memory_space<vmem>>, %arg2: memref<1x32xf32, #tpu.memory_space<vmem>>, %arg3: memref<1x32xf32, #tpu.memory_space<vmem>>, %arg4: memref<1x32xf32, #tpu.memory_space<vmem>>, %arg5: memref<1x32xf32, #tpu.memory_space<vmem>>, %arg6: memref<8x8xf32, #tpu.memory_space<vmem>>, %arg7: memref<32x96xf32, #tpu.memory_space<vmem>>, %arg8: memref<1x96xf32, #tpu.memory_space<vmem>>, %arg9: memref<32x32xf32, #tpu.memory_space<vmem>>, %arg10: memref<1x32xf32, #tpu.memory_space<vmem>>, %arg11: memref<32x128xf32, #tpu.memory_space<vmem>>, %arg12: memref<1x128xf32, #tpu.memory_space<vmem>>, %arg13: memref<128x32xf32, #tpu.memory_space<vmem>>, %arg14: memref<1x32xf32, #tpu.memory_space<vmem>>, %arg15: memref<1x8x32xf32, #tpu.memory_space<vmem>>) attributes {dimension_semantics = [#tpu.dimension_semantics<parallel>], iteration_bounds = array<i64: 2>, scalar_prefetch = 0 : i64, scratch_operands = 0 : i64, tpu.core_type = #tpu.core_type<tc>, window_params = [{transform_indices = @transform_0, window_bounds = array<i64: 1, 8, 32>}, {pipeline_mode = #tpu.pipeline_mode<synchronous>, transform_indices = @transform_1, window_bounds = array<i64: 1, 32>}, {pipeline_mode = #tpu.pipeline_mode<synchronous>, transform_indices = @transform_2, window_bounds = array<i64: 1, 32>}, {pipeline_mode = #tpu.pipeline_mode<synchronous>, transform_indices = @transform_3, window_bounds = array<i64: 1, 32>}, {pipeline_mode = #tpu.pipeline_mode<synchronous>, transform_indices = @transform_4, window_bounds = array<i64: 1, 32>}, {pipeline_mode = #tpu.pipeline_mode<synchronous>, transform_indices = @transform_5, window_bounds = array<i64: 8, 8>}, {pipeline_mode = #tpu.pipeline_mode<synchronous>, transform_indices = @transform_6, window_bounds = array<i64: 32, 96>}, {pipeline_mode = #tpu.pipeline_mode<synchronous>, transform_indices = @transform_7, window_bounds = array<i64: 1, 96>}, {pipeline_mode = #tpu.pipeline_mode<synchronous>, transform_indices = @transform_8, window_bounds = array<i64: 32, 32>}, {pipeline_mode = #tpu.pipeline_mode<synchronous>, transform_indices = @transform_9, window_bounds = array<i64: 1, 32>}, {pipeline_mode = #tpu.pipeline_mode<synchronous>, transform_indices = @transform_10, window_bounds = array<i64: 32, 128>}, {pipeline_mode = #tpu.pipeline_mode<synchronous>, transform_indices = @transform_11, window_bounds = array<i64: 1, 128>}, {pipeline_mode = #tpu.pipeline_mode<synchronous>, transform_indices = @transform_12, window_bounds = array<i64: 128, 32>}, {pipeline_mode = #tpu.pipeline_mode<synchronous>, transform_indices = @transform_13, window_bounds = array<i64: 1, 32>}, {transform_indices = @transform_14, window_bounds = array<i64: 1, 8, 32>}]} {
    %c0 = arith.constant 0 : index
    %c0_0 = arith.constant 0 : index
    %c0_1 = arith.constant 0 : index
    %0 = vector.load %arg1[%c0, %c0_0, %c0_1] : memref<1x8x32xf32, #tpu.memory_space<vmem>>, vector<1x8x32xf32>
    %1 = vector.shape_cast %0 : vector<1x8x32xf32> to vector<8x32xf32>
    %c0_2 = arith.constant 0 : index
    %c0_3 = arith.constant 0 : index
    %2 = vector.load %arg2[%c0_2, %c0_3] : memref<1x32xf32, #tpu.memory_space<vmem>>, vector<1x32xf32>
    %c0_4 = arith.constant 0 : index
    %c0_5 = arith.constant 0 : index
    %3 = vector.load %arg3[%c0_4, %c0_5] : memref<1x32xf32, #tpu.memory_space<vmem>>, vector<1x32xf32>
    %cst = arith.constant dense<0.000000e+00> : vector<8xf32>
    %4 = vector.multi_reduction <add>, %1, %cst [1] : vector<8x32xf32> to vector<8xf32>
    %5 = vector.shape_cast %4 : vector<8xf32> to vector<8x1xf32>
    %cst_6 = arith.constant 3.200000e+01 : f32
    %6 = vector.broadcast %cst_6 : f32 to vector<8x1xf32>
    %7 = arith.divf %5, %6 : vector<8x1xf32>
    %8 = arith.mulf %1, %1 : vector<8x32xf32>
    %cst_7 = arith.constant dense<0.000000e+00> : vector<8xf32>
    %9 = vector.multi_reduction <add>, %8, %cst_7 [1] : vector<8x32xf32> to vector<8xf32>
    %10 = vector.shape_cast %9 : vector<8xf32> to vector<8x1xf32>
    %cst_8 = arith.constant 3.200000e+01 : f32
    %11 = vector.broadcast %cst_8 : f32 to vector<8x1xf32>
    %12 = arith.divf %10, %11 : vector<8x1xf32>
    %13 = arith.mulf %7, %7 : vector<8x1xf32>
    %14 = arith.subf %12, %13 : vector<8x1xf32>
    %cst_9 = arith.constant 0.000000e+00 : f32
    %15 = vector.broadcast %cst_9 : f32 to vector<8x1xf32>
    %16 = arith.maximumf %14, %15 : vector<8x1xf32>
    %cst_10 = arith.constant 9.99999974E-6 : f32
    %17 = vector.broadcast %cst_10 : f32 to vector<8x1xf32>
    %18 = arith.addf %16, %17 : vector<8x1xf32>
    %19 = math.rsqrt %18 : vector<8x1xf32>
    %20 = vector.broadcast %7 : vector<8x1xf32> to vector<8x32xf32>
    %21 = arith.subf %1, %20 : vector<8x32xf32>
    %22 = vector.broadcast %19 : vector<8x1xf32> to vector<8x32xf32>
    %23 = arith.mulf %21, %22 : vector<8x32xf32>
    %24 = vector.broadcast %2 : vector<1x32xf32> to vector<8x32xf32>
    %25 = arith.mulf %23, %24 : vector<8x32xf32>
    %26 = vector.broadcast %3 : vector<1x32xf32> to vector<8x32xf32>
    %27 = arith.addf %25, %26 : vector<8x32xf32>
    %c0_11 = arith.constant 0 : index
    %c0_12 = arith.constant 0 : index
    %28 = vector.load %arg7[%c0_11, %c0_12] : memref<32x96xf32, #tpu.memory_space<vmem>>, vector<32x96xf32>
    %cst_13 = arith.constant dense<0.000000e+00> : vector<8x96xf32>
    %29 = tpu.matmul %27, %28, %cst_13 {dimension_numbers = #tpu.dot_dimension_numbers<[1], [0], [0], [1], [0, 0, 1, 1], [], []>} : vector<8x32xf32>, vector<32x96xf32>, vector<8x96xf32> -> vector<8x96xf32>
    %c0_14 = arith.constant 0 : index
    %c0_15 = arith.constant 0 : index
    %30 = vector.load %arg8[%c0_14, %c0_15] : memref<1x96xf32, #tpu.memory_space<vmem>>, vector<1x96xf32>
    %31 = vector.broadcast %30 : vector<1x96xf32> to vector<8x96xf32>
    %32 = arith.addf %29, %31 : vector<8x96xf32>
    %c0_16 = arith.constant 0 : index
    %c0_17 = arith.constant 0 : index
    %33 = vector.load %arg6[%c0_16, %c0_17] : memref<8x8xf32, #tpu.memory_space<vmem>>, vector<8x8xf32>
    %cst_18 = arith.constant 0.000000e+00 : f32
    %34 = vector.broadcast %cst_18 : f32 to vector<8x32xf32>
    %35 = vector.extract_strided_slice %32 {offsets = [0, 0], sizes = [8, 8], strides = [1, 1]} : vector<8x96xf32> to vector<8x8xf32>
    %36 = vector.extract_strided_slice %32 {offsets = [0, 32], sizes = [8, 8], strides = [1, 1]} : vector<8x96xf32> to vector<8x8xf32>
    %37 = vector.extract_strided_slice %32 {offsets = [0, 64], sizes = [8, 8], strides = [1, 1]} : vector<8x96xf32> to vector<8x8xf32>
    %cst_19 = arith.constant dense<0.000000e+00> : vector<8x8xf32>
    %38 = tpu.matmul %35, %36, %cst_19 {dimension_numbers = #tpu.dot_dimension_numbers<[1], [1], [0], [0], [0, 0, 1, 0], [], []>} : vector<8x8xf32>, vector<8x8xf32>, vector<8x8xf32> -> vector<8x8xf32>
    %39 = arith.addf %38, %33 : vector<8x8xf32>
    %cst_20 = arith.constant dense<0xFF800000> : vector<8xf32>
    %40 = vector.multi_reduction <maximumf>, %39, %cst_20 [1] : vector<8x8xf32> to vector<8xf32>
    %41 = vector.shape_cast %40 : vector<8xf32> to vector<8x1xf32>
    %42 = vector.broadcast %41 : vector<8x1xf32> to vector<8x8xf32>
    %43 = arith.subf %39, %42 : vector<8x8xf32>
    %44 = math.exp %43 : vector<8x8xf32>
    %cst_21 = arith.constant dense<0.000000e+00> : vector<8xf32>
    %45 = vector.multi_reduction <add>, %44, %cst_21 [1] : vector<8x8xf32> to vector<8xf32>
    %46 = vector.shape_cast %45 : vector<8xf32> to vector<8x1xf32>
    %cst_22 = arith.constant dense<0.000000e+00> : vector<8x8xf32>
    %47 = tpu.matmul %44, %37, %cst_22 {dimension_numbers = #tpu.dot_dimension_numbers<[1], [0], [0], [1], [0, 0, 1, 1], [], []>} : vector<8x8xf32>, vector<8x8xf32>, vector<8x8xf32> -> vector<8x8xf32>
    %48 = tpu.reciprocal %46 : vector<8x1xf32> -> vector<8x1xf32>
    %49 = vector.broadcast %48 : vector<8x1xf32> to vector<8x8xf32>
    %50 = arith.mulf %47, %49 : vector<8x8xf32>
    %c0_23 = arith.constant 0 : index
    %c0_24 = arith.constant 0 : index
    %51 = vector.load %arg9[%c0_23, %c0_24] : memref<32x32xf32, #tpu.memory_space<vmem>>, vector<8x32xf32>
    %cst_25 = arith.constant dense<0.000000e+00> : vector<8x32xf32>
    %52 = tpu.matmul %50, %51, %cst_25 {dimension_numbers = #tpu.dot_dimension_numbers<[1], [0], [0], [1], [0, 0, 1, 1], [], []>} : vector<8x8xf32>, vector<8x32xf32>, vector<8x32xf32> -> vector<8x32xf32>
    %53 = arith.addf %34, %52 : vector<8x32xf32>
    %54 = vector.extract_strided_slice %32 {offsets = [0, 8], sizes = [8, 8], strides = [1, 1]} : vector<8x96xf32> to vector<8x8xf32>
    %55 = vector.extract_strided_slice %32 {offsets = [0, 40], sizes = [8, 8], strides = [1, 1]} : vector<8x96xf32> to vector<8x8xf32>
    %56 = vector.extract_strided_slice %32 {offsets = [0, 72], sizes = [8, 8], strides = [1, 1]} : vector<8x96xf32> to vector<8x8xf32>
    %cst_26 = arith.constant dense<0.000000e+00> : vector<8x8xf32>
    %57 = tpu.matmul %54, %55, %cst_26 {dimension_numbers = #tpu.dot_dimension_numbers<[1], [1], [0], [0], [0, 0, 1, 0], [], []>} : vector<8x8xf32>, vector<8x8xf32>, vector<8x8xf32> -> vector<8x8xf32>
    %58 = arith.addf %57, %33 : vector<8x8xf32>
    %cst_27 = arith.constant dense<0xFF800000> : vector<8xf32>
    %59 = vector.multi_reduction <maximumf>, %58, %cst_27 [1] : vector<8x8xf32> to vector<8xf32>
    %60 = vector.shape_cast %59 : vector<8xf32> to vector<8x1xf32>
    %61 = vector.broadcast %60 : vector<8x1xf32> to vector<8x8xf32>
    %62 = arith.subf %58, %61 : vector<8x8xf32>
    %63 = math.exp %62 : vector<8x8xf32>
    %cst_28 = arith.constant dense<0.000000e+00> : vector<8xf32>
    %64 = vector.multi_reduction <add>, %63, %cst_28 [1] : vector<8x8xf32> to vector<8xf32>
    %65 = vector.shape_cast %64 : vector<8xf32> to vector<8x1xf32>
    %cst_29 = arith.constant dense<0.000000e+00> : vector<8x8xf32>
    %66 = tpu.matmul %63, %56, %cst_29 {dimension_numbers = #tpu.dot_dimension_numbers<[1], [0], [0], [1], [0, 0, 1, 1], [], []>} : vector<8x8xf32>, vector<8x8xf32>, vector<8x8xf32> -> vector<8x8xf32>
    %67 = tpu.reciprocal %65 : vector<8x1xf32> -> vector<8x1xf32>
    %68 = vector.broadcast %67 : vector<8x1xf32> to vector<8x8xf32>
    %69 = arith.mulf %66, %68 : vector<8x8xf32>
    %c8 = arith.constant 8 : index
    %c0_30 = arith.constant 0 : index
    %70 = vector.load %arg9[%c8, %c0_30] : memref<32x32xf32, #tpu.memory_space<vmem>>, vector<8x32xf32>
    %cst_31 = arith.constant dense<0.000000e+00> : vector<8x32xf32>
    %71 = tpu.matmul %69, %70, %cst_31 {dimension_numbers = #tpu.dot_dimension_numbers<[1], [0], [0], [1], [0, 0, 1, 1], [], []>} : vector<8x8xf32>, vector<8x32xf32>, vector<8x32xf32> -> vector<8x32xf32>
    %72 = arith.addf %53, %71 : vector<8x32xf32>
    %73 = vector.extract_strided_slice %32 {offsets = [0, 16], sizes = [8, 8], strides = [1, 1]} : vector<8x96xf32> to vector<8x8xf32>
    %74 = vector.extract_strided_slice %32 {offsets = [0, 48], sizes = [8, 8], strides = [1, 1]} : vector<8x96xf32> to vector<8x8xf32>
    %75 = vector.extract_strided_slice %32 {offsets = [0, 80], sizes = [8, 8], strides = [1, 1]} : vector<8x96xf32> to vector<8x8xf32>
    %cst_32 = arith.constant dense<0.000000e+00> : vector<8x8xf32>
    %76 = tpu.matmul %73, %74, %cst_32 {dimension_numbers = #tpu.dot_dimension_numbers<[1], [1], [0], [0], [0, 0, 1, 0], [], []>} : vector<8x8xf32>, vector<8x8xf32>, vector<8x8xf32> -> vector<8x8xf32>
    %77 = arith.addf %76, %33 : vector<8x8xf32>
    %cst_33 = arith.constant dense<0xFF800000> : vector<8xf32>
    %78 = vector.multi_reduction <maximumf>, %77, %cst_33 [1] : vector<8x8xf32> to vector<8xf32>
    %79 = vector.shape_cast %78 : vector<8xf32> to vector<8x1xf32>
    %80 = vector.broadcast %79 : vector<8x1xf32> to vector<8x8xf32>
    %81 = arith.subf %77, %80 : vector<8x8xf32>
    %82 = math.exp %81 : vector<8x8xf32>
    %cst_34 = arith.constant dense<0.000000e+00> : vector<8xf32>
    %83 = vector.multi_reduction <add>, %82, %cst_34 [1] : vector<8x8xf32> to vector<8xf32>
    %84 = vector.shape_cast %83 : vector<8xf32> to vector<8x1xf32>
    %cst_35 = arith.constant dense<0.000000e+00> : vector<8x8xf32>
    %85 = tpu.matmul %82, %75, %cst_35 {dimension_numbers = #tpu.dot_dimension_numbers<[1], [0], [0], [1], [0, 0, 1, 1], [], []>} : vector<8x8xf32>, vector<8x8xf32>, vector<8x8xf32> -> vector<8x8xf32>
    %86 = tpu.reciprocal %84 : vector<8x1xf32> -> vector<8x1xf32>
    %87 = vector.broadcast %86 : vector<8x1xf32> to vector<8x8xf32>
    %88 = arith.mulf %85, %87 : vector<8x8xf32>
    %c16 = arith.constant 16 : index
    %c0_36 = arith.constant 0 : index
    %89 = vector.load %arg9[%c16, %c0_36] : memref<32x32xf32, #tpu.memory_space<vmem>>, vector<8x32xf32>
    %cst_37 = arith.constant dense<0.000000e+00> : vector<8x32xf32>
    %90 = tpu.matmul %88, %89, %cst_37 {dimension_numbers = #tpu.dot_dimension_numbers<[1], [0], [0], [1], [0, 0, 1, 1], [], []>} : vector<8x8xf32>, vector<8x32xf32>, vector<8x32xf32> -> vector<8x32xf32>
    %91 = arith.addf %72, %90 : vector<8x32xf32>
    %92 = vector.extract_strided_slice %32 {offsets = [0, 24], sizes = [8, 8], strides = [1, 1]} : vector<8x96xf32> to vector<8x8xf32>
    %93 = vector.extract_strided_slice %32 {offsets = [0, 56], sizes = [8, 8], strides = [1, 1]} : vector<8x96xf32> to vector<8x8xf32>
    %94 = vector.extract_strided_slice %32 {offsets = [0, 88], sizes = [8, 8], strides = [1, 1]} : vector<8x96xf32> to vector<8x8xf32>
    %cst_38 = arith.constant dense<0.000000e+00> : vector<8x8xf32>
    %95 = tpu.matmul %92, %93, %cst_38 {dimension_numbers = #tpu.dot_dimension_numbers<[1], [1], [0], [0], [0, 0, 1, 0], [], []>} : vector<8x8xf32>, vector<8x8xf32>, vector<8x8xf32> -> vector<8x8xf32>
    %96 = arith.addf %95, %33 : vector<8x8xf32>
    %cst_39 = arith.constant dense<0xFF800000> : vector<8xf32>
    %97 = vector.multi_reduction <maximumf>, %96, %cst_39 [1] : vector<8x8xf32> to vector<8xf32>
    %98 = vector.shape_cast %97 : vector<8xf32> to vector<8x1xf32>
    %99 = vector.broadcast %98 : vector<8x1xf32> to vector<8x8xf32>
    %100 = arith.subf %96, %99 : vector<8x8xf32>
    %101 = math.exp %100 : vector<8x8xf32>
    %cst_40 = arith.constant dense<0.000000e+00> : vector<8xf32>
    %102 = vector.multi_reduction <add>, %101, %cst_40 [1] : vector<8x8xf32> to vector<8xf32>
    %103 = vector.shape_cast %102 : vector<8xf32> to vector<8x1xf32>
    %cst_41 = arith.constant dense<0.000000e+00> : vector<8x8xf32>
    %104 = tpu.matmul %101, %94, %cst_41 {dimension_numbers = #tpu.dot_dimension_numbers<[1], [0], [0], [1], [0, 0, 1, 1], [], []>} : vector<8x8xf32>, vector<8x8xf32>, vector<8x8xf32> -> vector<8x8xf32>
    %105 = tpu.reciprocal %103 : vector<8x1xf32> -> vector<8x1xf32>
    %106 = vector.broadcast %105 : vector<8x1xf32> to vector<8x8xf32>
    %107 = arith.mulf %104, %106 : vector<8x8xf32>
    %c24 = arith.constant 24 : index
    %c0_42 = arith.constant 0 : index
    %108 = vector.load %arg9[%c24, %c0_42] : memref<32x32xf32, #tpu.memory_space<vmem>>, vector<8x32xf32>
    %cst_43 = arith.constant dense<0.000000e+00> : vector<8x32xf32>
    %109 = tpu.matmul %107, %108, %cst_43 {dimension_numbers = #tpu.dot_dimension_numbers<[1], [0], [0], [1], [0, 0, 1, 1], [], []>} : vector<8x8xf32>, vector<8x32xf32>, vector<8x32xf32> -> vector<8x32xf32>
    %110 = arith.addf %91, %109 : vector<8x32xf32>
    %111 = arith.addf %1, %110 : vector<8x32xf32>
    %c0_44 = arith.constant 0 : index
    %c0_45 = arith.constant 0 : index
    %112 = vector.load %arg10[%c0_44, %c0_45] : memref<1x32xf32, #tpu.memory_space<vmem>>, vector<1x32xf32>
    %113 = vector.broadcast %112 : vector<1x32xf32> to vector<8x32xf32>
    %114 = arith.addf %111, %113 : vector<8x32xf32>
    %c0_46 = arith.constant 0 : index
    %c0_47 = arith.constant 0 : index
    %115 = vector.load %arg4[%c0_46, %c0_47] : memref<1x32xf32, #tpu.memory_space<vmem>>, vector<1x32xf32>
    %c0_48 = arith.constant 0 : index
    %c0_49 = arith.constant 0 : index
    %116 = vector.load %arg5[%c0_48, %c0_49] : memref<1x32xf32, #tpu.memory_space<vmem>>, vector<1x32xf32>
    %cst_50 = arith.constant dense<0.000000e+00> : vector<8xf32>
    %117 = vector.multi_reduction <add>, %114, %cst_50 [1] : vector<8x32xf32> to vector<8xf32>
    %118 = vector.shape_cast %117 : vector<8xf32> to vector<8x1xf32>
    %cst_51 = arith.constant 3.200000e+01 : f32
    %119 = vector.broadcast %cst_51 : f32 to vector<8x1xf32>
    %120 = arith.divf %118, %119 : vector<8x1xf32>
    %121 = arith.mulf %114, %114 : vector<8x32xf32>
    %cst_52 = arith.constant dense<0.000000e+00> : vector<8xf32>
    %122 = vector.multi_reduction <add>, %121, %cst_52 [1] : vector<8x32xf32> to vector<8xf32>
    %123 = vector.shape_cast %122 : vector<8xf32> to vector<8x1xf32>
    %cst_53 = arith.constant 3.200000e+01 : f32
    %124 = vector.broadcast %cst_53 : f32 to vector<8x1xf32>
    %125 = arith.divf %123, %124 : vector<8x1xf32>
    %126 = arith.mulf %120, %120 : vector<8x1xf32>
    %127 = arith.subf %125, %126 : vector<8x1xf32>
    %cst_54 = arith.constant 0.000000e+00 : f32
    %128 = vector.broadcast %cst_54 : f32 to vector<8x1xf32>
    %129 = arith.maximumf %127, %128 : vector<8x1xf32>
    %cst_55 = arith.constant 9.99999974E-6 : f32
    %130 = vector.broadcast %cst_55 : f32 to vector<8x1xf32>
    %131 = arith.addf %129, %130 : vector<8x1xf32>
    %132 = math.rsqrt %131 : vector<8x1xf32>
    %133 = vector.broadcast %120 : vector<8x1xf32> to vector<8x32xf32>
    %134 = arith.subf %114, %133 : vector<8x32xf32>
    %135 = vector.broadcast %132 : vector<8x1xf32> to vector<8x32xf32>
    %136 = arith.mulf %134, %135 : vector<8x32xf32>
    %137 = vector.broadcast %115 : vector<1x32xf32> to vector<8x32xf32>
    %138 = arith.mulf %136, %137 : vector<8x32xf32>
    %139 = vector.broadcast %116 : vector<1x32xf32> to vector<8x32xf32>
    %140 = arith.addf %138, %139 : vector<8x32xf32>
    %c0_56 = arith.constant 0 : index
    %c0_57 = arith.constant 0 : index
    %141 = vector.load %arg11[%c0_56, %c0_57] : memref<32x128xf32, #tpu.memory_space<vmem>>, vector<32x128xf32>
    %cst_58 = arith.constant dense<0.000000e+00> : vector<8x128xf32>
    %142 = tpu.matmul %140, %141, %cst_58 {dimension_numbers = #tpu.dot_dimension_numbers<[1], [0], [0], [1], [0, 0, 1, 1], [], []>} : vector<8x32xf32>, vector<32x128xf32>, vector<8x128xf32> -> vector<8x128xf32>
    %c0_59 = arith.constant 0 : index
    %c0_60 = arith.constant 0 : index
    %143 = vector.load %arg12[%c0_59, %c0_60] : memref<1x128xf32, #tpu.memory_space<vmem>>, vector<1x128xf32>
    %144 = vector.broadcast %143 : vector<1x128xf32> to vector<8x128xf32>
    %145 = arith.addf %142, %144 : vector<8x128xf32>
    %cst_61 = arith.constant 5.000000e-01 : f32
    %146 = vector.broadcast %cst_61 : f32 to vector<8x128xf32>
    %147 = arith.mulf %146, %145 : vector<8x128xf32>
    %cst_62 = arith.constant 0.707106769 : f32
    %148 = vector.broadcast %cst_62 : f32 to vector<8x128xf32>
    %149 = arith.mulf %145, %148 : vector<8x128xf32>
    %cst_63 = arith.constant 0.000000e+00 : f32
    %150 = vector.broadcast %cst_63 : f32 to vector<8x128xf32>
    %151 = arith.cmpf oge, %149, %150 : vector<8x128xf32>
    %cst_64 = arith.constant 0.000000e+00 : f32
    %152 = vector.broadcast %cst_64 : f32 to vector<8x128xf32>
    %153 = arith.subf %152, %149 : vector<8x128xf32>
    %154 = arith.select %151, %149, %153 : vector<8x128xi1>, vector<8x128xf32>
    %cst_65 = arith.constant 0.327591091 : f32
    %155 = vector.broadcast %cst_65 : f32 to vector<8x128xf32>
    %156 = arith.mulf %155, %154 : vector<8x128xf32>
    %cst_66 = arith.constant 1.000000e+00 : f32
    %157 = vector.broadcast %cst_66 : f32 to vector<8x128xf32>
    %158 = arith.addf %157, %156 : vector<8x128xf32>
    %cst_67 = arith.constant 1.000000e+00 : f32
    %159 = vector.broadcast %cst_67 : f32 to vector<8x128xf32>
    %160 = arith.divf %159, %158 : vector<8x128xf32>
    %cst_68 = arith.constant 1.06140542 : f32
    %161 = vector.broadcast %cst_68 : f32 to vector<8x128xf32>
    %162 = arith.mulf %161, %160 : vector<8x128xf32>
    %cst_69 = arith.constant -1.45315206 : f32
    %163 = vector.broadcast %cst_69 : f32 to vector<8x128xf32>
    %164 = arith.addf %162, %163 : vector<8x128xf32>
    %165 = arith.mulf %164, %160 : vector<8x128xf32>
    %cst_70 = arith.constant 1.42141378 : f32
    %166 = vector.broadcast %cst_70 : f32 to vector<8x128xf32>
    %167 = arith.addf %165, %166 : vector<8x128xf32>
    %168 = arith.mulf %167, %160 : vector<8x128xf32>
    %cst_71 = arith.constant -0.284496725 : f32
    %169 = vector.broadcast %cst_71 : f32 to vector<8x128xf32>
    %170 = arith.addf %168, %169 : vector<8x128xf32>
    %171 = arith.mulf %170, %160 : vector<8x128xf32>
    %cst_72 = arith.constant 0.254829586 : f32
    %172 = vector.broadcast %cst_72 : f32 to vector<8x128xf32>
    %173 = arith.addf %171, %172 : vector<8x128xf32>
    %174 = arith.mulf %173, %160 : vector<8x128xf32>
    %cst_73 = arith.constant 0.000000e+00 : f32
    %175 = vector.broadcast %cst_73 : f32 to vector<8x128xf32>
    %176 = arith.subf %175, %154 : vector<8x128xf32>
    %177 = arith.mulf %176, %154 : vector<8x128xf32>
    %178 = math.exp %177 : vector<8x128xf32>
    %179 = arith.mulf %174, %178 : vector<8x128xf32>
    %cst_74 = arith.constant 1.000000e+00 : f32
    %180 = vector.broadcast %cst_74 : f32 to vector<8x128xf32>
    %181 = arith.subf %180, %179 : vector<8x128xf32>
    %cst_75 = arith.constant 0.000000e+00 : f32
    %182 = vector.broadcast %cst_75 : f32 to vector<8x128xf32>
    %183 = arith.cmpf oge, %149, %182 : vector<8x128xf32>
    %cst_76 = arith.constant 0.000000e+00 : f32
    %184 = vector.broadcast %cst_76 : f32 to vector<8x128xf32>
    %185 = arith.subf %184, %181 : vector<8x128xf32>
    %186 = arith.select %183, %181, %185 : vector<8x128xi1>, vector<8x128xf32>
    %cst_77 = arith.constant 1.000000e+00 : f32
    %187 = vector.broadcast %cst_77 : f32 to vector<8x128xf32>
    %188 = arith.addf %187, %186 : vector<8x128xf32>
    %189 = arith.mulf %147, %188 : vector<8x128xf32>
    %c0_78 = arith.constant 0 : index
    %c0_79 = arith.constant 0 : index
    %190 = vector.load %arg13[%c0_78, %c0_79] : memref<128x32xf32, #tpu.memory_space<vmem>>, vector<128x32xf32>
    %cst_80 = arith.constant dense<0.000000e+00> : vector<8x32xf32>
    %191 = tpu.matmul %189, %190, %cst_80 {dimension_numbers = #tpu.dot_dimension_numbers<[1], [0], [0], [1], [0, 0, 1, 1], [], []>} : vector<8x128xf32>, vector<128x32xf32>, vector<8x32xf32> -> vector<8x32xf32>
    %c0_81 = arith.constant 0 : index
    %c0_82 = arith.constant 0 : index
    %192 = vector.load %arg14[%c0_81, %c0_82] : memref<1x32xf32, #tpu.memory_space<vmem>>, vector<1x32xf32>
    %193 = vector.broadcast %192 : vector<1x32xf32> to vector<8x32xf32>
    %194 = arith.addf %191, %193 : vector<8x32xf32>
    %195 = arith.addf %114, %194 : vector<8x32xf32>
    %c0_83 = arith.constant 0 : index
    %c0_84 = arith.constant 0 : index
    %c0_85 = arith.constant 0 : index
    %196 = vector.load %arg15[%c0_83, %c0_84, %c0_85] : memref<1x8x32xf32, #tpu.memory_space<vmem>>, vector<1x8x32xf32>
    %197 = vector.shape_cast %196 : vector<1x8x32xf32> to vector<8x32xf32>
    %198 = vector.shape_cast %195 : vector<8x32xf32> to vector<1x8x32xf32>
    tpu.vector_store %arg15[%c0_83, %c0_84, %c0_85], %198 {strides = array<i32>} : memref<1x8x32xf32, #tpu.memory_space<vmem>>, vector<1x8x32xf32>,
    return
  }
  func.func @transform_0(%arg0: i32) -> (i32, i32, i32) {
    %c0_i32 = arith.constant 0 : i32
    %c0_i32_0 = arith.constant 0 : i32
    %c0_i32_1 = arith.constant 0 : i32
    return %arg0, %c0_i32, %c0_i32_0 : i32, i32, i32
  }
  func.func @transform_1(%arg0: i32) -> (i32, i32) {
    %c0_i32 = arith.constant 0 : i32
    %c0_i32_0 = arith.constant 0 : i32
    %c0_i32_1 = arith.constant 0 : i32
    return %c0_i32, %c0_i32_0 : i32, i32
  }
  func.func @transform_2(%arg0: i32) -> (i32, i32) {
    %c0_i32 = arith.constant 0 : i32
    %c0_i32_0 = arith.constant 0 : i32
    %c0_i32_1 = arith.constant 0 : i32
    return %c0_i32, %c0_i32_0 : i32, i32
  }
  func.func @transform_3(%arg0: i32) -> (i32, i32) {
    %c0_i32 = arith.constant 0 : i32
    %c0_i32_0 = arith.constant 0 : i32
    %c0_i32_1 = arith.constant 0 : i32
    return %c0_i32, %c0_i32_0 : i32, i32
  }
  func.func @transform_4(%arg0: i32) -> (i32, i32) {
    %c0_i32 = arith.constant 0 : i32
    %c0_i32_0 = arith.constant 0 : i32
    %c0_i32_1 = arith.constant 0 : i32
    return %c0_i32, %c0_i32_0 : i32, i32
  }
  func.func @transform_5(%arg0: i32) -> (i32, i32) {
    %c0_i32 = arith.constant 0 : i32
    %c0_i32_0 = arith.constant 0 : i32
    %c0_i32_1 = arith.constant 0 : i32
    return %c0_i32, %c0_i32_0 : i32, i32
  }
  func.func @transform_6(%arg0: i32) -> (i32, i32) {
    %c0_i32 = arith.constant 0 : i32
    %c0_i32_0 = arith.constant 0 : i32
    %c0_i32_1 = arith.constant 0 : i32
    return %c0_i32, %c0_i32_0 : i32, i32
  }
  func.func @transform_7(%arg0: i32) -> (i32, i32) {
    %c0_i32 = arith.constant 0 : i32
    %c0_i32_0 = arith.constant 0 : i32
    %c0_i32_1 = arith.constant 0 : i32
    return %c0_i32, %c0_i32_0 : i32, i32
  }
  func.func @transform_8(%arg0: i32) -> (i32, i32) {
    %c0_i32 = arith.constant 0 : i32
    %c0_i32_0 = arith.constant 0 : i32
    %c0_i32_1 = arith.constant 0 : i32
    return %c0_i32, %c0_i32_0 : i32, i32
  }
  func.func @transform_9(%arg0: i32) -> (i32, i32) {
    %c0_i32 = arith.constant 0 : i32
    %c0_i32_0 = arith.constant 0 : i32
    %c0_i32_1 = arith.constant 0 : i32
    return %c0_i32, %c0_i32_0 : i32, i32
  }
  func.func @transform_10(%arg0: i32) -> (i32, i32) {
    %c0_i32 = arith.constant 0 : i32
    %c0_i32_0 = arith.constant 0 : i32
    %c0_i32_1 = arith.constant 0 : i32
    return %c0_i32, %c0_i32_0 : i32, i32
  }
  func.func @transform_11(%arg0: i32) -> (i32, i32) {
    %c0_i32 = arith.constant 0 : i32
    %c0_i32_0 = arith.constant 0 : i32
    %c0_i32_1 = arith.constant 0 : i32
    return %c0_i32, %c0_i32_0 : i32, i32
  }
  func.func @transform_12(%arg0: i32) -> (i32, i32) {
    %c0_i32 = arith.constant 0 : i32
    %c0_i32_0 = arith.constant 0 : i32
    %c0_i32_1 = arith.constant 0 : i32
    return %c0_i32, %c0_i32_0 : i32, i32
  }
  func.func @transform_13(%arg0: i32) -> (i32, i32) {
    %c0_i32 = arith.constant 0 : i32
    %c0_i32_0 = arith.constant 0 : i32
    %c0_i32_1 = arith.constant 0 : i32
    return %c0_i32, %c0_i32_0 : i32, i32
  }
  func.func @transform_14(%arg0: i32) -> (i32, i32, i32) {
    %c0_i32 = arith.constant 0 : i32
    %c0_i32_0 = arith.constant 0 : i32
    %c0_i32_1 = arith.constant 0 : i32
    return %arg0, %c0_i32, %c0_i32_0 : i32, i32, i32
  }
}

module attributes {stable_mosaic.version = 11 : i64} {
  func.func @block_kernel(%arg0: i32, %arg1: memref<1x8x32xf32, #tpu.memory_space<vmem>>, %arg2: memref<1x32xf32, #tpu.memory_space<vmem>>, %arg3: memref<1x32xf32, #tpu.memory_space<vmem>>, %arg4: memref<1x32xf32, #tpu.memory_space<vmem>>, %arg5: memref<1x32xf32, #tpu.memory_space<vmem>>, %arg6: memref<8x8xf32, #tpu.memory_space<vmem>>, %arg7: memref<32x96xf32, #tpu.memory_space<vmem>>, %arg8: memref<1x96xf32, #tpu.memory_space<vmem>>, %arg9: memref<32x32xf32, #tpu.memory_space<vmem>>, %arg10: memref<1x32xf32, #tpu.memory_space<vmem>>, %arg11: memref<32x128xf32, #tpu.memory_space<vmem>>, %arg12: memref<1x128xf32, #tpu.memory_space<vmem>>, %arg13: memref<128x32xf32, #tpu.memory_space<vmem>>, %arg14: memref<1x32xf32, #tpu.memory_space<vmem>>, %arg15: memref<1x8x32xf32, #tpu.memory_space<vmem>>) attributes {dimension_semantics = [#tpu.dimension_semantics<parallel>], iteration_bounds = array<i64: 2>, scalar_prefetch = 0 : i64, scratch_operands = 0 : i64, tpu.core_type = #tpu.core_type<tc>, window_params = [{transform_indices = @transform_0, window_bounds = array<i64: 1, 8, 32>}, {pipeline_mode = #tpu.pipeline_mode<synchronous>, transform_indices = @transform_1, window_bounds = array<i64: 1, 32>}, {pipeline_mode = #tpu.pipeline_mode<synchronous>, transform_indices = @transform_2, window_bounds = array<i64: 1, 32>}, {pipeline_mode = #tpu.pipeline_mode<synchronous>, transform_indices = @transform_3, window_bounds = array<i64: 1, 32>}, {pipeline_mode = #tpu.pipeline_mode<synchronous>, transform_indices = @transform_4, window_bounds = array<i64: 1, 32>}, {pipeline_mode = #tpu.pipeline_mode<synchronous>, transform_indices = @transform_5, window_bounds = array<i64: 8, 8>}, {pipeline_mode = #tpu.pipeline_mode<synchronous>, transform_indices = @transform_6, window_bounds = array<i64: 32, 96>}, {pipeline_mode = #tpu.pipeline_mode<synchronous>, transform_indices = @transform_7, window_bounds = array<i64: 1, 96>}, {pipeline_mode = #tpu.pipeline_mode<synchronous>, transform_indices = @transform_8, window_bounds = array<i64: 32, 32>}, {pipeline_mode = #tpu.pipeline_mode<synchronous>, transform_indices = @transform_9, window_bounds = array<i64: 1, 32>}, {pipeline_mode = #tpu.pipeline_mode<synchronous>, transform_indices = @transform_10, window_bounds = array<i64: 32, 128>}, {pipeline_mode = #tpu.pipeline_mode<synchronous>, transform_indices = @transform_11, window_bounds = array<i64: 1, 128>}, {pipeline_mode = #tpu.pipeline_mode<synchronous>, transform_indices = @transform_12, window_bounds = array<i64: 128, 32>}, {pipeline_mode = #tpu.pipeline_mode<synchronous>, transform_indices = @transform_13, window_bounds = array<i64: 1, 32>}, {transform_indices = @transform_14, window_bounds = array<i64: 1, 8, 32>}]} {
    %c0 = arith.constant 0 : index
    %c0_0 = arith.constant 0 : index
    %c0_1 = arith.constant 0 : index
    %0 = vector.load %arg1[%c0, %c0_0, %c0_1] : memref<1x8x32xf32, #tpu.memory_space<vmem>>, vector<1x8x32xf32>
    %1 = vector.shape_cast %0 : vector<1x8x32xf32> to vector<8x32xf32>
    %c0_2 = arith.constant 0 : index
    %c0_3 = arith.constant 0 : index
    %2 = vector.load %arg2[%c0_2, %c0_3] : memref<1x32xf32, #tpu.memory_space<vmem>>, vector<1x32xf32>
    %c0_4 = arith.constant 0 : index
    %c0_5 = arith.constant 0 : index
    %3 = vector.load %arg3[%c0_4, %c0_5] : memref<1x32xf32, #tpu.memory_space<vmem>>, vector<1x32xf32>
    %cst = arith.constant dense<0.000000e+00> : vector<8xf32>
    %4 = vector.multi_reduction <add>, %1, %cst [1] : vector<8x32xf32> to vector<8xf32>
    %5 = vector.shape_cast %4 : vector<8xf32> to vector<8x1xf32>
    %cst_6 = arith.constant 3.200000e+01 : f32
    %6 = vector.broadcast %cst_6 : f32 to vector<8x1xf32>
    %7 = arith.divf %5, %6 : vector<8x1xf32>
    %8 = arith.mulf %1, %1 : vector<8x32xf32>
    %cst_7 = arith.constant dense<0.000000e+00> : vector<8xf32>
    %9 = vector.multi_reduction <add>, %8, %cst_7 [1] : vector<8x32xf32> to vector<8xf32>
    %10 = vector.shape_cast %9 : vector<8xf32> to vector<8x1xf32>
    %cst_8 = arith.constant 3.200000e+01 : f32
    %11 = vector.broadcast %cst_8 : f32 to vector<8x1xf32>
    %12 = arith.divf %10, %11 : vector<8x1xf32>
    %13 = arith.mulf %7, %7 : vector<8x1xf32>
    %14 = arith.subf %12, %13 : vector<8x1xf32>
    %cst_9 = arith.constant 0.000000e+00 : f32
    %15 = vector.broadcast %cst_9 : f32 to vector<8x1xf32>
    %16 = arith.maximumf %14, %15 : vector<8x1xf32>
    %cst_10 = arith.constant 9.99999974E-6 : f32
    %17 = vector.broadcast %cst_10 : f32 to vector<8x1xf32>
    %18 = arith.addf %16, %17 : vector<8x1xf32>
    %19 = math.rsqrt %18 : vector<8x1xf32>
    %20 = vector.broadcast %7 : vector<8x1xf32> to vector<8x32xf32>
    %21 = arith.subf %1, %20 : vector<8x32xf32>
    %22 = vector.broadcast %19 : vector<8x1xf32> to vector<8x32xf32>
    %23 = arith.mulf %21, %22 : vector<8x32xf32>
    %24 = vector.broadcast %2 : vector<1x32xf32> to vector<8x32xf32>
    %25 = arith.mulf %23, %24 : vector<8x32xf32>
    %26 = vector.broadcast %3 : vector<1x32xf32> to vector<8x32xf32>
    %27 = arith.addf %25, %26 : vector<8x32xf32>
    %c0_11 = arith.constant 0 : index
    %c0_12 = arith.constant 0 : index
    %28 = vector.load %arg7[%c0_11, %c0_12] : memref<32x96xf32, #tpu.memory_space<vmem>>, vector<32x96xf32>
    %cst_13 = arith.constant dense<0.000000e+00> : vector<8x96xf32>
    %29 = tpu.matmul %27, %28, %cst_13 {dimension_numbers = #tpu.dot_dimension_numbers<[1], [0], [0], [1], [0, 0, 1, 1], [], []>} : vector<8x32xf32>, vector<32x96xf32>, vector<8x96xf32> -> vector<8x96xf32>
    %c0_14 = arith.constant 0 : index
    %c0_15 = arith.constant 0 : index
    %30 = vector.load %arg8[%c0_14, %c0_15] : memref<1x96xf32, #tpu.memory_space<vmem>>, vector<1x96xf32>
    %31 = vector.broadcast %30 : vector<1x96xf32> to vector<8x96xf32>
    %32 = arith.addf %29, %31 : vector<8x96xf32>
    %c0_16 = arith.constant 0 : index
    %c0_17 = arith.constant 0 : index
    %33 = vector.load %arg6[%c0_16, %c0_17] : memref<8x8xf32, #tpu.memory_space<vmem>>, vector<8x8xf32>
    %cst_18 = arith.constant 0.000000e+00 : f32
    %34 = vector.broadcast %cst_18 : f32 to vector<8x32xf32>
    %35 = vector.extract_strided_slice %32 {offsets = [0, 0], sizes = [8, 8], strides = [1, 1]} : vector<8x96xf32> to vector<8x8xf32>
    %36 = vector.extract_strided_slice %32 {offsets = [0, 32], sizes = [8, 8], strides = [1, 1]} : vector<8x96xf32> to vector<8x8xf32>
    %37 = vector.extract_strided_slice %32 {offsets = [0, 64], sizes = [8, 8], strides = [1, 1]} : vector<8x96xf32> to vector<8x8xf32>
    %cst_19 = arith.constant dense<0.000000e+00> : vector<8x8xf32>
    %38 = tpu.matmul %35, %36, %cst_19 {dimension_numbers = #tpu.dot_dimension_numbers<[1], [1], [0], [0], [0, 0, 1, 0], [], []>} : vector<8x8xf32>, vector<8x8xf32>, vector<8x8xf32> -> vector<8x8xf32>
    %39 = arith.addf %38, %33 : vector<8x8xf32>
    %cst_20 = arith.constant dense<0xFF800000> : vector<8xf32>
    %40 = vector.multi_reduction <maximumf>, %39, %cst_20 [1] : vector<8x8xf32> to vector<8xf32>
    %41 = vector.shape_cast %40 : vector<8xf32> to vector<8x1xf32>
    %42 = vector.broadcast %41 : vector<8x1xf32> to vector<8x8xf32>
    %43 = arith.subf %39, %42 : vector<8x8xf32>
    %44 = math.exp %43 : vector<8x8xf32>
    %cst_21 = arith.constant dense<0.000000e+00> : vector<8xf32>
    %45 = vector.multi_reduction <add>, %44, %cst_21 [1] : vector<8x8xf32> to vector<8xf32>
    %46 = vector.shape_cast %45 : vector<8xf32> to vector<8x1xf32>
    %cst_22 = arith.constant dense<0.000000e+00> : vector<8x8xf32>
    %47 = tpu.matmul %44, %37, %cst_22 {dimension_numbers = #tpu.dot_dimension_numbers<[1], [0], [0], [1], [0, 0, 1, 1], [], []>} : vector<8x8xf32>, vector<8x8xf32>, vector<8x8xf32> -> vector<8x8xf32>
    %48 = tpu.reciprocal %46 : vector<8x1xf32> -> vector<8x1xf32>
    %49 = vector.broadcast %48 : vector<8x1xf32> to vector<8x8xf32>
    %50 = arith.mulf %47, %49 : vector<8x8xf32>
    %c0_23 = arith.constant 0 : index
    %c0_24 = arith.constant 0 : index
    %51 = vector.load %arg9[%c0_23, %c0_24] : memref<32x32xf32, #tpu.memory_space<vmem>>, vector<8x32xf32>
    %cst_25 = arith.constant dense<0.000000e+00> : vector<8x32xf32>
    %52 = tpu.matmul %50, %51, %cst_25 {dimension_numbers = #tpu.dot_dimension_numbers<[1], [0], [0], [1], [0, 0, 1, 1], [], []>} : vector<8x8xf32>, vector<8x32xf32>, vector<8x32xf32> -> vector<8x32xf32>
    %53 = arith.addf %34, %52 : vector<8x32xf32>
    %54 = vector.extract_strided_slice %32 {offsets = [0, 8], sizes = [8, 8], strides = [1, 1]} : vector<8x96xf32> to vector<8x8xf32>
    %55 = vector.extract_strided_slice %32 {offsets = [0, 40], sizes = [8, 8], strides = [1, 1]} : vector<8x96xf32> to vector<8x8xf32>
    %56 = vector.extract_strided_slice %32 {offsets = [0, 72], sizes = [8, 8], strides = [1, 1]} : vector<8x96xf32> to vector<8x8xf32>
    %cst_26 = arith.constant dense<0.000000e+00> : vector<8x8xf32>
    %57 = tpu.matmul %54, %55, %cst_26 {dimension_numbers = #tpu.dot_dimension_numbers<[1], [1], [0], [0], [0, 0, 1, 0], [], []>} : vector<8x8xf32>, vector<8x8xf32>, vector<8x8xf32> -> vector<8x8xf32>
    %58 = arith.addf %57, %33 : vector<8x8xf32>
    %cst_27 = arith.constant dense<0xFF800000> : vector<8xf32>
    %59 = vector.multi_reduction <maximumf>, %58, %cst_27 [1] : vector<8x8xf32> to vector<8xf32>
    %60 = vector.shape_cast %59 : vector<8xf32> to vector<8x1xf32>
    %61 = vector.broadcast %60 : vector<8x1xf32> to vector<8x8xf32>
    %62 = arith.subf %58, %61 : vector<8x8xf32>
    %63 = math.exp %62 : vector<8x8xf32>
    %cst_28 = arith.constant dense<0.000000e+00> : vector<8xf32>
    %64 = vector.multi_reduction <add>, %63, %cst_28 [1] : vector<8x8xf32> to vector<8xf32>
    %65 = vector.shape_cast %64 : vector<8xf32> to vector<8x1xf32>
    %cst_29 = arith.constant dense<0.000000e+00> : vector<8x8xf32>
    %66 = tpu.matmul %63, %56, %cst_29 {dimension_numbers = #tpu.dot_dimension_numbers<[1], [0], [0], [1], [0, 0, 1, 1], [], []>} : vector<8x8xf32>, vector<8x8xf32>, vector<8x8xf32> -> vector<8x8xf32>
    %67 = tpu.reciprocal %65 : vector<8x1xf32> -> vector<8x1xf32>
    %68 = vector.broadcast %67 : vector<8x1xf32> to vector<8x8xf32>
    %69 = arith.mulf %66, %68 : vector<8x8xf32>
    %c8 = arith.constant 8 : index
    %c0_30 = arith.constant 0 : index
    %70 = vector.load %arg9[%c8, %c0_30] : memref<32x32xf32, #tpu.memory_space<vmem>>, vector<8x32xf32>
    %cst_31 = arith.constant dense<0.000000e+00> : vector<8x32xf32>
    %71 = tpu.matmul %69, %70, %cst_31 {dimension_numbers = #tpu.dot_dimension_numbers<[1], [0], [0], [1], [0, 0, 1, 1], [], []>} : vector<8x8xf32>, vector<8x32xf32>, vector<8x32xf32> -> vector<8x32xf32>
    %72 = arith.addf %53, %71 : vector<8x32xf32>
    %73 = vector.extract_strided_slice %32 {offsets = [0, 16], sizes = [8, 8], strides = [1, 1]} : vector<8x96xf32> to vector<8x8xf32>
    %74 = vector.extract_strided_slice %32 {offsets = [0, 48], sizes = [8, 8], strides = [1, 1]} : vector<8x96xf32> to vector<8x8xf32>
    %75 = vector.extract_strided_slice %32 {offsets = [0, 80], sizes = [8, 8], strides = [1, 1]} : vector<8x96xf32> to vector<8x8xf32>
    %cst_32 = arith.constant dense<0.000000e+00> : vector<8x8xf32>
    %76 = tpu.matmul %73, %74, %cst_32 {dimension_numbers = #tpu.dot_dimension_numbers<[1], [1], [0], [0], [0, 0, 1, 0], [], []>} : vector<8x8xf32>, vector<8x8xf32>, vector<8x8xf32> -> vector<8x8xf32>
    %77 = arith.addf %76, %33 : vector<8x8xf32>
    %cst_33 = arith.constant dense<0xFF800000> : vector<8xf32>
    %78 = vector.multi_reduction <maximumf>, %77, %cst_33 [1] : vector<8x8xf32> to vector<8xf32>
    %79 = vector.shape_cast %78 : vector<8xf32> to vector<8x1xf32>
    %80 = vector.broadcast %79 : vector<8x1xf32> to vector<8x8xf32>
    %81 = arith.subf %77, %80 : vector<8x8xf32>
    %82 = math.exp %81 : vector<8x8xf32>
    %cst_34 = arith.constant dense<0.000000e+00> : vector<8xf32>
    %83 = vector.multi_reduction <add>, %82, %cst_34 [1] : vector<8x8xf32> to vector<8xf32>
    %84 = vector.shape_cast %83 : vector<8xf32> to vector<8x1xf32>
    %cst_35 = arith.constant dense<0.000000e+00> : vector<8x8xf32>
    %85 = tpu.matmul %82, %75, %cst_35 {dimension_numbers = #tpu.dot_dimension_numbers<[1], [0], [0], [1], [0, 0, 1, 1], [], []>} : vector<8x8xf32>, vector<8x8xf32>, vector<8x8xf32> -> vector<8x8xf32>
    %86 = tpu.reciprocal %84 : vector<8x1xf32> -> vector<8x1xf32>
    %87 = vector.broadcast %86 : vector<8x1xf32> to vector<8x8xf32>
    %88 = arith.mulf %85, %87 : vector<8x8xf32>
    %c16 = arith.constant 16 : index
    %c0_36 = arith.constant 0 : index
    %89 = vector.load %arg9[%c16, %c0_36] : memref<32x32xf32, #tpu.memory_space<vmem>>, vector<8x32xf32>
    %cst_37 = arith.constant dense<0.000000e+00> : vector<8x32xf32>
    %90 = tpu.matmul %88, %89, %cst_37 {dimension_numbers = #tpu.dot_dimension_numbers<[1], [0], [0], [1], [0, 0, 1, 1], [], []>} : vector<8x8xf32>, vector<8x32xf32>, vector<8x32xf32> -> vector<8x32xf32>
    %91 = arith.addf %72, %90 : vector<8x32xf32>
    %92 = vector.extract_strided_slice %32 {offsets = [0, 24], sizes = [8, 8], strides = [1, 1]} : vector<8x96xf32> to vector<8x8xf32>
    %93 = vector.extract_strided_slice %32 {offsets = [0, 56], sizes = [8, 8], strides = [1, 1]} : vector<8x96xf32> to vector<8x8xf32>
    %94 = vector.extract_strided_slice %32 {offsets = [0, 88], sizes = [8, 8], strides = [1, 1]} : vector<8x96xf32> to vector<8x8xf32>
    %cst_38 = arith.constant dense<0.000000e+00> : vector<8x8xf32>
    %95 = tpu.matmul %92, %93, %cst_38 {dimension_numbers = #tpu.dot_dimension_numbers<[1], [1], [0], [0], [0, 0, 1, 0], [], []>} : vector<8x8xf32>, vector<8x8xf32>, vector<8x8xf32> -> vector<8x8xf32>
    %96 = arith.addf %95, %33 : vector<8x8xf32>
    %cst_39 = arith.constant dense<0xFF800000> : vector<8xf32>
    %97 = vector.multi_reduction <maximumf>, %96, %cst_39 [1] : vector<8x8xf32> to vector<8xf32>
    %98 = vector.shape_cast %97 : vector<8xf32> to vector<8x1xf32>
    %99 = vector.broadcast %98 : vector<8x1xf32> to vector<8x8xf32>
    %100 = arith.subf %96, %99 : vector<8x8xf32>
    %101 = math.exp %100 : vector<8x8xf32>
    %cst_40 = arith.constant dense<0.000000e+00> : vector<8xf32>
    %102 = vector.multi_reduction <add>, %101, %cst_40 [1] : vector<8x8xf32> to vector<8xf32>
    %103 = vector.shape_cast %102 : vector<8xf32> to vector<8x1xf32>
    %cst_41 = arith.constant dense<0.000000e+00> : vector<8x8xf32>
    %104 = tpu.matmul %101, %94, %cst_41 {dimension_numbers = #tpu.dot_dimension_numbers<[1], [0], [0], [1], [0, 0, 1, 1], [], []>} : vector<8x8xf32>, vector<8x8xf32>, vector<8x8xf32> -> vector<8x8xf32>
    %105 = tpu.reciprocal %103 : vector<8x1xf32> -> vector<8x1xf32>
    %106 = vector.broadcast %105 : vector<8x1xf32> to vector<8x8xf32>
    %107 = arith.mulf %104, %106 : vector<8x8xf32>
    %c24 = arith.constant 24 : index
    %c0_42 = arith.constant 0 : index
    %108 = vector.load %arg9[%c24, %c0_42] : memref<32x32xf32, #tpu.memory_space<vmem>>, vector<8x32xf32>
    %cst_43 = arith.constant dense<0.000000e+00> : vector<8x32xf32>
    %109 = tpu.matmul %107, %108, %cst_43 {dimension_numbers = #tpu.dot_dimension_numbers<[1], [0], [0], [1], [0, 0, 1, 1], [], []>} : vector<8x8xf32>, vector<8x32xf32>, vector<8x32xf32> -> vector<8x32xf32>
    %110 = arith.addf %91, %109 : vector<8x32xf32>
    %111 = arith.addf %1, %110 : vector<8x32xf32>
    %c0_44 = arith.constant 0 : index
    %c0_45 = arith.constant 0 : index
    %112 = vector.load %arg10[%c0_44, %c0_45] : memref<1x32xf32, #tpu.memory_space<vmem>>, vector<1x32xf32>
    %113 = vector.broadcast %112 : vector<1x32xf32> to vector<8x32xf32>
    %114 = arith.addf %111, %113 : vector<8x32xf32>
    %c0_46 = arith.constant 0 : index
    %c0_47 = arith.constant 0 : index
    %115 = vector.load %arg4[%c0_46, %c0_47] : memref<1x32xf32, #tpu.memory_space<vmem>>, vector<1x32xf32>
    %c0_48 = arith.constant 0 : index
    %c0_49 = arith.constant 0 : index
    %116 = vector.load %arg5[%c0_48, %c0_49] : memref<1x32xf32, #tpu.memory_space<vmem>>, vector<1x32xf32>
    %cst_50 = arith.constant dense<0.000000e+00> : vector<8xf32>
    %117 = vector.multi_reduction <add>, %114, %cst_50 [1] : vector<8x32xf32> to vector<8xf32>
    %118 = vector.shape_cast %117 : vector<8xf32> to vector<8x1xf32>
    %cst_51 = arith.constant 3.200000e+01 : f32
    %119 = vector.broadcast %cst_51 : f32 to vector<8x1xf32>
    %120 = arith.divf %118, %119 : vector<8x1xf32>
    %121 = arith.mulf %114, %114 : vector<8x32xf32>
    %cst_52 = arith.constant dense<0.000000e+00> : vector<8xf32>
    %122 = vector.multi_reduction <add>, %121, %cst_52 [1] : vector<8x32xf32> to vector<8xf32>
    %123 = vector.shape_cast %122 : vector<8xf32> to vector<8x1xf32>
    %cst_53 = arith.constant 3.200000e+01 : f32
    %124 = vector.broadcast %cst_53 : f32 to vector<8x1xf32>
    %125 = arith.divf %123, %124 : vector<8x1xf32>
    %126 = arith.mulf %120, %120 : vector<8x1xf32>
    %127 = arith.subf %125, %126 : vector<8x1xf32>
    %cst_54 = arith.constant 0.000000e+00 : f32
    %128 = vector.broadcast %cst_54 : f32 to vector<8x1xf32>
    %129 = arith.maximumf %127, %128 : vector<8x1xf32>
    %cst_55 = arith.constant 9.99999974E-6 : f32
    %130 = vector.broadcast %cst_55 : f32 to vector<8x1xf32>
    %131 = arith.addf %129, %130 : vector<8x1xf32>
    %132 = math.rsqrt %131 : vector<8x1xf32>
    %133 = vector.broadcast %120 : vector<8x1xf32> to vector<8x32xf32>
    %134 = arith.subf %114, %133 : vector<8x32xf32>
    %135 = vector.broadcast %132 : vector<8x1xf32> to vector<8x32xf32>
    %136 = arith.mulf %134, %135 : vector<8x32xf32>
    %137 = vector.broadcast %115 : vector<1x32xf32> to vector<8x32xf32>
    %138 = arith.mulf %136, %137 : vector<8x32xf32>
    %139 = vector.broadcast %116 : vector<1x32xf32> to vector<8x32xf32>
    %140 = arith.addf %138, %139 : vector<8x32xf32>
    %c0_56 = arith.constant 0 : index
    %c0_57 = arith.constant 0 : index
    %141 = vector.load %arg11[%c0_56, %c0_57] : memref<32x128xf32, #tpu.memory_space<vmem>>, vector<32x128xf32>
    %cst_58 = arith.constant dense<0.000000e+00> : vector<8x128xf32>
    %142 = tpu.matmul %140, %141, %cst_58 {dimension_numbers = #tpu.dot_dimension_numbers<[1], [0], [0], [1], [0, 0, 1, 1], [], []>} : vector<8x32xf32>, vector<32x128xf32>, vector<8x128xf32> -> vector<8x128xf32>
    %c0_59 = arith.constant 0 : index
    %c0_60 = arith.constant 0 : index
    %143 = vector.load %arg12[%c0_59, %c0_60] : memref<1x128xf32, #tpu.memory_space<vmem>>, vector<1x128xf32>
    %144 = vector.broadcast %143 : vector<1x128xf32> to vector<8x128xf32>
    %145 = arith.addf %142, %144 : vector<8x128xf32>
    %cst_61 = arith.constant 5.000000e-01 : f32
    %146 = vector.broadcast %cst_61 : f32 to vector<8x128xf32>
    %147 = arith.mulf %146, %145 : vector<8x128xf32>
    %cst_62 = arith.constant 0.707106769 : f32
    %148 = vector.broadcast %cst_62 : f32 to vector<8x128xf32>
    %149 = arith.mulf %145, %148 : vector<8x128xf32>
    %cst_63 = arith.constant 0.000000e+00 : f32
    %150 = vector.broadcast %cst_63 : f32 to vector<8x128xf32>
    %151 = arith.cmpf oge, %149, %150 : vector<8x128xf32>
    %cst_64 = arith.constant 0.000000e+00 : f32
    %152 = vector.broadcast %cst_64 : f32 to vector<8x128xf32>
    %153 = arith.subf %152, %149 : vector<8x128xf32>
    %154 = arith.select %151, %149, %153 : vector<8x128xi1>, vector<8x128xf32>
    %cst_65 = arith.constant 0.327591091 : f32
    %155 = vector.broadcast %cst_65 : f32 to vector<8x128xf32>
    %156 = arith.mulf %155, %154 : vector<8x128xf32>
    %cst_66 = arith.constant 1.000000e+00 : f32
    %157 = vector.broadcast %cst_66 : f32 to vector<8x128xf32>
    %158 = arith.addf %157, %156 : vector<8x128xf32>
    %cst_67 = arith.constant 1.000000e+00 : f32
    %159 = vector.broadcast %cst_67 : f32 to vector<8x128xf32>
    %160 = arith.divf %159, %158 : vector<8x128xf32>
    %cst_68 = arith.constant 1.06140542 : f32
    %161 = vector.broadcast %cst_68 : f32 to vector<8x128xf32>
    %162 = arith.mulf %161, %160 : vector<8x128xf32>
    %cst_69 = arith.constant -1.45315206 : f32
    %163 = vector.broadcast %cst_69 : f32 to vector<8x128xf32>
    %164 = arith.addf %162, %163 : vector<8x128xf32>
    %165 = arith.mulf %164, %160 : vector<8x128xf32>
    %cst_70 = arith.constant 1.42141378 : f32
    %166 = vector.broadcast %cst_70 : f32 to vector<8x128xf32>
    %167 = arith.addf %165, %166 : vector<8x128xf32>
    %168 = arith.mulf %167, %160 : vector<8x128xf32>
    %cst_71 = arith.constant -0.284496725 : f32
    %169 = vector.broadcast %cst_71 : f32 to vector<8x128xf32>
    %170 = arith.addf %168, %169 : vector<8x128xf32>
    %171 = arith.mulf %170, %160 : vector<8x128xf32>
    %cst_72 = arith.constant 0.254829586 : f32
    %172 = vector.broadcast %cst_72 : f32 to vector<8x128xf32>
    %173 = arith.addf %171, %172 : vector<8x128xf32>
    %174 = arith.mulf %173, %160 : vector<8x128xf32>
    %cst_73 = arith.constant 0.000000e+00 : f32
    %175 = vector.broadcast %cst_73 : f32 to vector<8x128xf32>
    %176 = arith.subf %175, %154 : vector<8x128xf32>
    %177 = arith.mulf %176, %154 : vector<8x128xf32>
    %178 = math.exp %177 : vector<8x128xf32>
    %179 = arith.mulf %174, %178 : vector<8x128xf32>
    %cst_74 = arith.constant 1.000000e+00 : f32
    %180 = vector.broadcast %cst_74 : f32 to vector<8x128xf32>
    %181 = arith.subf %180, %179 : vector<8x128xf32>
    %cst_75 = arith.constant 0.000000e+00 : f32
    %182 = vector.broadcast %cst_75 : f32 to vector<8x128xf32>
    %183 = arith.cmpf oge, %149, %182 : vector<8x128xf32>
    %cst_76 = arith.constant 0.000000e+00 : f32
    %184 = vector.broadcast %cst_76 : f32 to vector<8x128xf32>
    %185 = arith.subf %184, %181 : vector<8x128xf32>
    %186 = arith.select %183, %181, %185 : vector<8x128xi1>, vector<8x128xf32>
    %cst_77 = arith.constant 1.000000e+00 : f32
    %187 = vector.broadcast %cst_77 : f32 to vector<8x128xf32>
    %188 = arith.addf %187, %186 : vector<8x128xf32>
    %189 = arith.mulf %147, %188 : vector<8x128xf32>
    %c0_78 = arith.constant 0 : index
    %c0_79 = arith.constant 0 : index
    %190 = vector.load %arg13[%c0_78, %c0_79] : memref<128x32xf32, #tpu.memory_space<vmem>>, vector<128x32xf32>
    %cst_80 = arith.constant dense<0.000000e+00> : vector<8x32xf32>
    %191 = tpu.matmul %189, %190, %cst_80 {dimension_numbers = #tpu.dot_dimension_numbers<[1], [0], [0], [1], [0, 0, 1, 1], [], []>} : vector<8x128xf32>, vector<128x32xf32>, vector<8x32xf32> -> vector<8x32xf32>
    %c0_81 = arith.constant 0 : index
    %c0_82 = arith.constant 0 : index
    %192 = vector.load %arg14[%c0_81, %c0_82] : memref<1x32xf32, #tpu.memory_space<vmem>>, vector<1x32xf32>
    %193 = vector.broadcast %192 : vector<1x32xf32> to vector<8x32xf32>
    %194 = arith.addf %191, %193 : vector<8x32xf32>
    %195 = arith.addf %114, %194 : vector<8x32xf32>
    %c0_83 = arith.constant 0 : index
    %c0_84 = arith.constant 0 : index
    %c0_85 = arith.constant 0 : index
    %196 = vector.load %arg15[%c0_83, %c0_84, %c0_85] : memref<1x8x32xf32, #tpu.memory_space<vmem>>, vector<1x8x32xf32>
    %197 = vector.shape_cast %196 : vector<1x8x32xf32> to vector<8x32xf32>
    %198 = vector.shape_cast %195 : vector<8x32xf32> to vector<1x8x32xf32>
    tpu.vector_store %arg15[%c0_83, %c0_84, %c0_85], %198 {strides = array<i32>} : memref<1x8x32xf32, #tpu.memory_space<vmem>>, vector<1x8x32xf32>,
    return
  }
  func.func @transform_0(%arg0: i32) -> (i32, i32, i32) {
    %c0_i32 = arith.constant 0 : i32
    %c0_i32_0 = arith.constant 0 : i32
    %c0_i32_1 = arith.constant 0 : i32
    return %arg0, %c0_i32, %c0_i32_0 : i32, i32, i32
  }
  func.func @transform_1(%arg0: i32) -> (i32, i32) {
    %c0_i32 = arith.constant 0 : i32
    %c0_i32_0 = arith.constant 0 : i32
    %c0_i32_1 = arith.constant 0 : i32
    return %c0_i32, %c0_i32_0 : i32, i32
  }
  func.func @transform_2(%arg0: i32) -> (i32, i32) {
    %c0_i32 = arith.constant 0 : i32
    %c0_i32_0 = arith.constant 0 : i32
    %c0_i32_1 = arith.constant 0 : i32
    return %c0_i32, %c0_i32_0 : i32, i32
  }
  func.func @transform_3(%arg0: i32) -> (i32, i32) {
    %c0_i32 = arith.constant 0 : i32
    %c0_i32_0 = arith.constant 0 : i32
    %c0_i32_1 = arith.constant 0 : i32
    return %c0_i32, %c0_i32_0 : i32, i32
  }
  func.func @transform_4(%arg0: i32) -> (i32, i32) {
    %c0_i32 = arith.constant 0 : i32
    %c0_i32_0 = arith.constant 0 : i32
    %c0_i32_1 = arith.constant 0 : i32
    return %c0_i32, %c0_i32_0 : i32, i32
  }
  func.func @transform_5(%arg0: i32) -> (i32, i32) {
    %c0_i32 = arith.constant 0 : i32
    %c0_i32_0 = arith.constant 0 : i32
    %c0_i32_1 = arith.constant 0 : i32
    return %c0_i32, %c0_i32_0 : i32, i32
  }
  func.func @transform_6(%arg0: i32) -> (i32, i32) {
    %c0_i32 = arith.constant 0 : i32
    %c0_i32_0 = arith.constant 0 : i32
    %c0_i32_1 = arith.constant 0 : i32
    return %c0_i32, %c0_i32_0 : i32, i32
  }
  func.func @transform_7(%arg0: i32) -> (i32, i32) {
    %c0_i32 = arith.constant 0 : i32
    %c0_i32_0 = arith.constant 0 : i32
    %c0_i32_1 = arith.constant 0 : i32
    return %c0_i32, %c0_i32_0 : i32, i32
  }
  func.func @transform_8(%arg0: i32) -> (i32, i32) {
    %c0_i32 = arith.constant 0 : i32
    %c0_i32_0 = arith.constant 0 : i32
    %c0_i32_1 = arith.constant 0 : i32
    return %c0_i32, %c0_i32_0 : i32, i32
  }
  func.func @transform_9(%arg0: i32) -> (i32, i32) {
    %c0_i32 = arith.constant 0 : i32
    %c0_i32_0 = arith.constant 0 : i32
    %c0_i32_1 = arith.constant 0 : i32
    return %c0_i32, %c0_i32_0 : i32, i32
  }
  func.func @transform_10(%arg0: i32) -> (i32, i32) {
    %c0_i32 = arith.constant 0 : i32
    %c0_i32_0 = arith.constant 0 : i32
    %c0_i32_1 = arith.constant 0 : i32
    return %c0_i32, %c0_i32_0 : i32, i32
  }
  func.func @transform_11(%arg0: i32) -> (i32, i32) {
    %c0_i32 = arith.constant 0 : i32
    %c0_i32_0 = arith.constant 0 : i32
    %c0_i32_1 = arith.constant 0 : i32
    return %c0_i32, %c0_i32_0 : i32, i32
  }
  func.func @transform_12(%arg0: i32) -> (i32, i32) {
    %c0_i32 = arith.constant 0 : i32
    %c0_i32_0 = arith.constant 0 : i32
    %c0_i32_1 = arith.constant 0 : i32
    return %c0_i32, %c0_i32_0 : i32, i32
  }
  func.func @transform_13(%arg0: i32) -> (i32, i32) {
    %c0_i32 = arith.constant 0 : i32
    %c0_i32_0 = arith.constant 0 : i32
    %c0_i32_1 = arith.constant 0 : i32
    return %c0_i32, %c0_i32_0 : i32, i32
  }
  func.func @transform_14(%arg0: i32) -> (i32, i32, i32) {
    %c0_i32 = arith.constant 0 : i32
    %c0_i32_0 = arith.constant 0 : i32
    %c0_i32_1 = arith.constant 0 : i32
    return %arg0, %c0_i32, %c0_i32_0 : i32, i32, i32
  }
}

</mosaic_0001>

<llo_original>
// kernel: tpu_custom_call.1
$region0: #{tpu_custom_call.1}
  #allocation0 [shape = 'u32[]', space=smem, size = 0x4, offset = 0x4, fixed_abs, tag = 'smem constant byte address 0x4 - core index']
  #allocation1 [shape = 'u32[144,128]{1,0:T(1,128)}', space=vmem, size = 0x12000, scoped, tag = 'internal scratch']
  %s0 = inlined_call_operand.vmem [shape: f32[2,8,32], index: 0, kind: input, shape index: {}]
  %s1 = inlined_call_operand.vmem [shape: f32[1,32], index: 1, kind: input, shape index: {}]
  %s2 = inlined_call_operand.vmem [shape: f32[1,32], index: 2, kind: input, shape index: {}]
  %s3 = inlined_call_operand.vmem [shape: f32[1,32], index: 3, kind: input, shape index: {}]
  %s4 = inlined_call_operand.vmem [shape: f32[1,32], index: 4, kind: input, shape index: {}]
  %s5 = inlined_call_operand.vmem [shape: f32[8,8], index: 5, kind: input, shape index: {}]
  %s6 = inlined_call_operand.vmem [shape: f32[32,96], index: 6, kind: input, shape index: {}]
  %s7 = inlined_call_operand.vmem [shape: f32[1,96], index: 7, kind: input, shape index: {}]
  %s8 = inlined_call_operand.vmem [shape: f32[32,32], index: 8, kind: input, shape index: {}]
  %s9 = inlined_call_operand.vmem [shape: f32[1,32], index: 9, kind: input, shape index: {}]
  %s10 = inlined_call_operand.vmem [shape: f32[32,128], index: 10, kind: input, shape index: {}]
  %s11 = inlined_call_operand.vmem [shape: f32[1,128], index: 11, kind: input, shape index: {}]
  %s12 = inlined_call_operand.vmem [shape: f32[128,32], index: 12, kind: input, shape index: {}]
  %s13 = inlined_call_operand.vmem [shape: f32[1,32], index: 13, kind: input, shape index: {}]
  %s14 = inlined_call_operand.hbm [shape: f32[2,8,32], index: 14, kind: output, shape index: {}]
  %s15 = sld [smem:[#allocation0]]
  $region89: #{tpu_custom_call.1} parent=0
    _
  %s17 = ssub.s32 1, %s15
  %s18 = scalar_select 0, %s17, %s15
  $region1: #{tpu_custom_call.1} parent=0
    #allocation2 [shape = 'u8[8192]{0}', space=vmem, size = 0x2000, scoped, tag = 'output window, operand 0']
    #allocation3 [shape = 's32[2]{0}', space=sflag, size = 0x8, scoped, tag = 'scoped memory for tpu_custom_call.1']
    %19 = vsyncpa [#allocation3], 0
    %s20 = scalar_lea.sflag [#allocation3], 1
    %21 = vsyncpa %s20, 0
    loop: start=0, step=1, limit=4
    $region2: #{tpu_custom_call.1} parent=1 // loop_pre_header
      _
    $region3: #{tpu_custom_call.1} parent=1 // loop_header
      %s23 = sphi 0, %s27
      %p24 = scmp.ge.s32.totalorder %s23, 4
      %s33 = sphi 0, %s35
      %s36 = sphi 0, %s33
      %s37 = sphi 0, %s36
      %s53 = sphi 0, %s37
      %s57 = sphi 0, %s57
      %s59 = sphi 0, %s57
      %s60 = sphi 0, %s59
      %s74 = sphi 0, %s60
      %s78 = sphi 0, %s78
      %s80 = sphi 0, %s78
      %s81 = sphi 0, %s80
      %s95 = sphi 0, %s81
      %s99 = sphi 0, %s99
      %s101 = sphi 0, %s99
      %s102 = sphi 0, %s101
      %s116 = sphi 0, %s102
      %s120 = sphi 0, %s120
      %s122 = sphi 0, %s120
      %s123 = sphi 0, %s122
      %s137 = sphi 0, %s123
      %s141 = sphi 0, %s141
      %s143 = sphi 0, %s141
      %s144 = sphi 0, %s143
      %s158 = sphi 0, %s144
      %s162 = sphi 0, %s162
      %s164 = sphi 0, %s162
      %s165 = sphi 0, %s164
      %s179 = sphi 0, %s165
      %s183 = sphi 0, %s183
      %s185 = sphi 0, %s183
      %s186 = sphi 0, %s185
      %s200 = sphi 0, %s186
      %s204 = sphi 0, %s204
      %s206 = sphi 0, %s204
      %s207 = sphi 0, %s206
      %s221 = sphi 0, %s207
      %s225 = sphi 0, %s225
      %s227 = sphi 0, %s225
      %s228 = sphi 0, %s227
      %s242 = sphi 0, %s228
      %s246 = sphi 0, %s246
      %s248 = sphi 0, %s246
      %s249 = sphi 0, %s248
      %s263 = sphi 0, %s249
      %s267 = sphi 0, %s267
      %s269 = sphi 0, %s267
      %s270 = sphi 0, %s269
      %s284 = sphi 0, %s270
      %s288 = sphi 0, %s288
      %s290 = sphi 0, %s288
      %s291 = sphi 0, %s290
      %s305 = sphi 0, %s291
      %s309 = sphi 0, %s309
      %s311 = sphi 0, %s309
      %s312 = sphi 0, %s311
      %s326 = sphi 0, %s312
      %s332 = sphi 0, %s334
      %s335 = sphi 0, %s332
      %s336 = sphi 0, %s335
      %s352 = sphi 0, %s336
    $region4: #{tpu_custom_call.1} parent=1 // loop_header_branch
      %26 = sbr.rel (%p24) target = $region8
    $region5: #{tpu_custom_call.1} parent=1 // loop_body
      %s28 = ssub.s32 %s23, 1
      %s29 = ssub.s32 %s23, 2
      %s30 = sadd.s32 %s23, 1
      %s31 = ssub.s32 %s23, %s30
      %p32 = scmp.eq.s32.totalorder %s31, 0
      %s34 = sadd.s32 %s33, 1
      %s35 = scalar_select %p32, %s33, %s34
      %p38 = pneg %p32
      %p39 = scmp.eq.s32.totalorder %s23, 1
      %p40 = por %p38, %p39
      %p41 = scmp.ne.s32.totalorder %s33, %s36
      %p42 = scmp.eq.s32.totalorder %s23, 0
      %p43 = por %p41, %p42
      %p44 = scmp.ne.s32.totalorder %s33, %s36
      %p45 = scmp.eq.s32.totalorder %s28, 1
      %p46 = por %p44, %p45
      %p47 = scmp.ne.s32.totalorder %s36, %s37
      %p48 = scmp.eq.s32.totalorder %s28, 0
      %p49 = por %p47, %p48
      %p50 = scmp.ne.s32.totalorder %s36, %s37
      %p51 = scmp.eq.s32.totalorder %s29, 1
      %p52 = por %p50, %p51
      %p54 = scmp.ne.s32.totalorder %s37, %s53
      %p55 = scmp.eq.s32.totalorder %s29, 0
      %p56 = por %p54, %p55
      %s58 = sadd.s32 %s57, 1
      %p61 = scmp.eq.s32.totalorder %s23, 1
      %p62 = scmp.ne.s32.totalorder %s57, %s59
      %p63 = scmp.eq.s32.totalorder %s23, 0
      %p64 = por %p62, %p63
      %p65 = scmp.ne.s32.totalorder %s57, %s59
      %p66 = scmp.eq.s32.totalorder %s28, 1
      %p67 = por %p65, %p66
      %p68 = scmp.ne.s32.totalorder %s59, %s60
      %p69 = scmp.eq.s32.totalorder %s28, 0
      %p70 = por %p68, %p69
      %p71 = scmp.ne.s32.totalorder %s59, %s60
      %p72 = scmp.eq.s32.totalorder %s29, 1
      %p73 = por %p71, %p72
      %p75 = scmp.ne.s32.totalorder %s60, %s74
      %p76 = scmp.eq.s32.totalorder %s29, 0
      %p77 = por %p75, %p76
      %s79 = sadd.s32 %s78, 1
      %p82 = scmp.eq.s32.totalorder %s23, 1
      %p83 = scmp.ne.s32.totalorder %s78, %s80
      %p84 = scmp.eq.s32.totalorder %s23, 0
      %p85 = por %p83, %p84
      %p86 = scmp.ne.s32.totalorder %s78, %s80
      %p87 = scmp.eq.s32.totalorder %s28, 1
      %p88 = por %p86, %p87
      %p89 = scmp.ne.s32.totalorder %s80, %s81
      %p90 = scmp.eq.s32.totalorder %s28, 0
      %p91 = por %p89, %p90
      %p92 = scmp.ne.s32.totalorder %s80, %s81
      %p93 = scmp.eq.s32.totalorder %s29, 1
      %p94 = por %p92, %p93
      %p96 = scmp.ne.s32.totalorder %s81, %s95
      %p97 = scmp.eq.s32.totalorder %s29, 0
      %p98 = por %p96, %p97
      %s100 = sadd.s32 %s99, 1
      %p103 = scmp.eq.s32.totalorder %s23, 1
      %p104 = scmp.ne.s32.totalorder %s99, %s101
      %p105 = scmp.eq.s32.totalorder %s23, 0
      %p106 = por %p104, %p105
      %p107 = scmp.ne.s32.totalorder %s99, %s101
      %p108 = scmp.eq.s32.totalorder %s28, 1
      %p109 = por %p107, %p108
      %p110 = scmp.ne.s32.totalorder %s101, %s102
      %p111 = scmp.eq.s32.totalorder %s28, 0
      %p112 = por %p110, %p111
      %p113 = scmp.ne.s32.totalorder %s101, %s102
      %p114 = scmp.eq.s32.totalorder %s29, 1
      %p115 = por %p113, %p114
      %p117 = scmp.ne.s32.totalorder %s102, %s116
      %p118 = scmp.eq.s32.totalorder %s29, 0
      %p119 = por %p117, %p118
      %s121 = sadd.s32 %s120, 1
      %p124 = scmp.eq.s32.totalorder %s23, 1
      %p125 = scmp.ne.s32.totalorder %s120, %s122
      %p126 = scmp.eq.s32.totalorder %s23, 0
      %p127 = por %p125, %p126
      %p128 = scmp.ne.s32.totalorder %s120, %s122
      %p129 = scmp.eq.s32.totalorder %s28, 1
      %p130 = por %p128, %p129
      %p131 = scmp.ne.s32.totalorder %s122, %s123
      %p132 = scmp.eq.s32.totalorder %s28, 0
      %p133 = por %p131, %p132
      %p134 = scmp.ne.s32.totalorder %s122, %s123
      %p135 = scmp.eq.s32.totalorder %s29, 1
      %p136 = por %p134, %p135
      %p138 = scmp.ne.s32.totalorder %s123, %s137
      %p139 = scmp.eq.s32.totalorder %s29, 0
      %p140 = por %p138, %p139
      %s142 = sadd.s32 %s141, 1
      %p145 = scmp.eq.s32.totalorder %s23, 1
      %p146 = scmp.ne.s32.totalorder %s141, %s143
      %p147 = scmp.eq.s32.totalorder %s23, 0
      %p148 = por %p146, %p147
      %p149 = scmp.ne.s32.totalorder %s141, %s143
      %p150 = scmp.eq.s32.totalorder %s28, 1
      %p151 = por %p149, %p150
      %p152 = scmp.ne.s32.totalorder %s143, %s144
      %p153 = scmp.eq.s32.totalorder %s28, 0
      %p154 = por %p152, %p153
      %p155 = scmp.ne.s32.totalorder %s143, %s144
      %p156 = scmp.eq.s32.totalorder %s29, 1
      %p157 = por %p155, %p156
      %p159 = scmp.ne.s32.totalorder %s144, %s158
      %p160 = scmp.eq.s32.totalorder %s29, 0
      %p161 = por %p159, %p160
      %s163 = sadd.s32 %s162, 1
      %p166 = scmp.eq.s32.totalorder %s23, 1
      %p167 = scmp.ne.s32.totalorder %s162, %s164
      %p168 = scmp.eq.s32.totalorder %s23, 0
      %p169 = por %p167, %p168
      %p170 = scmp.ne.s32.totalorder %s162, %s164
      %p171 = scmp.eq.s32.totalorder %s28, 1
      %p172 = por %p170, %p171
      %p173 = scmp.ne.s32.totalorder %s164, %s165
      %p174 = scmp.eq.s32.totalorder %s28, 0
      %p175 = por %p173, %p174
      %p176 = scmp.ne.s32.totalorder %s164, %s165
      %p177 = scmp.eq.s32.totalorder %s29, 1
      %p178 = por %p176, %p177
      %p180 = scmp.ne.s32.totalorder %s165, %s179
      %p181 = scmp.eq.s32.totalorder %s29, 0
      %p182 = por %p180, %p181
      %s184 = sadd.s32 %s183, 1
      %p187 = scmp.eq.s32.totalorder %s23, 1
      %p188 = scmp.ne.s32.totalorder %s183, %s185
      %p189 = scmp.eq.s32.totalorder %s23, 0
      %p190 = por %p188, %p189
      %p191 = scmp.ne.s32.totalorder %s183, %s185
      %p192 = scmp.eq.s32.totalorder %s28, 1
      %p193 = por %p191, %p192
      %p194 = scmp.ne.s32.totalorder %s185, %s186
      %p195 = scmp.eq.s32.totalorder %s28, 0
      %p196 = por %p194, %p195
      %p197 = scmp.ne.s32.totalorder %s185, %s186
      %p198 = scmp.eq.s32.totalorder %s29, 1
      %p199 = por %p197, %p198
      %p201 = scmp.ne.s32.totalorder %s186, %s200
      %p202 = scmp.eq.s32.totalorder %s29, 0
      %p203 = por %p201, %p202
      %s205 = sadd.s32 %s204, 1
      %p208 = scmp.eq.s32.totalorder %s23, 1
      %p209 = scmp.ne.s32.totalorder %s204, %s206
      %p210 = scmp.eq.s32.totalorder %s23, 0
      %p211 = por %p209, %p210
      %p212 = scmp.ne.s32.totalorder %s204, %s206
      %p213 = scmp.eq.s32.totalorder %s28, 1
      %p214 = por %p212, %p213
      %p215 = scmp.ne.s32.totalorder %s206, %s207
      %p216 = scmp.eq.s32.totalorder %s28, 0
      %p217 = por %p215, %p216
      %p218 = scmp.ne.s32.totalorder %s206, %s207
      %p219 = scmp.eq.s32.totalorder %s29, 1
      %p220 = por %p218, %p219
      %p222 = scmp.ne.s32.totalorder %s207, %s221
      %p223 = scmp.eq.s32.totalorder %s29, 0
      %p224 = por %p222, %p223
      %s226 = sadd.s32 %s225, 1
      %p229 = scmp.eq.s32.totalorder %s23, 1
      %p230 = scmp.ne.s32.totalorder %s225, %s227
      %p231 = scmp.eq.s32.totalorder %s23, 0
      %p232 = por %p230, %p231
      %p233 = scmp.ne.s32.totalorder %s225, %s227
      %p234 = scmp.eq.s32.totalorder %s28, 1
      %p235 = por %p233, %p234
      %p236 = scmp.ne.s32.totalorder %s227, %s228
      %p237 = scmp.eq.s32.totalorder %s28, 0
      %p238 = por %p236, %p237
      %p239 = scmp.ne.s32.totalorder %s227, %s228
      %p240 = scmp.eq.s32.totalorder %s29, 1
      %p241 = por %p239, %p240
      %p243 = scmp.ne.s32.totalorder %s228, %s242
      %p244 = scmp.eq.s32.totalorder %s29, 0
      %p245 = por %p243, %p244
      %s247 = sadd.s32 %s246, 1
      %p250 = scmp.eq.s32.totalorder %s23, 1
      %p251 = scmp.ne.s32.totalorder %s246, %s248
      %p252 = scmp.eq.s32.totalorder %s23, 0
      %p253 = por %p251, %p252
      %p254 = scmp.ne.s32.totalorder %s246, %s248
      %p255 = scmp.eq.s32.totalorder %s28, 1
      %p256 = por %p254, %p255
      %p257 = scmp.ne.s32.totalorder %s248, %s249
      %p258 = scmp.eq.s32.totalorder %s28, 0
      %p259 = por %p257, %p258
      %p260 = scmp.ne.s32.totalorder %s248, %s249
      %p261 = scmp.eq.s32.totalorder %s29, 1
      %p262 = por %p260, %p261
      %p264 = scmp.ne.s32.totalorder %s249, %s263
      %p265 = scmp.eq.s32.totalorder %s29, 0
      %p266 = por %p264, %p265
      %s268 = sadd.s32 %s267, 1
      %p271 = scmp.eq.s32.totalorder %s23, 1
      %p272 = scmp.ne.s32.totalorder %s267, %s269
      %p273 = scmp.eq.s32.totalorder %s23, 0
      %p274 = por %p272, %p273
      %p275 = scmp.ne.s32.totalorder %s267, %s269
      %p276 = scmp.eq.s32.totalorder %s28, 1
      %p277 = por %p275, %p276
      %p278 = scmp.ne.s32.totalorder %s269, %s270
      %p279 = scmp.eq.s32.totalorder %s28, 0
      %p280 = por %p278, %p279
      %p281 = scmp.ne.s32.totalorder %s269, %s270
      %p282 = scmp.eq.s32.totalorder %s29, 1
      %p283 = por %p281, %p282
      %p285 = scmp.ne.s32.totalorder %s270, %s284
      %p286 = scmp.eq.s32.totalorder %s29, 0
      %p287 = por %p285, %p286
      %s289 = sadd.s32 %s288, 1
      %p292 = scmp.eq.s32.totalorder %s23, 1
      %p293 = scmp.ne.s32.totalorder %s288, %s290
      %p294 = scmp.eq.s32.totalorder %s23, 0
      %p295 = por %p293, %p294
      %p296 = scmp.ne.s32.totalorder %s288, %s290
      %p297 = scmp.eq.s32.totalorder %s28, 1
      %p298 = por %p296, %p297
      %p299 = scmp.ne.s32.totalorder %s290, %s291
      %p300 = scmp.eq.s32.totalorder %s28, 0
      %p301 = por %p299, %p300
      %p302 = scmp.ne.s32.totalorder %s290, %s291
      %p303 = scmp.eq.s32.totalorder %s29, 1
      %p304 = por %p302, %p303
      %p306 = scmp.ne.s32.totalorder %s291, %s305
      %p307 = scmp.eq.s32.totalorder %s29, 0
      %p308 = por %p306, %p307
      %s310 = sadd.s32 %s309, 1
      %p313 = scmp.eq.s32.totalorder %s23, 1
      %p314 = scmp.ne.s32.totalorder %s309, %s311
      %p315 = scmp.eq.s32.totalorder %s23, 0
      %p316 = por %p314, %p315
      %p317 = scmp.ne.s32.totalorder %s309, %s311
      %p318 = scmp.eq.s32.totalorder %s28, 1
      %p319 = por %p317, %p318
      %p320 = scmp.ne.s32.totalorder %s311, %s312
      %p321 = scmp.eq.s32.totalorder %s28, 0
      %p322 = por %p320, %p321
      %p323 = scmp.ne.s32.totalorder %s311, %s312
      %p324 = scmp.eq.s32.totalorder %s29, 1
      %p325 = por %p323, %p324
      %p327 = scmp.ne.s32.totalorder %s312, %s326
      %p328 = scmp.eq.s32.totalorder %s29, 0
      %p329 = por %p327, %p328
      %s330 = ssub.s32 %s23, %s30
      %p331 = scmp.eq.s32.totalorder %s330, 0
      %s333 = sadd.s32 %s332, 1
      %s334 = scalar_select %p331, %s332, %s333
      %p337 = pneg %p331
      %p338 = scmp.eq.s32.totalorder %s23, 1
      %p339 = por %p337, %p338
      %p340 = scmp.ne.s32.totalorder %s332, %s335
      %p341 = scmp.eq.s32.totalorder %s23, 0
      %p342 = por %p340, %p341
      %p343 = scmp.ne.s32.totalorder %s332, %s335
      %p344 = scmp.eq.s32.totalorder %s28, 1
      %p345 = por %p343, %p344
      %p346 = scmp.ne.s32.totalorder %s335, %s336
      %p347 = scmp.eq.s32.totalorder %s28, 0
      %p348 = por %p346, %p347
      %p349 = scmp.ne.s32.totalorder %s335, %s336
      %p350 = scmp.eq.s32.totalorder %s29, 1
      %p351 = por %p349, %p350
      %p353 = scmp.ne.s32.totalorder %s336, %s352
      %p354 = scmp.eq.s32.totalorder %s29, 0
      %p355 = por %p353, %p354
      %p356 = scmp.le.s32.totalorder 1, %s23
      %p357 = scmp.lt.s32.totalorder %s23, 3
      %p358 = pnand %p356, %p357
      %p359 = pneg %p358
      // Predicated region
      $region9: #{tpu_custom_call.1} parent=5 // pred_check
        _
      $region10: #{tpu_custom_call.1} parent=5 // pred_check_branch
        %361 = sbr.rel (%p358) target = $region12
      $region11: #{tpu_custom_call.1} parent=5 // pred_region
        %s362 = ssub.s32 %s23, 1
        // Predicated region
        $region13: #{tpu_custom_call.1} parent=11 // pred_check
          %p363 = pneg %p70
        $region14: #{tpu_custom_call.1} parent=11 // pred_check_branch
          %365 = sbr.rel (%p363) target = $region16
        $region15: #{tpu_custom_call.1} parent=11 // pred_region
          _
        $region16: #{tpu_custom_call.1} parent=11 // pred_fallthru
          _
        // Predicated region
        $region17: #{tpu_custom_call.1} parent=11 // pred_check
          %p366 = pneg %p91
        $region18: #{tpu_custom_call.1} parent=11 // pred_check_branch
          %368 = sbr.rel (%p366) target = $region20
        $region19: #{tpu_custom_call.1} parent=11 // pred_region
          _
        $region20: #{tpu_custom_call.1} parent=11 // pred_fallthru
          _
        // Predicated region
        $region21: #{tpu_custom_call.1} parent=11 // pred_check
          %p369 = pneg %p112
        $region22: #{tpu_custom_call.1} parent=11 // pred_check_branch
          %371 = sbr.rel (%p369) target = $region24
        $region23: #{tpu_custom_call.1} parent=11 // pred_region
          _
        $region24: #{tpu_custom_call.1} parent=11 // pred_fallthru
          _
        // Predicated region
        $region25: #{tpu_custom_call.1} parent=11 // pred_check
          %p372 = pneg %p133
        $region26: #{tpu_custom_call.1} parent=11 // pred_check_branch
          %374 = sbr.rel (%p372) target = $region28
        $region27: #{tpu_custom_call.1} parent=11 // pred_region
          _
        $region28: #{tpu_custom_call.1} parent=11 // pred_fallthru
          _
        // Predicated region
        $region29: #{tpu_custom_call.1} parent=11 // pred_check
          %p375 = pneg %p154
        $region30: #{tpu_custom_call.1} parent=11 // pred_check_branch
          %377 = sbr.rel (%p375) target = $region32
        $region31: #{tpu_custom_call.1} parent=11 // pred_region
          _
        $region32: #{tpu_custom_call.1} parent=11 // pred_fallthru
          _
        // Predicated region
        $region33: #{tpu_custom_call.1} parent=11 // pred_check
          %p378 = pneg %p175
        $region34: #{tpu_custom_call.1} parent=11 // pred_check_branch
          %380 = sbr.rel (%p378) target = $region36
        $region35: #{tpu_custom_call.1} parent=11 // pred_region
          _
        $region36: #{tpu_custom_call.1} parent=11 // pred_fallthru
          _
        // Predicated region
        $region37: #{tpu_custom_call.1} parent=11 // pred_check
          %p381 = pneg %p196
        $region38: #{tpu_custom_call.1} parent=11 // pred_check_branch
          %383 = sbr.rel (%p381) target = $region40
        $region39: #{tpu_custom_call.1} parent=11 // pred_region
          _
        $region40: #{tpu_custom_call.1} parent=11 // pred_fallthru
          _
        // Predicated region
        $region41: #{tpu_custom_call.1} parent=11 // pred_check
          %p384 = pneg %p217
        $region42: #{tpu_custom_call.1} parent=11 // pred_check_branch
          %386 = sbr.rel (%p384) target = $region44
        $region43: #{tpu_custom_call.1} parent=11 // pred_region
          _
        $region44: #{tpu_custom_call.1} parent=11 // pred_fallthru
          _
        // Predicated region
        $region45: #{tpu_custom_call.1} parent=11 // pred_check
          %p387 = pneg %p238
        $region46: #{tpu_custom_call.1} parent=11 // pred_check_branch
          %389 = sbr.rel (%p387) target = $region48
        $region47: #{tpu_custom_call.1} parent=11 // pred_region
          _
        $region48: #{tpu_custom_call.1} parent=11 // pred_fallthru
          _
        // Predicated region
        $region49: #{tpu_custom_call.1} parent=11 // pred_check
          %p390 = pneg %p259
        $region50: #{tpu_custom_call.1} parent=11 // pred_check_branch
          %392 = sbr.rel (%p390) target = $region52
        $region51: #{tpu_custom_call.1} parent=11 // pred_region
          _
        $region52: #{tpu_custom_call.1} parent=11 // pred_fallthru
          _
        // Predicated region
        $region53: #{tpu_custom_call.1} parent=11 // pred_check
          %p393 = pneg %p280
        $region54: #{tpu_custom_call.1} parent=11 // pred_check_branch
          %395 = sbr.rel (%p393) target = $region56
        $region55: #{tpu_custom_call.1} parent=11 // pred_region
          _
        $region56: #{tpu_custom_call.1} parent=11 // pred_fallthru
          _
        // Predicated region
        $region57: #{tpu_custom_call.1} parent=11 // pred_check
          %p396 = pneg %p301
        $region58: #{tpu_custom_call.1} parent=11 // pred_check_branch
          %398 = sbr.rel (%p396) target = $region60
        $region59: #{tpu_custom_call.1} parent=11 // pred_region
          _
        $region60: #{tpu_custom_call.1} parent=11 // pred_fallthru
          _
        // Predicated region
        $region61: #{tpu_custom_call.1} parent=11 // pred_check
          %p399 = pneg %p322
        $region62: #{tpu_custom_call.1} parent=11 // pred_check_branch
          %401 = sbr.rel (%p399) target = $region64
        $region63: #{tpu_custom_call.1} parent=11 // pred_region
          _
        $region64: #{tpu_custom_call.1} parent=11 // pred_fallthru
          _
      $region12: #{tpu_custom_call.1} parent=5 // pred_fallthru
        _
      %p402 = scmp.lt.s32.totalorder %s23, 2
      // Predicated region
      $region65: #{tpu_custom_call.1} parent=5 // pred_check
        %p403 = pneg %p402
      $region66: #{tpu_custom_call.1} parent=5 // pred_check_branch
        %405 = sbr.rel (%p403) target = $region68
      $region67: #{tpu_custom_call.1} parent=5 // pred_region
        // Predicated region
        $region69: #{tpu_custom_call.1} parent=67 // pred_check
          %p406 = pneg %p43
        $region70: #{tpu_custom_call.1} parent=67 // pred_check_branch
          %408 = sbr.rel (%p406) target = $region72
        $region71: #{tpu_custom_call.1} parent=67 // pred_region
          %p409 = scmp.lt.s32.totalorder %s23, 1
          %s410 = scalar_select %p409, %s23, 1
          %s411 = smul.addr %s410, 8
          %s412 = scalar_lea.vmem %s0, %s411
        $region72: #{tpu_custom_call.1} parent=67 // pred_fallthru
          _
      $region68: #{tpu_custom_call.1} parent=5 // pred_fallthru
        _
      %p413 = scmp.le.s32.totalorder 1, %s23
      %p414 = scmp.lt.s32.totalorder %s23, 3
      %p415 = pnand %p413, %p414
      %p416 = pneg %p415
      // Predicated region
      $region73: #{tpu_custom_call.1} parent=5 // pred_check
        _
      $region74: #{tpu_custom_call.1} parent=5 // pred_check_branch
        %418 = sbr.rel (%p415) target = $region76
      $region75: #{tpu_custom_call.1} parent=5 // pred_region
        %s419 = ssub.s32 %s23, 1
        %p420 = scmp.lt.s32.totalorder %s28, 1
        %s421 = scalar_select %p420, %s28, 1
        %s422 = smul.addr %s421, 8
        %s423 = scalar_lea.vmem %s0, %s422
        %p424 = pneg %p49
        %p425 = pneg %p46
        %p426 = pneg %p70
        %p427 = pneg %p67
        %p428 = pneg %p91
        %p429 = pneg %p88
        %p430 = pneg %p112
        %p431 = pneg %p109
        %p432 = pneg %p133
        %p433 = pneg %p130
        %p434 = pneg %p154
        %p435 = pneg %p151
        %p436 = pneg %p175
        %p437 = pneg %p172
        %p438 = pneg %p196
        %p439 = pneg %p193
        %p440 = pneg %p217
        %p441 = pneg %p214
        %p442 = pneg %p238
        %p443 = pneg %p235
        %p444 = pneg %p259
        %p445 = pneg %p256
        %p446 = pneg %p280
        %p447 = pneg %p277
        %p448 = pneg %p301
        %p449 = pneg %p298
        %p450 = pneg %p322
        %p451 = pneg %p319
        %p452 = pneg %p348
        %p453 = pneg %p345
        %s454 = sand.u32 %s335, 1
        %s455 = scalar_lea.sflag [#allocation3], %s454
        %s456 = sand.u32 %s335, 1
        %s457 = smul.addr %s456, 8
        %s458 = scalar_lea.vmem [#allocation2], %s457
        %p459 = scmp.lt.s32.totalorder %s28, 1
        %s460 = scalar_select %p459, %s28, 1
        %s461 = smul.addr %s460, 8
        %s462 = scalar_lea.vmem %s0, %s461
        %v463 = vld [vmem:[%s462] sm:$0xff]
        %v464 = vld [vmem:[%s1] sm:$0x1]
        %v465 = vld [vmem:[%s2] sm:$0x1]
        %vm466 = vcmask 261120
        %v467 = vsel %vm466, %v463, 0.0
        %468 = vadd.xlane.f32.xlu0 %v467
        %v469 = vpop.xlane.xlu0 %468
        %v470 = vrcp.pop 32.0
        %v471 = vmul.f32 %v469, %v470
        %v472 = vmul.f32 %v463, %v463
        %v473 = vsel %vm466, %v472, 0.0
        %474 = vadd.xlane.f32.xlu0 %v473
        %v475 = vpop.xlane.xlu0 %474
        %v476 = vmul.f32 %v475, %v470
        %v477 = vmul.f32 %v471, %v471
        %v478 = vsub.f32 %v476, %v477
        %v479 = vmax.f32 %v478, 0.0
        %v480 = vadd.f32 %v479, 1e-05
        %v481 = vrsqrt.pop %v480
        %v482 = vsub.f32 %v463, %v471
        %v483 = vmul.f32 %v482, %v481
        %v485 = vlaneseq
        %v486 = vshrl.u32 %v485, 7
        %v487 = vsub.s32 0, %v486
        %v488 = vrot.slane %v464, %v487
        %v490 = vmul.f32 %v483, %v488
        %v492 = vlaneseq
        %v493 = vshrl.u32 %v492, 7
        %v494 = vsub.s32 0, %v493
        %v495 = vrot.slane %v465, %v494
        %v497 = vadd.f32 %v490, %v495
        %v498 = vld [vmem:[%s6] sm:$0xff]
        %v499 = vld [vmem:[%s6 + $0x8] sm:$0xff]
        %v500 = vld [vmem:[%s6 + $0x10] sm:$0xff]
        %v501 = vld [vmem:[%s6 + $0x18] sm:$0xff]
        %v502 = vld [vmem:[%s7] sm:$0x1]
        %v504 = vlaneseq
        %v505 = vshrl.u32 %v504, 7
        %v506 = vsub.s32 0, %v505
        %v507 = vrot.slane %v502, %v506
        %v510 = vsel %vm466, %v497, 0
        %512 = vmatprep.subr.mxu0 0.0
        %513 = vmatpush1.msra.mxu0 %v498
        %514 = vmatprep.subr.mxu0 0.0
        %515 = vmatpush1.msra.mxu0 %v499
        %516 = vmatprep.subr.mxu0 0.0
        %517 = vmatpush1.msra.mxu0 %v500
        %518 = vmatprep.subr.mxu0 0.0
        %519 = vmatpush1.msra.mxu0 %v501
        %520 = vmatprep.subr.mxu0 0.0
        %521 = vmatpush1.msra.mxu0 0.0
        %522 = vmatprep.subr.mxu0 0.0
        %523 = vmatpush1.msra.mxu0 0.0
        %524 = vmatprep.subr.mxu0 0.0
        %525 = vmatpush1.msra.mxu0 0.0
        %526 = vmatprep.subr.mxu0 0.0
        %527 = vmatpush1.msra.mxu0 0.0
        %528 = vmatprep.subr.mxu0 0.0
        %529 = vmatpush1.msra.mxu0 0.0
        %530 = vmatprep.subr.mxu0 0.0
        %531 = vmatpush1.msra.mxu0 0.0
        %532 = vmatprep.subr.mxu0 0.0
        %533 = vmatpush1.msra.mxu0 0.0
        %534 = vmatprep.subr.mxu0 0.0
        %535 = vmatpush1.msra.mxu0 0.0
        %536 = vmatprep.subr.mxu0 0.0
        %537 = vmatpush1.msra.mxu0 0.0
        %538 = vmatprep.subr.mxu0 0.0
        %539 = vmatpush1.msra.mxu0 0.0
        %540 = vmatprep.subr.mxu0 0.0
        %541 = vmatpush1.msra.mxu0 0.0
        %542 = vmatprep.subr.mxu0 0.0
        %543 = vmatpush1.msra.mxu0 0.0
        %544 = vmatprep.subr.mxu0 0.0
        %545 = vmatpush1.msra.mxu0 0.0
        %546 = vmatprep.subr.mxu0 0.0
        %547 = vmatpush1.msra.mxu0 0.0
        %548 = vmatprep.subr.mxu0 0.0
        %549 = vmatpush1.msra.mxu0 0.0
        %550 = vmatprep.subr.mxu0 0.0
        %551 = vmatpush1.msra.mxu0 0.0
        %552 = vmatprep.subr.mxu0 0.0
        %553 = vmatpush1.msra.mxu0 0.0
        %554 = vmatprep.subr.mxu0 0.0
        %555 = vmatpush1.msra.mxu0 0.0
        %556 = vmatprep.subr.mxu0 0.0
        %557 = vmatpush1.msra.mxu0 0.0
        %558 = vmatprep.subr.mxu0 0.0
        %559 = vmatpush1.msra.mxu0 0.0
        %560 = vmatprep.subr.mxu0 0.0
        %561 = vmatpush1.msra.mxu0 0.0
        %562 = vmatprep.subr.mxu0 0.0
        %563 = vmatpush1.msra.mxu0 0.0
        %564 = vmatprep.subr.mxu0 0.0
        %565 = vmatpush1.msra.mxu0 0.0
        %566 = vmatprep.subr.mxu0 0.0
        %567 = vmatpush1.msra.mxu0 0.0
        %568 = vmatprep.subr.mxu0 0.0
        %569 = vmatpush1.msra.mxu0 0.0
        %570 = vmatprep.subr.mxu0 0.0
        %571 = vmatpush1.msra.mxu0 0.0
        %572 = vmatprep.subr.mxu0 0.0
        %573 = vmatpush1.msra.mxu0 0.0
        %574 = vmatprep.subr.mxu0 0.0
        %575 = vmatpush1.msra.mxu0 0.0
        %576 = vmatprep.mubr.f32.mxu0 0.0
        %577 = vmatmul.mubr.f32.gmra.mrb[0].mxu0 %v510
        %v578 = vpop.f32.mrb[0].mxu0
        %v579 = vadd.f32 %v507, %v578
        %v580 = vpop.f32.mrb[0].mxu0
        %581 = vdwg.mxu0
        %v582 = vld [vmem:[%s5] sm:$0xff]
        %584 = vrot.lane.b32.xlu0 %v579, 96
        %v585 = vpop.permute.xlu0 %584
        %vm586 = vcmask 64512
        %v587 = vsel %vm586, %v579, 0
        %v589 = vsel %vm586, %v585, 0
        %591 = vmatprep.subr.mxu0 0.0
        %592 = vmatpush1.xpose.msra.mxu0 %v589
        %593 = vmatprep.subr.mxu0 0.0
        %594 = vmatpush1.xpose.msra.mxu0 0.0
        %595 = vmatprep.subr.mxu0 0.0
        %596 = vmatpush1.xpose.msra.mxu0 0.0
        %597 = vmatprep.subr.mxu0 0.0
        %598 = vmatpush1.xpose.msra.mxu0 0.0
        %599 = vmatprep.subr.mxu0 0.0
        %600 = vmatpush1.xpose.msra.mxu0 0.0
        %601 = vmatprep.subr.mxu0 0.0
        %602 = vmatpush1.xpose.msra.mxu0 0.0
        %603 = vmatprep.subr.mxu0 0.0
        %604 = vmatpush1.xpose.msra.mxu0 0.0
        %605 = vmatprep.subr.mxu0 0.0
        %606 = vmatpush1.xpose.msra.mxu0 0.0
        %607 = vmatprep.subr.mxu0 0.0
        %608 = vmatpush1.xpose.msra.mxu0 0.0
        %609 = vmatprep.subr.mxu0 0.0
        %610 = vmatpush1.xpose.msra.mxu0 0.0
        %611 = vmatprep.subr.mxu0 0.0
        %612 = vmatpush1.xpose.msra.mxu0 0.0
        %613 = vmatprep.subr.mxu0 0.0
        %614 = vmatpush1.xpose.msra.mxu0 0.0
        %615 = vmatprep.subr.mxu0 0.0
        %616 = vmatpush1.xpose.msra.mxu0 0.0
        %617 = vmatprep.subr.mxu0 0.0
        %618 = vmatpush1.xpose.msra.mxu0 0.0
        %619 = vmatprep.subr.mxu0 0.0
        %620 = vmatpush1.xpose.msra.mxu0 0.0
        %621 = vmatprep.subr.mxu0 0.0
        %622 = vmatpush1.xpose.msra.mxu0 0.0
        %623 = vmatprep.subr.mxu0 0.0
        %624 = vmatpush1.xpose.msra.mxu0 0.0
        %625 = vmatprep.subr.mxu0 0.0
        %626 = vmatpush1.xpose.msra.mxu0 0.0
        %627 = vmatprep.subr.mxu0 0.0
        %628 = vmatpush1.xpose.msra.mxu0 0.0
        %629 = vmatprep.subr.mxu0 0.0
        %630 = vmatpush1.xpose.msra.mxu0 0.0
        %631 = vmatprep.subr.mxu0 0.0
        %632 = vmatpush1.xpose.msra.mxu0 0.0
        %633 = vmatprep.subr.mxu0 0.0
        %634 = vmatpush1.xpose.msra.mxu0 0.0
        %635 = vmatprep.subr.mxu0 0.0
        %636 = vmatpush1.xpose.msra.mxu0 0.0
        %637 = vmatprep.subr.mxu0 0.0
        %638 = vmatpush1.xpose.msra.mxu0 0.0
        %639 = vmatprep.subr.mxu0 0.0
        %640 = vmatpush1.xpose.msra.mxu0 0.0
        %641 = vmatprep.subr.mxu0 0.0
        %642 = vmatpush1.xpose.msra.mxu0 0.0
        %643 = vmatprep.subr.mxu0 0.0
        %644 = vmatpush1.xpose.msra.mxu0 0.0
        %645 = vmatprep.subr.mxu0 0.0
        %646 = vmatpush1.xpose.msra.mxu0 0.0
        %647 = vmatprep.subr.mxu0 0.0
        %648 = vmatpush1.xpose.msra.mxu0 0.0
        %649 = vmatprep.subr.mxu0 0.0
        %650 = vmatpush1.xpose.msra.mxu0 0.0
        %651 = vmatprep.subr.mxu0 0.0
        %652 = vmatpush1.xpose.msra.mxu0 0.0
        %653 = vmatprep.subr.mxu0 0.0
        %654 = vmatpush1.xpose.msra.mxu0 0.0
        %655 = vmatprep.mubr.f32.mxu0 0.0
        %656 = vmatmul.mubr.f32.gmra.mrb[0].mxu0 %v587
        %v657 = vpop.f32.mrb[0].mxu0
        %v658 = vadd.f32 %v582, %v657
        %v659 = vpop.f32.mrb[0].mxu0
        %660 = vdwg.mxu0
        %v661 = vsel %vm586, %v658, -inf
        %662 = vmax.xlane.f32.xlu0 %v661
        %v663 = vpop.xlane.xlu0 %662
        %v664 = vsub.f32 %v658, %v663
        %v665 = vmul.f32 %v664, 1.442695
        %v666 = vpow.pop %v665
        %v667 = vsel %vm586, %v666, 0.0
        %668 = vadd.xlane.f32.xlu0 %v667
        %v669 = vpop.xlane.xlu0 %668
        %670 = vrot.lane.b32.xlu0 %v579, 64
        %v671 = vpop.permute.xlu0 %670
        %v674 = vsel %vm586, %v666, 0
        %676 = vmatprep.subr.mxu0 0.0
        %677 = vmatpush1.msra.mxu0 %v671
        %678 = vmatprep.subr.mxu0 0.0
        %679 = vmatpush1.msra.mxu0 0.0
        %680 = vmatprep.subr.mxu0 0.0
        %681 = vmatpush1.msra.mxu0 0.0
        %682 = vmatprep.subr.mxu0 0.0
        %683 = vmatpush1.msra.mxu0 0.0
        %684 = vmatprep.subr.mxu0 0.0
        %685 = vmatpush1.msra.mxu0 0.0
        %686 = vmatprep.subr.mxu0 0.0
        %687 = vmatpush1.msra.mxu0 0.0
        %688 = vmatprep.subr.mxu0 0.0
        %689 = vmatpush1.msra.mxu0 0.0
        %690 = vmatprep.subr.mxu0 0.0
        %691 = vmatpush1.msra.mxu0 0.0
        %692 = vmatprep.subr.mxu0 0.0
        %693 = vmatpush1.msra.mxu0 0.0
        %694 = vmatprep.subr.mxu0 0.0
        %695 = vmatpush1.msra.mxu0 0.0
        %696 = vmatprep.subr.mxu0 0.0
        %697 = vmatpush1.msra.mxu0 0.0
        %698 = vmatprep.subr.mxu0 0.0
        %699 = vmatpush1.msra.mxu0 0.0
        %700 = vmatprep.subr.mxu0 0.0
        %701 = vmatpush1.msra.mxu0 0.0
        %702 = vmatprep.subr.mxu0 0.0
        %703 = vmatpush1.msra.mxu0 0.0
        %704 = vmatprep.subr.mxu0 0.0
        %705 = vmatpush1.msra.mxu0 0.0
        %706 = vmatprep.subr.mxu0 0.0
        %707 = vmatpush1.msra.mxu0 0.0
        %708 = vmatprep.subr.mxu0 0.0
        %709 = vmatpush1.msra.mxu0 0.0
        %710 = vmatprep.subr.mxu0 0.0
        %711 = vmatpush1.msra.mxu0 0.0
        %712 = vmatprep.subr.mxu0 0.0
        %713 = vmatpush1.msra.mxu0 0.0
        %714 = vmatprep.subr.mxu0 0.0
        %715 = vmatpush1.msra.mxu0 0.0
        %716 = vmatprep.subr.mxu0 0.0
        %717 = vmatpush1.msra.mxu0 0.0
        %718 = vmatprep.subr.mxu0 0.0
        %719 = vmatpush1.msra.mxu0 0.0
        %720 = vmatprep.subr.mxu0 0.0
        %721 = vmatpush1.msra.mxu0 0.0
        %722 = vmatprep.subr.mxu0 0.0
        %723 = vmatpush1.msra.mxu0 0.0
        %724 = vmatprep.subr.mxu0 0.0
        %725 = vmatpush1.msra.mxu0 0.0
        %726 = vmatprep.subr.mxu0 0.0
        %727 = vmatpush1.msra.mxu0 0.0
        %728 = vmatprep.subr.mxu0 0.0
        %729 = vmatpush1.msra.mxu0 0.0
        %730 = vmatprep.subr.mxu0 0.0
        %731 = vmatpush1.msra.mxu0 0.0
        %732 = vmatprep.subr.mxu0 0.0
        %733 = vmatpush1.msra.mxu0 0.0
        %734 = vmatprep.subr.mxu0 0.0
        %735 = vmatpush1.msra.mxu0 0.0
        %736 = vmatprep.subr.mxu0 0.0
        %737 = vmatpush1.msra.mxu0 0.0
        %738 = vmatprep.subr.mxu0 0.0
        %739 = vmatpush1.msra.mxu0 0.0
        %740 = vmatprep.mubr.f32.mxu0 0.0
        %741 = vmatmul.mubr.f32.gmra.mrb[0].mxu0 %v674
        %v742 = vpop.f32.mrb[0].mxu0
        %v743 = vadd.f32 0.0, %v742
        %v744 = vpop.f32.mrb[0].mxu0
        %745 = vdwg.mxu0
        %v746 = vrcp.pop %v669
        %v747 = vmul.f32 %v743, %v746
        %v748 = vld [vmem:[%s8] sm:$0xff]
        %749 = vrot.lane.b32.xlu0 %v579, 120
        %v750 = vpop.permute.xlu0 %749
        %751 = vrot.lane.b32.xlu0 %v579, 88
        %v752 = vpop.permute.xlu0 %751
        %v753 = vsel %vm586, %v750, 0
        %v755 = vsel %vm586, %v752, 0
        %757 = vmatprep.subr.mxu0 0.0
        %758 = vmatpush1.xpose.msra.mxu0 %v755
        %759 = vmatprep.subr.mxu0 0.0
        %760 = vmatpush1.xpose.msra.mxu0 0.0
        %761 = vmatprep.subr.mxu0 0.0
        %762 = vmatpush1.xpose.msra.mxu0 0.0
        %763 = vmatprep.subr.mxu0 0.0
        %764 = vmatpush1.xpose.msra.mxu0 0.0
        %765 = vmatprep.subr.mxu0 0.0
        %766 = vmatpush1.xpose.msra.mxu0 0.0
        %767 = vmatprep.subr.mxu0 0.0
        %768 = vmatpush1.xpose.msra.mxu0 0.0
        %769 = vmatprep.subr.mxu0 0.0
        %770 = vmatpush1.xpose.msra.mxu0 0.0
        %771 = vmatprep.subr.mxu0 0.0
        %772 = vmatpush1.xpose.msra.mxu0 0.0
        %773 = vmatprep.subr.mxu0 0.0
        %774 = vmatpush1.xpose.msra.mxu0 0.0
        %775 = vmatprep.subr.mxu0 0.0
        %776 = vmatpush1.xpose.msra.mxu0 0.0
        %777 = vmatprep.subr.mxu0 0.0
        %778 = vmatpush1.xpose.msra.mxu0 0.0
        %779 = vmatprep.subr.mxu0 0.0
        %780 = vmatpush1.xpose.msra.mxu0 0.0
        %781 = vmatprep.subr.mxu0 0.0
        %782 = vmatpush1.xpose.msra.mxu0 0.0
        %783 = vmatprep.subr.mxu0 0.0
        %784 = vmatpush1.xpose.msra.mxu0 0.0
        %785 = vmatprep.subr.mxu0 0.0
        %786 = vmatpush1.xpose.msra.mxu0 0.0
        %787 = vmatprep.subr.mxu0 0.0
        %788 = vmatpush1.xpose.msra.mxu0 0.0
        %789 = vmatprep.subr.mxu0 0.0
        %790 = vmatpush1.xpose.msra.mxu0 0.0
        %791 = vmatprep.subr.mxu0 0.0
        %792 = vmatpush1.xpose.msra.mxu0 0.0
        %793 = vmatprep.subr.mxu0 0.0
        %794 = vmatpush1.xpose.msra.mxu0 0.0
        %795 = vmatprep.subr.mxu0 0.0
        %796 = vmatpush1.xpose.msra.mxu0 0.0
        %797 = vmatprep.subr.mxu0 0.0
        %798 = vmatpush1.xpose.msra.mxu0 0.0
        %799 = vmatprep.subr.mxu0 0.0
        %800 = vmatpush1.xpose.msra.mxu0 0.0
        %801 = vmatprep.subr.mxu0 0.0
        %802 = vmatpush1.xpose.msra.mxu0 0.0
        %803 = vmatprep.subr.mxu0 0.0
        %804 = vmatpush1.xpose.msra.mxu0 0.0
        %805 = vmatprep.subr.mxu0 0.0
        %806 = vmatpush1.xpose.msra.mxu0 0.0
        %807 = vmatprep.subr.mxu0 0.0
        %808 = vmatpush1.xpose.msra.mxu0 0.0
        %809 = vmatprep.subr.mxu0 0.0
        %810 = vmatpush1.xpose.msra.mxu0 0.0
        %811 = vmatprep.subr.mxu0 0.0
        %812 = vmatpush1.xpose.msra.mxu0 0.0
        %813 = vmatprep.subr.mxu0 0.0
        %814 = vmatpush1.xpose.msra.mxu0 0.0
        %815 = vmatprep.subr.mxu0 0.0
        %816 = vmatpush1.xpose.msra.mxu0 0.0
        %817 = vmatprep.subr.mxu0 0.0
        %818 = vmatpush1.xpose.msra.mxu0 0.0
        %819 = vmatprep.subr.mxu0 0.0
        %820 = vmatpush1.xpose.msra.mxu0 0.0
        %821 = vmatprep.mubr.f32.mxu0 0.0
        %822 = vmatmul.mubr.f32.gmra.mrb[0].mxu0 %v753
        %v823 = vpop.f32.mrb[0].mxu0
        %v824 = vadd.f32 %v582, %v823
        %v825 = vpop.f32.mrb[0].mxu0
        %826 = vdwg.mxu0
        %v827 = vsel %vm586, %v824, -inf
        %828 = vmax.xlane.f32.xlu0 %v827
        %v829 = vpop.xlane.xlu0 %828
        %v830 = vsub.f32 %v824, %v829
        %v831 = vmul.f32 %v830, 1.442695
        %v832 = vpow.pop %v831
        %v833 = vsel %vm586, %v832, 0.0
        %834 = vadd.xlane.f32.xlu0 %v833
        %v835 = vpop.xlane.xlu0 %834
        %836 = vrot.lane.b32.xlu0 %v579, 56
        %v837 = vpop.permute.xlu0 %836
        %v840 = vsel %vm586, %v832, 0
        %842 = vmatprep.subr.mxu0 0.0
        %843 = vmatpush1.msra.mxu0 %v837
        %844 = vmatprep.subr.mxu0 0.0
        %845 = vmatpush1.msra.mxu0 0.0
        %846 = vmatprep.subr.mxu0 0.0
        %847 = vmatpush1.msra.mxu0 0.0
        %848 = vmatprep.subr.mxu0 0.0
        %849 = vmatpush1.msra.mxu0 0.0
        %850 = vmatprep.subr.mxu0 0.0
        %851 = vmatpush1.msra.mxu0 0.0
        %852 = vmatprep.subr.mxu0 0.0
        %853 = vmatpush1.msra.mxu0 0.0
        %854 = vmatprep.subr.mxu0 0.0
        %855 = vmatpush1.msra.mxu0 0.0
        %856 = vmatprep.subr.mxu0 0.0
        %857 = vmatpush1.msra.mxu0 0.0
        %858 = vmatprep.subr.mxu0 0.0
        %859 = vmatpush1.msra.mxu0 0.0
        %860 = vmatprep.subr.mxu0 0.0
        %861 = vmatpush1.msra.mxu0 0.0
        %862 = vmatprep.subr.mxu0 0.0
        %863 = vmatpush1.msra.mxu0 0.0
        %864 = vmatprep.subr.mxu0 0.0
        %865 = vmatpush1.msra.mxu0 0.0
        %866 = vmatprep.subr.mxu0 0.0
        %867 = vmatpush1.msra.mxu0 0.0
        %868 = vmatprep.subr.mxu0 0.0
        %869 = vmatpush1.msra.mxu0 0.0
        %870 = vmatprep.subr.mxu0 0.0
        %871 = vmatpush1.msra.mxu0 0.0
        %872 = vmatprep.subr.mxu0 0.0
        %873 = vmatpush1.msra.mxu0 0.0
        %874 = vmatprep.subr.mxu0 0.0
        %875 = vmatpush1.msra.mxu0 0.0
        %876 = vmatprep.subr.mxu0 0.0
        %877 = vmatpush1.msra.mxu0 0.0
        %878 = vmatprep.subr.mxu0 0.0
        %879 = vmatpush1.msra.mxu0 0.0
        %880 = vmatprep.subr.mxu0 0.0
        %881 = vmatpush1.msra.mxu0 0.0
        %882 = vmatprep.subr.mxu0 0.0
        %883 = vmatpush1.msra.mxu0 0.0
        %884 = vmatprep.subr.mxu0 0.0
        %885 = vmatpush1.msra.mxu0 0.0
        %886 = vmatprep.subr.mxu0 0.0
        %887 = vmatpush1.msra.mxu0 0.0
        %888 = vmatprep.subr.mxu0 0.0
        %889 = vmatpush1.msra.mxu0 0.0
        %890 = vmatprep.subr.mxu0 0.0
        %891 = vmatpush1.msra.mxu0 0.0
        %892 = vmatprep.subr.mxu0 0.0
        %893 = vmatpush1.msra.mxu0 0.0
        %894 = vmatprep.subr.mxu0 0.0
        %895 = vmatpush1.msra.mxu0 0.0
        %896 = vmatprep.subr.mxu0 0.0
        %897 = vmatpush1.msra.mxu0 0.0
        %898 = vmatprep.subr.mxu0 0.0
        %899 = vmatpush1.msra.mxu0 0.0
        %900 = vmatprep.subr.mxu0 0.0
        %901 = vmatpush1.msra.mxu0 0.0
        %902 = vmatprep.subr.mxu0 0.0
        %903 = vmatpush1.msra.mxu0 0.0
        %904 = vmatprep.subr.mxu0 0.0
        %905 = vmatpush1.msra.mxu0 0.0
        %906 = vmatprep.mubr.f32.mxu0 0.0
        %907 = vmatmul.mubr.f32.gmra.mrb[0].mxu0 %v840
        %v908 = vpop.f32.mrb[0].mxu0
        %v909 = vadd.f32 0.0, %v908
        %v910 = vpop.f32.mrb[0].mxu0
        %911 = vdwg.mxu0
        %v912 = vrcp.pop %v835
        %v913 = vmul.f32 %v909, %v912
        %v914 = vld [vmem:[%s8 + $0x8] sm:$0xff]
        %v916 = vsel %vm586, %v913, 0
        %918 = vmatprep.subr.mxu0 0.0
        %919 = vmatpush1.msra.mxu0 %v914
        %920 = vmatprep.subr.mxu0 0.0
        %921 = vmatpush1.msra.mxu0 0.0
        %922 = vmatprep.subr.mxu0 0.0
        %923 = vmatpush1.msra.mxu0 0.0
        %924 = vmatprep.subr.mxu0 0.0
        %925 = vmatpush1.msra.mxu0 0.0
        %926 = vmatprep.subr.mxu0 0.0
        %927 = vmatpush1.msra.mxu0 0.0
        %928 = vmatprep.subr.mxu0 0.0
        %929 = vmatpush1.msra.mxu0 0.0
        %930 = vmatprep.subr.mxu0 0.0
        %931 = vmatpush1.msra.mxu0 0.0
        %932 = vmatprep.subr.mxu0 0.0
        %933 = vmatpush1.msra.mxu0 0.0
        %934 = vmatprep.subr.mxu0 0.0
        %935 = vmatpush1.msra.mxu0 0.0
        %936 = vmatprep.subr.mxu0 0.0
        %937 = vmatpush1.msra.mxu0 0.0
        %938 = vmatprep.subr.mxu0 0.0
        %939 = vmatpush1.msra.mxu0 0.0
        %940 = vmatprep.subr.mxu0 0.0
        %941 = vmatpush1.msra.mxu0 0.0
        %942 = vmatprep.subr.mxu0 0.0
        %943 = vmatpush1.msra.mxu0 0.0
        %944 = vmatprep.subr.mxu0 0.0
        %945 = vmatpush1.msra.mxu0 0.0
        %946 = vmatprep.subr.mxu0 0.0
        %947 = vmatpush1.msra.mxu0 0.0
        %948 = vmatprep.subr.mxu0 0.0
        %949 = vmatpush1.msra.mxu0 0.0
        %950 = vmatprep.subr.mxu0 0.0
        %951 = vmatpush1.msra.mxu0 0.0
        %952 = vmatprep.subr.mxu0 0.0
        %953 = vmatpush1.msra.mxu0 0.0
        %954 = vmatprep.subr.mxu0 0.0
        %955 = vmatpush1.msra.mxu0 0.0
        %956 = vmatprep.subr.mxu0 0.0
        %957 = vmatpush1.msra.mxu0 0.0
        %958 = vmatprep.subr.mxu0 0.0
        %959 = vmatpush1.msra.mxu0 0.0
        %960 = vmatprep.subr.mxu0 0.0
        %961 = vmatpush1.msra.mxu0 0.0
        %962 = vmatprep.subr.mxu0 0.0
        %963 = vmatpush1.msra.mxu0 0.0
        %964 = vmatprep.subr.mxu0 0.0
        %965 = vmatpush1.msra.mxu0 0.0
        %966 = vmatprep.subr.mxu0 0.0
        %967 = vmatpush1.msra.mxu0 0.0
        %968 = vmatprep.subr.mxu0 0.0
        %969 = vmatpush1.msra.mxu0 0.0
        %970 = vmatprep.subr.mxu0 0.0
        %971 = vmatpush1.msra.mxu0 0.0
        %972 = vmatprep.subr.mxu0 0.0
        %973 = vmatpush1.msra.mxu0 0.0
        %974 = vmatprep.subr.mxu0 0.0
        %975 = vmatpush1.msra.mxu0 0.0
        %976 = vmatprep.subr.mxu0 0.0
        %977 = vmatpush1.msra.mxu0 0.0
        %978 = vmatprep.subr.mxu0 0.0
        %979 = vmatpush1.msra.mxu0 0.0
        %980 = vmatprep.subr.mxu0 0.0
        %981 = vmatpush1.msra.mxu0 0.0
        %982 = vmatprep.mubr.f32.mxu0 0.0
        %983 = vmatmul.mubr.f32.gmra.mrb[0].mxu0 %v916
        %v984 = vpop.f32.mrb[0].mxu0
        %v985 = vadd.f32 0.0, %v984
        %v986 = vpop.f32.mrb[0].mxu0
        %987 = vdwg.mxu0
        %v989 = vsel %vm586, %v747, 0
        %991 = vmatprep.subr.mxu0 0.0
        %992 = vmatpush1.msra.mxu0 %v748
        %993 = vmatprep.subr.mxu0 0.0
        %994 = vmatpush1.msra.mxu0 0.0
        %995 = vmatprep.subr.mxu0 0.0
        %996 = vmatpush1.msra.mxu0 0.0
        %997 = vmatprep.subr.mxu0 0.0
        %998 = vmatpush1.msra.mxu0 0.0
        %999 = vmatprep.subr.mxu0 0.0
        %1000 = vmatpush1.msra.mxu0 0.0
        %1001 = vmatprep.subr.mxu0 0.0
        %1002 = vmatpush1.msra.mxu0 0.0
        %1003 = vmatprep.subr.mxu0 0.0
        %1004 = vmatpush1.msra.mxu0 0.0
        %1005 = vmatprep.subr.mxu0 0.0
        %1006 = vmatpush1.msra.mxu0 0.0
        %1007 = vmatprep.subr.mxu0 0.0
        %1008 = vmatpush1.msra.mxu0 0.0
        %1009 = vmatprep.subr.mxu0 0.0
        %1010 = vmatpush1.msra.mxu0 0.0
        %1011 = vmatprep.subr.mxu0 0.0
        %1012 = vmatpush1.msra.mxu0 0.0
        %1013 = vmatprep.subr.mxu0 0.0
        %1014 = vmatpush1.msra.mxu0 0.0
        %1015 = vmatprep.subr.mxu0 0.0
        %1016 = vmatpush1.msra.mxu0 0.0
        %1017 = vmatprep.subr.mxu0 0.0
        %1018 = vmatpush1.msra.mxu0 0.0
        %1019 = vmatprep.subr.mxu0 0.0
        %1020 = vmatpush1.msra.mxu0 0.0
        %1021 = vmatprep.subr.mxu0 0.0
        %1022 = vmatpush1.msra.mxu0 0.0
        %1023 = vmatprep.subr.mxu0 0.0
        %1024 = vmatpush1.msra.mxu0 0.0
        %1025 = vmatprep.subr.mxu0 0.0
        %1026 = vmatpush1.msra.mxu0 0.0
        %1027 = vmatprep.subr.mxu0 0.0
        %1028 = vmatpush1.msra.mxu0 0.0
        %1029 = vmatprep.subr.mxu0 0.0
        %1030 = vmatpush1.msra.mxu0 0.0
        %1031 = vmatprep.subr.mxu0 0.0
        %1032 = vmatpush1.msra.mxu0 0.0
        %1033 = vmatprep.subr.mxu0 0.0
        %1034 = vmatpush1.msra.mxu0 0.0
        %1035 = vmatprep.subr.mxu0 0.0
        %1036 = vmatpush1.msra.mxu0 0.0
        %1037 = vmatprep.subr.mxu0 0.0
        %1038 = vmatpush1.msra.mxu0 0.0
        %1039 = vmatprep.subr.mxu0 0.0
        %1040 = vmatpush1.msra.mxu0 0.0
        %1041 = vmatprep.subr.mxu0 0.0
        %1042 = vmatpush1.msra.mxu0 0.0
        %1043 = vmatprep.subr.mxu0 0.0
        %1044 = vmatpush1.msra.mxu0 0.0
        %1045 = vmatprep.subr.mxu0 0.0
        %1046 = vmatpush1.msra.mxu0 0.0
        %1047 = vmatprep.subr.mxu0 0.0
        %1048 = vmatpush1.msra.mxu0 0.0
        %1049 = vmatprep.subr.mxu0 0.0
        %1050 = vmatpush1.msra.mxu0 0.0
        %1051 = vmatprep.subr.mxu0 0.0
        %1052 = vmatpush1.msra.mxu0 0.0
        %1053 = vmatprep.subr.mxu0 0.0
        %1054 = vmatpush1.msra.mxu0 0.0
        %1055 = vmatprep.mubr.f32.mxu0 0.0
        %1056 = vmatmul.mubr.f32.gmra.mrb[0].mxu0 %v989
        %v1057 = vpop.f32.mrb[0].mxu0
        %v1058 = vadd.f32 %v985, %v1057
        %v1059 = vpop.f32.mrb[0].mxu0
        %1060 = vdwg.mxu0
        %1061 = vrot.lane.b32.xlu0 %v579, 112
        %v1062 = vpop.permute.xlu0 %1061
        %1063 = vrot.lane.b32.xlu0 %v579, 80
        %v1064 = vpop.permute.xlu0 %1063
        %v1065 = vsel %vm586, %v1062, 0
        %v1067 = vsel %vm586, %v1064, 0
        %1069 = vmatprep.subr.mxu0 0.0
        %1070 = vmatpush1.xpose.msra.mxu0 %v1067
        %1071 = vmatprep.subr.mxu0 0.0
        %1072 = vmatpush1.xpose.msra.mxu0 0.0
        %1073 = vmatprep.subr.mxu0 0.0
        %1074 = vmatpush1.xpose.msra.mxu0 0.0
        %1075 = vmatprep.subr.mxu0 0.0
        %1076 = vmatpush1.xpose.msra.mxu0 0.0
        %1077 = vmatprep.subr.mxu0 0.0
        %1078 = vmatpush1.xpose.msra.mxu0 0.0
        %1079 = vmatprep.subr.mxu0 0.0
        %1080 = vmatpush1.xpose.msra.mxu0 0.0
        %1081 = vmatprep.subr.mxu0 0.0
        %1082 = vmatpush1.xpose.msra.mxu0 0.0
        %1083 = vmatprep.subr.mxu0 0.0
        %1084 = vmatpush1.xpose.msra.mxu0 0.0
        %1085 = vmatprep.subr.mxu0 0.0
        %1086 = vmatpush1.xpose.msra.mxu0 0.0
        %1087 = vmatprep.subr.mxu0 0.0
        %1088 = vmatpush1.xpose.msra.mxu0 0.0
        %1089 = vmatprep.subr.mxu0 0.0
        %1090 = vmatpush1.xpose.msra.mxu0 0.0
        %1091 = vmatprep.subr.mxu0 0.0
        %1092 = vmatpush1.xpose.msra.mxu0 0.0
        %1093 = vmatprep.subr.mxu0 0.0
        %1094 = vmatpush1.xpose.msra.mxu0 0.0
        %1095 = vmatprep.subr.mxu0 0.0
        %1096 = vmatpush1.xpose.msra.mxu0 0.0
        %1097 = vmatprep.subr.mxu0 0.0
        %1098 = vmatpush1.xpose.msra.mxu0 0.0
        %1099 = vmatprep.subr.mxu0 0.0
        %1100 = vmatpush1.xpose.msra.mxu0 0.0
        %1101 = vmatprep.subr.mxu0 0.0
        %1102 = vmatpush1.xpose.msra.mxu0 0.0
        %1103 = vmatprep.subr.mxu0 0.0
        %1104 = vmatpush1.xpose.msra.mxu0 0.0
        %1105 = vmatprep.subr.mxu0 0.0
        %1106 = vmatpush1.xpose.msra.mxu0 0.0
        %1107 = vmatprep.subr.mxu0 0.0
        %1108 = vmatpush1.xpose.msra.mxu0 0.0
        %1109 = vmatprep.subr.mxu0 0.0
        %1110 = vmatpush1.xpose.msra.mxu0 0.0
        %1111 = vmatprep.subr.mxu0 0.0
        %1112 = vmatpush1.xpose.msra.mxu0 0.0
        %1113 = vmatprep.subr.mxu0 0.0
        %1114 = vmatpush1.xpose.msra.mxu0 0.0
        %1115 = vmatprep.subr.mxu0 0.0
        %1116 = vmatpush1.xpose.msra.mxu0 0.0
        %1117 = vmatprep.subr.mxu0 0.0
        %1118 = vmatpush1.xpose.msra.mxu0 0.0
        %1119 = vmatprep.subr.mxu0 0.0
        %1120 = vmatpush1.xpose.msra.mxu0 0.0
        %1121 = vmatprep.subr.mxu0 0.0
        %1122 = vmatpush1.xpose.msra.mxu0 0.0
        %1123 = vmatprep.subr.mxu0 0.0
        %1124 = vmatpush1.xpose.msra.mxu0 0.0
        %1125 = vmatprep.subr.mxu0 0.0
        %1126 = vmatpush1.xpose.msra.mxu0 0.0
        %1127 = vmatprep.subr.mxu0 0.0
        %1128 = vmatpush1.xpose.msra.mxu0 0.0
        %1129 = vmatprep.subr.mxu0 0.0
        %1130 = vmatpush1.xpose.msra.mxu0 0.0
        %1131 = vmatprep.subr.mxu0 0.0
        %1132 = vmatpush1.xpose.msra.mxu0 0.0
        %1133 = vmatprep.mubr.f32.mxu0 0.0
        %1134 = vmatmul.mubr.f32.gmra.mrb[0].mxu0 %v1065
        %v1135 = vpop.f32.mrb[0].mxu0
        %v1136 = vadd.f32 %v582, %v1135
        %v1137 = vpop.f32.mrb[0].mxu0
        %1138 = vdwg.mxu0
        %v1139 = vsel %vm586, %v1136, -inf
        %1140 = vmax.xlane.f32.xlu0 %v1139
        %v1141 = vpop.xlane.xlu0 %1140
        %v1142 = vsub.f32 %v1136, %v1141
        %v1143 = vmul.f32 %v1142, 1.442695
        %v1144 = vpow.pop %v1143
        %v1145 = vsel %vm586, %v1144, 0.0
        %1146 = vadd.xlane.f32.xlu0 %v1145
        %v1147 = vpop.xlane.xlu0 %1146
        %1148 = vrot.lane.b32.xlu0 %v579, 48
        %v1149 = vpop.permute.xlu0 %1148
        %v1152 = vsel %vm586, %v1144, 0
        %1154 = vmatprep.subr.mxu0 0.0
        %1155 = vmatpush1.msra.mxu0 %v1149
        %1156 = vmatprep.subr.mxu0 0.0
        %1157 = vmatpush1.msra.mxu0 0.0
        %1158 = vmatprep.subr.mxu0 0.0
        %1159 = vmatpush1.msra.mxu0 0.0
        %1160 = vmatprep.subr.mxu0 0.0
        %1161 = vmatpush1.msra.mxu0 0.0
        %1162 = vmatprep.subr.mxu0 0.0
        %1163 = vmatpush1.msra.mxu0 0.0
        %1164 = vmatprep.subr.mxu0 0.0
        %1165 = vmatpush1.msra.mxu0 0.0
        %1166 = vmatprep.subr.mxu0 0.0
        %1167 = vmatpush1.msra.mxu0 0.0
        %1168 = vmatprep.subr.mxu0 0.0
        %1169 = vmatpush1.msra.mxu0 0.0
        %1170 = vmatprep.subr.mxu0 0.0
        %1171 = vmatpush1.msra.mxu0 0.0
        %1172 = vmatprep.subr.mxu0 0.0
        %1173 = vmatpush1.msra.mxu0 0.0
        %1174 = vmatprep.subr.mxu0 0.0
        %1175 = vmatpush1.msra.mxu0 0.0
        %1176 = vmatprep.subr.mxu0 0.0
        %1177 = vmatpush1.msra.mxu0 0.0
        %1178 = vmatprep.subr.mxu0 0.0
        %1179 = vmatpush1.msra.mxu0 0.0
        %1180 = vmatprep.subr.mxu0 0.0
        %1181 = vmatpush1.msra.mxu0 0.0
        %1182 = vmatprep.subr.mxu0 0.0
        %1183 = vmatpush1.msra.mxu0 0.0
        %1184 = vmatprep.subr.mxu0 0.0
        %1185 = vmatpush1.msra.mxu0 0.0
        %1186 = vmatprep.subr.mxu0 0.0
        %1187 = vmatpush1.msra.mxu0 0.0
        %1188 = vmatprep.subr.mxu0 0.0
        %1189 = vmatpush1.msra.mxu0 0.0
        %1190 = vmatprep.subr.mxu0 0.0
        %1191 = vmatpush1.msra.mxu0 0.0
        %1192 = vmatprep.subr.mxu0 0.0
        %1193 = vmatpush1.msra.mxu0 0.0
        %1194 = vmatprep.subr.mxu0 0.0
        %1195 = vmatpush1.msra.mxu0 0.0
        %1196 = vmatprep.subr.mxu0 0.0
        %1197 = vmatpush1.msra.mxu0 0.0
        %1198 = vmatprep.subr.mxu0 0.0
        %1199 = vmatpush1.msra.mxu0 0.0
        %1200 = vmatprep.subr.mxu0 0.0
        %1201 = vmatpush1.msra.mxu0 0.0
        %1202 = vmatprep.subr.mxu0 0.0
        %1203 = vmatpush1.msra.mxu0 0.0
        %1204 = vmatprep.subr.mxu0 0.0
        %1205 = vmatpush1.msra.mxu0 0.0
        %1206 = vmatprep.subr.mxu0 0.0
        %1207 = vmatpush1.msra.mxu0 0.0
        %1208 = vmatprep.subr.mxu0 0.0
        %1209 = vmatpush1.msra.mxu0 0.0
        %1210 = vmatprep.subr.mxu0 0.0
        %1211 = vmatpush1.msra.mxu0 0.0
        %1212 = vmatprep.subr.mxu0 0.0
        %1213 = vmatpush1.msra.mxu0 0.0
        %1214 = vmatprep.subr.mxu0 0.0
        %1215 = vmatpush1.msra.mxu0 0.0
        %1216 = vmatprep.subr.mxu0 0.0
        %1217 = vmatpush1.msra.mxu0 0.0
        %1218 = vmatprep.mubr.f32.mxu0 0.0
        %1219 = vmatmul.mubr.f32.gmra.mrb[0].mxu0 %v1152
        %v1220 = vpop.f32.mrb[0].mxu0
        %v1221 = vadd.f32 0.0, %v1220
        %v1222 = vpop.f32.mrb[0].mxu0
        %1223 = vdwg.mxu0
        %v1224 = vrcp.pop %v1147
        %v1225 = vmul.f32 %v1221, %v1224
        %v1226 = vld [vmem:[%s8 + $0x10] sm:$0xff]
        %v1228 = vsel %vm586, %v1225, 0
        %1230 = vmatprep.subr.mxu0 0.0
        %1231 = vmatpush1.msra.mxu0 %v1226
        %1232 = vmatprep.subr.mxu0 0.0
        %1233 = vmatpush1.msra.mxu0 0.0
        %1234 = vmatprep.subr.mxu0 0.0
        %1235 = vmatpush1.msra.mxu0 0.0
        %1236 = vmatprep.subr.mxu0 0.0
        %1237 = vmatpush1.msra.mxu0 0.0
        %1238 = vmatprep.subr.mxu0 0.0
        %1239 = vmatpush1.msra.mxu0 0.0
        %1240 = vmatprep.subr.mxu0 0.0
        %1241 = vmatpush1.msra.mxu0 0.0
        %1242 = vmatprep.subr.mxu0 0.0
        %1243 = vmatpush1.msra.mxu0 0.0
        %1244 = vmatprep.subr.mxu0 0.0
        %1245 = vmatpush1.msra.mxu0 0.0
        %1246 = vmatprep.subr.mxu0 0.0
        %1247 = vmatpush1.msra.mxu0 0.0
        %1248 = vmatprep.subr.mxu0 0.0
        %1249 = vmatpush1.msra.mxu0 0.0
        %1250 = vmatprep.subr.mxu0 0.0
        %1251 = vmatpush1.msra.mxu0 0.0
        %1252 = vmatprep.subr.mxu0 0.0
        %1253 = vmatpush1.msra.mxu0 0.0
        %1254 = vmatprep.subr.mxu0 0.0
        %1255 = vmatpush1.msra.mxu0 0.0
        %1256 = vmatprep.subr.mxu0 0.0
        %1257 = vmatpush1.msra.mxu0 0.0
        %1258 = vmatprep.subr.mxu0 0.0
        %1259 = vmatpush1.msra.mxu0 0.0
        %1260 = vmatprep.subr.mxu0 0.0
        %1261 = vmatpush1.msra.mxu0 0.0
        %1262 = vmatprep.subr.mxu0 0.0
        %1263 = vmatpush1.msra.mxu0 0.0
        %1264 = vmatprep.subr.mxu0 0.0
        %1265 = vmatpush1.msra.mxu0 0.0
        %1266 = vmatprep.subr.mxu0 0.0
        %1267 = vmatpush1.msra.mxu0 0.0
        %1268 = vmatprep.subr.mxu0 0.0
        %1269 = vmatpush1.msra.mxu0 0.0
        %1270 = vmatprep.subr.mxu0 0.0
        %1271 = vmatpush1.msra.mxu0 0.0
        %1272 = vmatprep.subr.mxu0 0.0
        %1273 = vmatpush1.msra.mxu0 0.0
        %1274 = vmatprep.subr.mxu0 0.0
        %1275 = vmatpush1.msra.mxu0 0.0
        %1276 = vmatprep.subr.mxu0 0.0
        %1277 = vmatpush1.msra.mxu0 0.0
        %1278 = vmatprep.subr.mxu0 0.0
        %1279 = vmatpush1.msra.mxu0 0.0
        %1280 = vmatprep.subr.mxu0 0.0
        %1281 = vmatpush1.msra.mxu0 0.0
        %1282 = vmatprep.subr.mxu0 0.0
        %1283 = vmatpush1.msra.mxu0 0.0
        %1284 = vmatprep.subr.mxu0 0.0
        %1285 = vmatpush1.msra.mxu0 0.0
        %1286 = vmatprep.subr.mxu0 0.0
        %1287 = vmatpush1.msra.mxu0 0.0
        %1288 = vmatprep.subr.mxu0 0.0
        %1289 = vmatpush1.msra.mxu0 0.0
        %1290 = vmatprep.subr.mxu0 0.0
        %1291 = vmatpush1.msra.mxu0 0.0
        %1292 = vmatprep.subr.mxu0 0.0
        %1293 = vmatpush1.msra.mxu0 0.0
        %1294 = vmatprep.mubr.f32.mxu0 0.0
        %1295 = vmatmul.mubr.f32.gmra.mrb[0].mxu0 %v1228
        %v1296 = vpop.f32.mrb[0].mxu0
        %v1297 = vadd.f32 0.0, %v1296
        %v1298 = vpop.f32.mrb[0].mxu0
        %1299 = vdwg.mxu0
        %v1300 = vadd.f32 %v1058, %v1297
        %1301 = vrot.lane.b32.xlu0 %v579, 104
        %v1302 = vpop.permute.xlu0 %1301
        %1303 = vrot.lane.b32.xlu0 %v579, 72
        %v1304 = vpop.permute.xlu0 %1303
        %v1305 = vsel %vm586, %v1302, 0
        %v1307 = vsel %vm586, %v1304, 0
        %1309 = vmatprep.subr.mxu0 0.0
        %1310 = vmatpush1.xpose.msra.mxu0 %v1307
        %1311 = vmatprep.subr.mxu0 0.0
        %1312 = vmatpush1.xpose.msra.mxu0 0.0
        %1313 = vmatprep.subr.mxu0 0.0
        %1314 = vmatpush1.xpose.msra.mxu0 0.0
        %1315 = vmatprep.subr.mxu0 0.0
        %1316 = vmatpush1.xpose.msra.mxu0 0.0
        %1317 = vmatprep.subr.mxu0 0.0
        %1318 = vmatpush1.xpose.msra.mxu0 0.0
        %1319 = vmatprep.subr.mxu0 0.0
        %1320 = vmatpush1.xpose.msra.mxu0 0.0
        %1321 = vmatprep.subr.mxu0 0.0
        %1322 = vmatpush1.xpose.msra.mxu0 0.0
        %1323 = vmatprep.subr.mxu0 0.0
        %1324 = vmatpush1.xpose.msra.mxu0 0.0
        %1325 = vmatprep.subr.mxu0 0.0
        %1326 = vmatpush1.xpose.msra.mxu0 0.0
        %1327 = vmatprep.subr.mxu0 0.0
        %1328 = vmatpush1.xpose.msra.mxu0 0.0
        %1329 = vmatprep.subr.mxu0 0.0
        %1330 = vmatpush1.xpose.msra.mxu0 0.0
        %1331 = vmatprep.subr.mxu0 0.0
        %1332 = vmatpush1.xpose.msra.mxu0 0.0
        %1333 = vmatprep.subr.mxu0 0.0
        %1334 = vmatpush1.xpose.msra.mxu0 0.0
        %1335 = vmatprep.subr.mxu0 0.0
        %1336 = vmatpush1.xpose.msra.mxu0 0.0
        %1337 = vmatprep.subr.mxu0 0.0
        %1338 = vmatpush1.xpose.msra.mxu0 0.0
        %1339 = vmatprep.subr.mxu0 0.0
        %1340 = vmatpush1.xpose.msra.mxu0 0.0
        %1341 = vmatprep.subr.mxu0 0.0
        %1342 = vmatpush1.xpose.msra.mxu0 0.0
        %1343 = vmatprep.subr.mxu0 0.0
        %1344 = vmatpush1.xpose.msra.mxu0 0.0
        %1345 = vmatprep.subr.mxu0 0.0
        %1346 = vmatpush1.xpose.msra.mxu0 0.0
        %1347 = vmatprep.subr.mxu0 0.0
        %1348 = vmatpush1.xpose.msra.mxu0 0.0
        %1349 = vmatprep.subr.mxu0 0.0
        %1350 = vmatpush1.xpose.msra.mxu0 0.0
        %1351 = vmatprep.subr.mxu0 0.0
        %1352 = vmatpush1.xpose.msra.mxu0 0.0
        %1353 = vmatprep.subr.mxu0 0.0
        %1354 = vmatpush1.xpose.msra.mxu0 0.0
        %1355 = vmatprep.subr.mxu0 0.0
        %1356 = vmatpush1.xpose.msra.mxu0 0.0
        %1357 = vmatprep.subr.mxu0 0.0
        %1358 = vmatpush1.xpose.msra.mxu0 0.0
        %1359 = vmatprep.subr.mxu0 0.0
        %1360 = vmatpush1.xpose.msra.mxu0 0.0
        %1361 = vmatprep.subr.mxu0 0.0
        %1362 = vmatpush1.xpose.msra.mxu0 0.0
        %1363 = vmatprep.subr.mxu0 0.0
        %1364 = vmatpush1.xpose.msra.mxu0 0.0
        %1365 = vmatprep.subr.mxu0 0.0
        %1366 = vmatpush1.xpose.msra.mxu0 0.0
        %1367 = vmatprep.subr.mxu0 0.0
        %1368 = vmatpush1.xpose.msra.mxu0 0.0
        %1369 = vmatprep.subr.mxu0 0.0
        %1370 = vmatpush1.xpose.msra.mxu0 0.0
        %1371 = vmatprep.subr.mxu0 0.0
        %1372 = vmatpush1.xpose.msra.mxu0 0.0
        %1373 = vmatprep.mubr.f32.mxu0 0.0
        %1374 = vmatmul.mubr.f32.gmra.mrb[0].mxu0 %v1305
        %v1375 = vpop.f32.mrb[0].mxu0
        %v1376 = vadd.f32 %v582, %v1375
        %v1377 = vpop.f32.mrb[0].mxu0
        %1378 = vdwg.mxu0
        %v1379 = vsel %vm586, %v1376, -inf
        %1380 = vmax.xlane.f32.xlu0 %v1379
        %v1381 = vpop.xlane.xlu0 %1380
        %v1382 = vsub.f32 %v1376, %v1381
        %v1383 = vmul.f32 %v1382, 1.442695
        %v1384 = vpow.pop %v1383
        %v1385 = vsel %vm586, %v1384, 0.0
        %1386 = vadd.xlane.f32.xlu0 %v1385
        %v1387 = vpop.xlane.xlu0 %1386
        %1388 = vrot.lane.b32.xlu0 %v579, 40
        %v1389 = vpop.permute.xlu0 %1388
        %v1392 = vsel %vm586, %v1384, 0
        %1394 = vmatprep.subr.mxu0 0.0
        %1395 = vmatpush1.msra.mxu0 %v1389
        %1396 = vmatprep.subr.mxu0 0.0
        %1397 = vmatpush1.msra.mxu0 0.0
        %1398 = vmatprep.subr.mxu0 0.0
        %1399 = vmatpush1.msra.mxu0 0.0
        %1400 = vmatprep.subr.mxu0 0.0
        %1401 = vmatpush1.msra.mxu0 0.0
        %1402 = vmatprep.subr.mxu0 0.0
        %1403 = vmatpush1.msra.mxu0 0.0
        %1404 = vmatprep.subr.mxu0 0.0
        %1405 = vmatpush1.msra.mxu0 0.0
        %1406 = vmatprep.subr.mxu0 0.0
        %1407 = vmatpush1.msra.mxu0 0.0
        %1408 = vmatprep.subr.mxu0 0.0
        %1409 = vmatpush1.msra.mxu0 0.0
        %1410 = vmatprep.subr.mxu0 0.0
        %1411 = vmatpush1.msra.mxu0 0.0
        %1412 = vmatprep.subr.mxu0 0.0
        %1413 = vmatpush1.msra.mxu0 0.0
        %1414 = vmatprep.subr.mxu0 0.0
        %1415 = vmatpush1.msra.mxu0 0.0
        %1416 = vmatprep.subr.mxu0 0.0
        %1417 = vmatpush1.msra.mxu0 0.0
        %1418 = vmatprep.subr.mxu0 0.0
        %1419 = vmatpush1.msra.mxu0 0.0
        %1420 = vmatprep.subr.mxu0 0.0
        %1421 = vmatpush1.msra.mxu0 0.0
        %1422 = vmatprep.subr.mxu0 0.0
        %1423 = vmatpush1.msra.mxu0 0.0
        %1424 = vmatprep.subr.mxu0 0.0
        %1425 = vmatpush1.msra.mxu0 0.0
        %1426 = vmatprep.subr.mxu0 0.0
        %1427 = vmatpush1.msra.mxu0 0.0
        %1428 = vmatprep.subr.mxu0 0.0
        %1429 = vmatpush1.msra.mxu0 0.0
        %1430 = vmatprep.subr.mxu0 0.0
        %1431 = vmatpush1.msra.mxu0 0.0
        %1432 = vmatprep.subr.mxu0 0.0
        %1433 = vmatpush1.msra.mxu0 0.0
        %1434 = vmatprep.subr.mxu0 0.0
        %1435 = vmatpush1.msra.mxu0 0.0
        %1436 = vmatprep.subr.mxu0 0.0
        %1437 = vmatpush1.msra.mxu0 0.0
        %1438 = vmatprep.subr.mxu0 0.0
        %1439 = vmatpush1.msra.mxu0 0.0
        %1440 = vmatprep.subr.mxu0 0.0
        %1441 = vmatpush1.msra.mxu0 0.0
        %1442 = vmatprep.subr.mxu0 0.0
        %1443 = vmatpush1.msra.mxu0 0.0
        %1444 = vmatprep.subr.mxu0 0.0
        %1445 = vmatpush1.msra.mxu0 0.0
        %1446 = vmatprep.subr.mxu0 0.0
        %1447 = vmatpush1.msra.mxu0 0.0
        %1448 = vmatprep.subr.mxu0 0.0
        %1449 = vmatpush1.msra.mxu0 0.0
        %1450 = vmatprep.subr.mxu0 0.0
        %1451 = vmatpush1.msra.mxu0 0.0
        %1452 = vmatprep.subr.mxu0 0.0
        %1453 = vmatpush1.msra.mxu0 0.0
        %1454 = vmatprep.subr.mxu0 0.0
        %1455 = vmatpush1.msra.mxu0 0.0
        %1456 = vmatprep.subr.mxu0 0.0
        %1457 = vmatpush1.msra.mxu0 0.0
        %1458 = vmatprep.mubr.f32.mxu0 0.0
        %1459 = vmatmul.mubr.f32.gmra.mrb[0].mxu0 %v1392
        %v1460 = vpop.f32.mrb[0].mxu0
        %v1461 = vadd.f32 0.0, %v1460
        %v1462 = vpop.f32.mrb[0].mxu0
        %1463 = vdwg.mxu0
        %v1464 = vrcp.pop %v1387
        %v1465 = vmul.f32 %v1461, %v1464
        %v1466 = vld [vmem:[%s8 + $0x18] sm:$0xff]
        %v1468 = vsel %vm586, %v1465, 0
        %1470 = vmatprep.subr.mxu0 0.0
        %1471 = vmatpush1.msra.mxu0 %v1466
        %1472 = vmatprep.subr.mxu0 0.0
        %1473 = vmatpush1.msra.mxu0 0.0
        %1474 = vmatprep.subr.mxu0 0.0
        %1475 = vmatpush1.msra.mxu0 0.0
        %1476 = vmatprep.subr.mxu0 0.0
        %1477 = vmatpush1.msra.mxu0 0.0
        %1478 = vmatprep.subr.mxu0 0.0
        %1479 = vmatpush1.msra.mxu0 0.0
        %1480 = vmatprep.subr.mxu0 0.0
        %1481 = vmatpush1.msra.mxu0 0.0
        %1482 = vmatprep.subr.mxu0 0.0
        %1483 = vmatpush1.msra.mxu0 0.0
        %1484 = vmatprep.subr.mxu0 0.0
        %1485 = vmatpush1.msra.mxu0 0.0
        %1486 = vmatprep.subr.mxu0 0.0
        %1487 = vmatpush1.msra.mxu0 0.0
        %1488 = vmatprep.subr.mxu0 0.0
        %1489 = vmatpush1.msra.mxu0 0.0
        %1490 = vmatprep.subr.mxu0 0.0
        %1491 = vmatpush1.msra.mxu0 0.0
        %1492 = vmatprep.subr.mxu0 0.0
        %1493 = vmatpush1.msra.mxu0 0.0
        %1494 = vmatprep.subr.mxu0 0.0
        %1495 = vmatpush1.msra.mxu0 0.0
        %1496 = vmatprep.subr.mxu0 0.0
        %1497 = vmatpush1.msra.mxu0 0.0
        %1498 = vmatprep.subr.mxu0 0.0
        %1499 = vmatpush1.msra.mxu0 0.0
        %1500 = vmatprep.subr.mxu0 0.0
        %1501 = vmatpush1.msra.mxu0 0.0
        %1502 = vmatprep.subr.mxu0 0.0
        %1503 = vmatpush1.msra.mxu0 0.0
        %1504 = vmatprep.subr.mxu0 0.0
        %1505 = vmatpush1.msra.mxu0 0.0
        %1506 = vmatprep.subr.mxu0 0.0
        %1507 = vmatpush1.msra.mxu0 0.0
        %1508 = vmatprep.subr.mxu0 0.0
        %1509 = vmatpush1.msra.mxu0 0.0
        %1510 = vmatprep.subr.mxu0 0.0
        %1511 = vmatpush1.msra.mxu0 0.0
        %1512 = vmatprep.subr.mxu0 0.0
        %1513 = vmatpush1.msra.mxu0 0.0
        %1514 = vmatprep.subr.mxu0 0.0
        %1515 = vmatpush1.msra.mxu0 0.0
        %1516 = vmatprep.subr.mxu0 0.0
        %1517 = vmatpush1.msra.mxu0 0.0
        %1518 = vmatprep.subr.mxu0 0.0
        %1519 = vmatpush1.msra.mxu0 0.0
        %1520 = vmatprep.subr.mxu0 0.0
        %1521 = vmatpush1.msra.mxu0 0.0
        %1522 = vmatprep.subr.mxu0 0.0
        %1523 = vmatpush1.msra.mxu0 0.0
        %1524 = vmatprep.subr.mxu0 0.0
        %1525 = vmatpush1.msra.mxu0 0.0
        %1526 = vmatprep.subr.mxu0 0.0
        %1527 = vmatpush1.msra.mxu0 0.0
        %1528 = vmatprep.subr.mxu0 0.0
        %1529 = vmatpush1.msra.mxu0 0.0
        %1530 = vmatprep.subr.mxu0 0.0
        %1531 = vmatpush1.msra.mxu0 0.0
        %1532 = vmatprep.subr.mxu0 0.0
        %1533 = vmatpush1.msra.mxu0 0.0
        %1534 = vmatprep.mubr.f32.mxu0 0.0
        %1535 = vmatmul.mubr.f32.gmra.mrb[0].mxu0 %v1468
        %v1536 = vpop.f32.mrb[0].mxu0
        %v1537 = vadd.f32 0.0, %v1536
        %v1538 = vpop.f32.mrb[0].mxu0
        %1539 = vdwg.mxu0
        %v1540 = vadd.f32 %v1300, %v1537
        %v1541 = vadd.f32 %v463, %v1540
        %v1542 = vld [vmem:[%s9] sm:$0x1]
        %v1544 = vlaneseq
        %v1545 = vshrl.u32 %v1544, 7
        %v1546 = vsub.s32 0, %v1545
        %v1547 = vrot.slane %v1542, %v1546
        %v1549 = vadd.f32 %v1541, %v1547
        %v1550 = vld [vmem:[%s3] sm:$0x1]
        %v1551 = vld [vmem:[%s4] sm:$0x1]
        %v1552 = vsel %vm466, %v1549, 0.0
        %1553 = vadd.xlane.f32.xlu0 %v1552
        %v1554 = vpop.xlane.xlu0 %1553
        %v1555 = vmul.f32 %v1554, %v470
        %v1556 = vmul.f32 %v1549, %v1549
        %v1557 = vsel %vm466, %v1556, 0.0
        %1558 = vadd.xlane.f32.xlu0 %v1557
        %v1559 = vpop.xlane.xlu0 %1558
        %v1560 = vmul.f32 %v1559, %v470
        %v1561 = vmul.f32 %v1555, %v1555
        %v1562 = vsub.f32 %v1560, %v1561
        %v1563 = vmax.f32 %v1562, 0.0
        %v1564 = vadd.f32 %v1563, 1e-05
        %v1565 = vrsqrt.pop %v1564
        %v1566 = vsub.f32 %v1549, %v1555
        %v1567 = vmul.f32 %v1566, %v1565
        %v1569 = vlaneseq
        %v1570 = vshrl.u32 %v1569, 7
        %v1571 = vsub.s32 0, %v1570
        %v1572 = vrot.slane %v1550, %v1571
        %v1574 = vmul.f32 %v1567, %v1572
        %v1576 = vlaneseq
        %v1577 = vshrl.u32 %v1576, 7
        %v1578 = vsub.s32 0, %v1577
        %v1579 = vrot.slane %v1551, %v1578
        %v1581 = vadd.f32 %v1574, %v1579
        %v1582 = vld [vmem:[%s10] sm:$0xff]
        %v1583 = vld [vmem:[%s10 + $0x8] sm:$0xff]
        %v1584 = vld [vmem:[%s10 + $0x10] sm:$0xff]
        %v1585 = vld [vmem:[%s10 + $0x18] sm:$0xff]
        %v1586 = vld [vmem:[%s11] sm:$0x1]
        %v1588 = vlaneseq
        %v1589 = vshrl.u32 %v1588, 7
        %v1590 = vsub.s32 0, %v1589
        %v1591 = vrot.slane %v1586, %v1590
        %v1594 = vsel %vm466, %v1581, 0
        %1596 = vmatprep.subr.mxu0 0.0
        %1597 = vmatpush1.msra.mxu0 %v1582
        %1598 = vmatprep.subr.mxu0 0.0
        %1599 = vmatpush1.msra.mxu0 %v1583
        %1600 = vmatprep.subr.mxu0 0.0
        %1601 = vmatpush1.msra.mxu0 %v1584
        %1602 = vmatprep.subr.mxu0 0.0
        %1603 = vmatpush1.msra.mxu0 %v1585
        %1604 = vmatprep.subr.mxu0 0.0
        %1605 = vmatpush1.msra.mxu0 0.0
        %1606 = vmatprep.subr.mxu0 0.0
        %1607 = vmatpush1.msra.mxu0 0.0
        %1608 = vmatprep.subr.mxu0 0.0
        %1609 = vmatpush1.msra.mxu0 0.0
        %1610 = vmatprep.subr.mxu0 0.0
        %1611 = vmatpush1.msra.mxu0 0.0
        %1612 = vmatprep.subr.mxu0 0.0
        %1613 = vmatpush1.msra.mxu0 0.0
        %1614 = vmatprep.subr.mxu0 0.0
        %1615 = vmatpush1.msra.mxu0 0.0
        %1616 = vmatprep.subr.mxu0 0.0
        %1617 = vmatpush1.msra.mxu0 0.0
        %1618 = vmatprep.subr.mxu0 0.0
        %1619 = vmatpush1.msra.mxu0 0.0
        %1620 = vmatprep.subr.mxu0 0.0
        %1621 = vmatpush1.msra.mxu0 0.0
        %1622 = vmatprep.subr.mxu0 0.0
        %1623 = vmatpush1.msra.mxu0 0.0
        %1624 = vmatprep.subr.mxu0 0.0
        %1625 = vmatpush1.msra.mxu0 0.0
        %1626 = vmatprep.subr.mxu0 0.0
        %1627 = vmatpush1.msra.mxu0 0.0
        %1628 = vmatprep.subr.mxu0 0.0
        %1629 = vmatpush1.msra.mxu0 0.0
        %1630 = vmatprep.subr.mxu0 0.0
        %1631 = vmatpush1.msra.mxu0 0.0
        %1632 = vmatprep.subr.mxu0 0.0
        %1633 = vmatpush1.msra.mxu0 0.0
        %1634 = vmatprep.subr.mxu0 0.0
        %1635 = vmatpush1.msra.mxu0 0.0
        %1636 = vmatprep.subr.mxu0 0.0
        %1637 = vmatpush1.msra.mxu0 0.0
        %1638 = vmatprep.subr.mxu0 0.0
        %1639 = vmatpush1.msra.mxu0 0.0
        %1640 = vmatprep.subr.mxu0 0.0
        %1641 = vmatpush1.msra.mxu0 0.0
        %1642 = vmatprep.subr.mxu0 0.0
        %1643 = vmatpush1.msra.mxu0 0.0
        %1644 = vmatprep.subr.mxu0 0.0
        %1645 = vmatpush1.msra.mxu0 0.0
        %1646 = vmatprep.subr.mxu0 0.0
        %1647 = vmatpush1.msra.mxu0 0.0
        %1648 = vmatprep.subr.mxu0 0.0
        %1649 = vmatpush1.msra.mxu0 0.0
        %1650 = vmatprep.subr.mxu0 0.0
        %1651 = vmatpush1.msra.mxu0 0.0
        %1652 = vmatprep.subr.mxu0 0.0
        %1653 = vmatpush1.msra.mxu0 0.0
        %1654 = vmatprep.subr.mxu0 0.0
        %1655 = vmatpush1.msra.mxu0 0.0
        %1656 = vmatprep.subr.mxu0 0.0
        %1657 = vmatpush1.msra.mxu0 0.0
        %1658 = vmatprep.subr.mxu0 0.0
        %1659 = vmatpush1.msra.mxu0 0.0
        %1660 = vmatprep.mubr.f32.mxu0 0.0
        %1661 = vmatmul.mubr.f32.gmra.mrb[0].mxu0 %v1594
        %v1662 = vpop.f32.mrb[0].mxu0
        %v1663 = vadd.f32 %v1591, %v1662
        %v1664 = vpop.f32.mrb[0].mxu0
        %1665 = vdwg.mxu0
        %v1666 = vmul.f32 %v1663, 0.5
        %v1667 = vmul.f32 %v1663, 0.70710677
        %vm1668 = vcmp.ge.f32.partialorder %v1667, 0.0
        %v1669 = vsub.f32 0.0, %v1667
        %v1670 = vsel %vm1668, %v1667, %v1669
        %v1671 = vmul.f32 %v1670, 0.3275911
        %v1672 = vadd.f32 %v1671, 1.0
        %v1673 = vrcp.pop %v1672
        %v1674 = vmul.f32 1.0, %v1673
        %v1675 = vmul.f32 %v1674, 1.0614054
        %v1676 = vadd.f32 %v1675, -1.4531521
        %v1677 = vmul.f32 %v1676, %v1674
        %v1678 = vadd.f32 %v1677, 1.4214138
        %v1679 = vmul.f32 %v1678, %v1674
        %v1680 = vadd.f32 %v1679, -0.28449672
        %v1681 = vmul.f32 %v1680, %v1674
        %v1682 = vadd.f32 %v1681, 0.2548296
        %v1683 = vmul.f32 %v1682, %v1674
        %v1684 = vsub.f32 0.0, %v1670
        %v1685 = vmul.f32 %v1684, %v1670
        %v1686 = vmul.f32 %v1685, 1.442695
        %v1687 = vpow.pop %v1686
        %v1688 = vmul.f32 %v1683, %v1687
        %v1689 = vsub.f32 1.0, %v1688
        %v1690 = vsub.f32 0.0, %v1689
        %v1691 = vsel %vm1668, %v1689, %v1690
        %v1692 = vadd.f32 %v1691, 1.0
        %v1693 = vmul.f32 %v1666, %v1692
        %v1694 = vld [vmem:[%s12] sm:$0xff]
        %v1695 = vld [vmem:[%s12 + $0x8] sm:$0xff]
        %v1696 = vld [vmem:[%s12 + $0x10] sm:$0xff]
        %v1697 = vld [vmem:[%s12 + $0x18] sm:$0xff]
        %v1698 = vld [vmem:[%s12 + $0x20] sm:$0xff]
        %v1699 = vld [vmem:[%s12 + $0x28] sm:$0xff]
        %v1700 = vld [vmem:[%s12 + $0x30] sm:$0xff]
        %v1701 = vld [vmem:[%s12 + $0x38] sm:$0xff]
        %v1702 = vld [vmem:[%s12 + $0x40] sm:$0xff]
        %v1703 = vld [vmem:[%s12 + $0x48] sm:$0xff]
        %v1704 = vld [vmem:[%s12 + $0x50] sm:$0xff]
        %v1705 = vld [vmem:[%s12 + $0x58] sm:$0xff]
        %v1706 = vld [vmem:[%s12 + $0x60] sm:$0xff]
        %v1707 = vld [vmem:[%s12 + $0x68] sm:$0xff]
        %v1708 = vld [vmem:[%s12 + $0x70] sm:$0xff]
        %v1709 = vld [vmem:[%s12 + $0x78] sm:$0xff]
        %v1710 = vld [vmem:[%s13] sm:$0x1]
        %v1712 = vlaneseq
        %v1713 = vshrl.u32 %v1712, 7
        %v1714 = vsub.s32 0, %v1713
        %v1715 = vrot.slane %v1710, %v1714
        %1717 = vmatprep.subr.mxu0 0.0
        %1718 = vmatpush1.msra.mxu0 %v1694
        %1719 = vmatprep.subr.mxu0 0.0
        %1720 = vmatpush1.msra.mxu0 %v1695
        %1721 = vmatprep.subr.mxu0 0.0
        %1722 = vmatpush1.msra.mxu0 %v1696
        %1723 = vmatprep.subr.mxu0 0.0
        %1724 = vmatpush1.msra.mxu0 %v1697
        %1725 = vmatprep.subr.mxu0 0.0
        %1726 = vmatpush1.msra.mxu0 %v1698
        %1727 = vmatprep.subr.mxu0 0.0
        %1728 = vmatpush1.msra.mxu0 %v1699
        %1729 = vmatprep.subr.mxu0 0.0
        %1730 = vmatpush1.msra.mxu0 %v1700
        %1731 = vmatprep.subr.mxu0 0.0
        %1732 = vmatpush1.msra.mxu0 %v1701
        %1733 = vmatprep.subr.mxu0 0.0
        %1734 = vmatpush1.msra.mxu0 %v1702
        %1735 = vmatprep.subr.mxu0 0.0
        %1736 = vmatpush1.msra.mxu0 %v1703
        %1737 = vmatprep.subr.mxu0 0.0
        %1738 = vmatpush1.msra.mxu0 %v1704
        %1739 = vmatprep.subr.mxu0 0.0
        %1740 = vmatpush1.msra.mxu0 %v1705
        %1741 = vmatprep.subr.mxu0 0.0
        %1742 = vmatpush1.msra.mxu0 %v1706
        %1743 = vmatprep.subr.mxu0 0.0
        %1744 = vmatpush1.msra.mxu0 %v1707
        %1745 = vmatprep.subr.mxu0 0.0
        %1746 = vmatpush1.msra.mxu0 %v1708
        %1747 = vmatprep.subr.mxu0 0.0
        %1748 = vmatpush1.msra.mxu0 %v1709
        %1749 = vmatprep.subr.mxu0 0.0
        %1750 = vmatpush1.msra.mxu0 0.0
        %1751 = vmatprep.subr.mxu0 0.0
        %1752 = vmatpush1.msra.mxu0 0.0
        %1753 = vmatprep.subr.mxu0 0.0
        %1754 = vmatpush1.msra.mxu0 0.0
        %1755 = vmatprep.subr.mxu0 0.0
        %1756 = vmatpush1.msra.mxu0 0.0
        %1757 = vmatprep.subr.mxu0 0.0
        %1758 = vmatpush1.msra.mxu0 0.0
        %1759 = vmatprep.subr.mxu0 0.0
        %1760 = vmatpush1.msra.mxu0 0.0
        %1761 = vmatprep.subr.mxu0 0.0
        %1762 = vmatpush1.msra.mxu0 0.0
        %1763 = vmatprep.subr.mxu0 0.0
        %1764 = vmatpush1.msra.mxu0 0.0
        %1765 = vmatprep.subr.mxu0 0.0
        %1766 = vmatpush1.msra.mxu0 0.0
        %1767 = vmatprep.subr.mxu0 0.0
        %1768 = vmatpush1.msra.mxu0 0.0
        %1769 = vmatprep.subr.mxu0 0.0
        %1770 = vmatpush1.msra.mxu0 0.0
        %1771 = vmatprep.subr.mxu0 0.0
        %1772 = vmatpush1.msra.mxu0 0.0
        %1773 = vmatprep.subr.mxu0 0.0
        %1774 = vmatpush1.msra.mxu0 0.0
        %1775 = vmatprep.subr.mxu0 0.0
        %1776 = vmatpush1.msra.mxu0 0.0
        %1777 = vmatprep.subr.mxu0 0.0
        %1778 = vmatpush1.msra.mxu0 0.0
        %1779 = vmatprep.subr.mxu0 0.0
        %1780 = vmatpush1.msra.mxu0 0.0
        %1781 = vmatprep.mubr.f32.mxu0 0.0
        %1782 = vmatmul.mubr.f32.gmra.mrb[0].mxu0 %v1693
        %v1783 = vpop.f32.mrb[0].mxu0
        %v1784 = vadd.f32 %v1715, %v1783
        %v1785 = vpop.f32.mrb[0].mxu0
        %1786 = vdwg.mxu0
        %v1787 = vadd.f32 %v1549, %v1784
        %1788 = vst.msk [vmem:[%s458] sm:$0xff] %vm466, %v1787
        %s1789 = sand.u32 %s335, 1
        %s1790 = scalar_lea.sflag [#allocation3], %s1789
        %s1791 = sand.u32 %s335, 1
        %s1792 = smul.addr %s1791, 8
        %s1793 = scalar_lea.vmem [#allocation2], %s1792
        // Predicated region
        $region77: #{tpu_custom_call.1} parent=75 // pred_check
          %p1794 = pneg %p345
        $region78: #{tpu_custom_call.1} parent=75 // pred_check_branch
          %1796 = sbr.rel (%p1794) target = $region80
        $region79: #{tpu_custom_call.1} parent=75 // pred_region
          %s1798 = ssub.s32 128, 128
          %1799 = vsyncadd %s1790, %s1798
          %s1800 = smul.addr %s28, 128
          %s1801 = scalar_lea.hbm %s14, %s1800
          %s1803 = sshll.u32 %s1793, 4
          %s1804 = int_to_ptr.vmem [resolvable:$true] %s1803
          %1806 = dma.vmem_to_hbm [thread:$0]  %s1804, 128, %s1801, %s1790
        $region80: #{tpu_custom_call.1} parent=75 // pred_fallthru
          _
      $region76: #{tpu_custom_call.1} parent=5 // pred_fallthru
        _
      %p1807 = scmp.le.s32.totalorder 2, %s23
      // Predicated region
      $region81: #{tpu_custom_call.1} parent=5 // pred_check
        %p1808 = pneg %p1807
      $region82: #{tpu_custom_call.1} parent=5 // pred_check_branch
        %1810 = sbr.rel (%p1808) target = $region84
      $region83: #{tpu_custom_call.1} parent=5 // pred_region
        %s1811 = ssub.s32 %s23, 2
        // Predicated region
        $region85: #{tpu_custom_call.1} parent=83 // pred_check
          %p1812 = pneg %p351
        $region86: #{tpu_custom_call.1} parent=83 // pred_check_branch
          %1814 = sbr.rel (%p1812) target = $region88
        $region87: #{tpu_custom_call.1} parent=83 // pred_region
          %s1815 = sand.u32 %s336, 1
          %s1816 = scalar_lea.sflag [#allocation3], %s1815
          %s1817 = sand.u32 %s336, 1
          %s1818 = smul.addr %s1817, 8
          %s1819 = scalar_lea.vmem [#allocation2], %s1818
          %1820 = dma.done %s1816, 128
        $region88: #{tpu_custom_call.1} parent=83 // pred_fallthru
          _
      $region84: #{tpu_custom_call.1} parent=5 // pred_fallthru
        _
    $region6: #{tpu_custom_call.1} parent=1 // loop_footer
      %s27 = sadd.s32 1, %s23
    $region7: #{tpu_custom_call.1} parent=1 // loop_footer_branch
      %22 = sbr.rel target = $region3
    $region8: #{tpu_custom_call.1} parent=1 // loop_exit
      _
    %1821 = vsyncpa [#allocation3], 1
    %s1822 = scalar_lea.sflag [#allocation3], 1
    %1823 = vsyncpa %s1822, 1

// kernel: tpu_custom_call.1
$region0: #{tpu_custom_call.1}
  #allocation0 [shape = 'u32[]', space=smem, size = 0x4, offset = 0x4, fixed_abs, tag = 'smem constant byte address 0x4 - core index']
  #allocation1 [shape = 'u32[144,128]{1,0:T(1,128)}', space=vmem, size = 0x12000, scoped, tag = 'internal scratch']
  %s0 = inlined_call_operand.vmem [shape: f32[2,8,32], index: 0, kind: input, shape index: {}]
  %s1 = inlined_call_operand.vmem [shape: f32[1,32], index: 1, kind: input, shape index: {}]
  %s2 = inlined_call_operand.vmem [shape: f32[1,32], index: 2, kind: input, shape index: {}]
  %s3 = inlined_call_operand.vmem [shape: f32[1,32], index: 3, kind: input, shape index: {}]
  %s4 = inlined_call_operand.vmem [shape: f32[1,32], index: 4, kind: input, shape index: {}]
  %s5 = inlined_call_operand.vmem [shape: f32[8,8], index: 5, kind: input, shape index: {}]
  %s6 = inlined_call_operand.vmem [shape: f32[32,96], index: 6, kind: input, shape index: {}]
  %s7 = inlined_call_operand.vmem [shape: f32[1,96], index: 7, kind: input, shape index: {}]
  %s8 = inlined_call_operand.vmem [shape: f32[32,32], index: 8, kind: input, shape index: {}]
  %s9 = inlined_call_operand.vmem [shape: f32[1,32], index: 9, kind: input, shape index: {}]
  %s10 = inlined_call_operand.vmem [shape: f32[32,128], index: 10, kind: input, shape index: {}]
  %s11 = inlined_call_operand.vmem [shape: f32[1,128], index: 11, kind: input, shape index: {}]
  %s12 = inlined_call_operand.vmem [shape: f32[128,32], index: 12, kind: input, shape index: {}]
  %s13 = inlined_call_operand.vmem [shape: f32[1,32], index: 13, kind: input, shape index: {}]
  %s14 = inlined_call_operand.hbm [shape: f32[2,8,32], index: 14, kind: output, shape index: {}]
  %s15 = sld [smem:[#allocation0]]
  $region89: #{tpu_custom_call.1} parent=0
    _
  %s17 = ssub.s32 1, %s15
  %s18 = scalar_select 0, %s17, %s15
  $region1: #{tpu_custom_call.1} parent=0
    #allocation2 [shape = 'u8[8192]{0}', space=vmem, size = 0x2000, scoped, tag = 'output window, operand 0']
    #allocation3 [shape = 's32[2]{0}', space=sflag, size = 0x8, scoped, tag = 'scoped memory for tpu_custom_call.1']
    %19 = vsyncpa [#allocation3], 0
    %s20 = scalar_lea.sflag [#allocation3], 1
    %21 = vsyncpa %s20, 0
    loop: start=0, step=1, limit=4
    $region2: #{tpu_custom_call.1} parent=1 // loop_pre_header
      _
    $region3: #{tpu_custom_call.1} parent=1 // loop_header
      %s23 = sphi 0, %s27
      %p24 = scmp.ge.s32.totalorder %s23, 4
      %s33 = sphi 0, %s35
      %s36 = sphi 0, %s33
      %s37 = sphi 0, %s36
      %s53 = sphi 0, %s37
      %s57 = sphi 0, %s57
      %s59 = sphi 0, %s57
      %s60 = sphi 0, %s59
      %s74 = sphi 0, %s60
      %s78 = sphi 0, %s78
      %s80 = sphi 0, %s78
      %s81 = sphi 0, %s80
      %s95 = sphi 0, %s81
      %s99 = sphi 0, %s99
      %s101 = sphi 0, %s99
      %s102 = sphi 0, %s101
      %s116 = sphi 0, %s102
      %s120 = sphi 0, %s120
      %s122 = sphi 0, %s120
      %s123 = sphi 0, %s122
      %s137 = sphi 0, %s123
      %s141 = sphi 0, %s141
      %s143 = sphi 0, %s141
      %s144 = sphi 0, %s143
      %s158 = sphi 0, %s144
      %s162 = sphi 0, %s162
      %s164 = sphi 0, %s162
      %s165 = sphi 0, %s164
      %s179 = sphi 0, %s165
      %s183 = sphi 0, %s183
      %s185 = sphi 0, %s183
      %s186 = sphi 0, %s185
      %s200 = sphi 0, %s186
      %s204 = sphi 0, %s204
      %s206 = sphi 0, %s204
      %s207 = sphi 0, %s206
      %s221 = sphi 0, %s207
      %s225 = sphi 0, %s225
      %s227 = sphi 0, %s225
      %s228 = sphi 0, %s227
      %s242 = sphi 0, %s228
      %s246 = sphi 0, %s246
      %s248 = sphi 0, %s246
      %s249 = sphi 0, %s248
      %s263 = sphi 0, %s249
      %s267 = sphi 0, %s267
      %s269 = sphi 0, %s267
      %s270 = sphi 0, %s269
      %s284 = sphi 0, %s270
      %s288 = sphi 0, %s288
      %s290 = sphi 0, %s288
      %s291 = sphi 0, %s290
      %s305 = sphi 0, %s291
      %s309 = sphi 0, %s309
      %s311 = sphi 0, %s309
      %s312 = sphi 0, %s311
      %s326 = sphi 0, %s312
      %s332 = sphi 0, %s334
      %s335 = sphi 0, %s332
      %s336 = sphi 0, %s335
      %s352 = sphi 0, %s336
    $region4: #{tpu_custom_call.1} parent=1 // loop_header_branch
      %26 = sbr.rel (%p24) target = $region8
    $region5: #{tpu_custom_call.1} parent=1 // loop_body
      %s28 = ssub.s32 %s23, 1
      %s29 = ssub.s32 %s23, 2
      %s30 = sadd.s32 %s23, 1
      %s31 = ssub.s32 %s23, %s30
      %p32 = scmp.eq.s32.totalorder %s31, 0
      %s34 = sadd.s32 %s33, 1
      %s35 = scalar_select %p32, %s33, %s34
      %p38 = pneg %p32
      %p39 = scmp.eq.s32.totalorder %s23, 1
      %p40 = por %p38, %p39
      %p41 = scmp.ne.s32.totalorder %s33, %s36
      %p42 = scmp.eq.s32.totalorder %s23, 0
      %p43 = por %p41, %p42
      %p44 = scmp.ne.s32.totalorder %s33, %s36
      %p45 = scmp.eq.s32.totalorder %s28, 1
      %p46 = por %p44, %p45
      %p47 = scmp.ne.s32.totalorder %s36, %s37
      %p48 = scmp.eq.s32.totalorder %s28, 0
      %p49 = por %p47, %p48
      %p50 = scmp.ne.s32.totalorder %s36, %s37
      %p51 = scmp.eq.s32.totalorder %s29, 1
      %p52 = por %p50, %p51
      %p54 = scmp.ne.s32.totalorder %s37, %s53
      %p55 = scmp.eq.s32.totalorder %s29, 0
      %p56 = por %p54, %p55
      %s58 = sadd.s32 %s57, 1
      %p61 = scmp.eq.s32.totalorder %s23, 1
      %p62 = scmp.ne.s32.totalorder %s57, %s59
      %p63 = scmp.eq.s32.totalorder %s23, 0
      %p64 = por %p62, %p63
      %p65 = scmp.ne.s32.totalorder %s57, %s59
      %p66 = scmp.eq.s32.totalorder %s28, 1
      %p67 = por %p65, %p66
      %p68 = scmp.ne.s32.totalorder %s59, %s60
      %p69 = scmp.eq.s32.totalorder %s28, 0
      %p70 = por %p68, %p69
      %p71 = scmp.ne.s32.totalorder %s59, %s60
      %p72 = scmp.eq.s32.totalorder %s29, 1
      %p73 = por %p71, %p72
      %p75 = scmp.ne.s32.totalorder %s60, %s74
      %p76 = scmp.eq.s32.totalorder %s29, 0
      %p77 = por %p75, %p76
      %s79 = sadd.s32 %s78, 1
      %p82 = scmp.eq.s32.totalorder %s23, 1
      %p83 = scmp.ne.s32.totalorder %s78, %s80
      %p84 = scmp.eq.s32.totalorder %s23, 0
      %p85 = por %p83, %p84
      %p86 = scmp.ne.s32.totalorder %s78, %s80
      %p87 = scmp.eq.s32.totalorder %s28, 1
      %p88 = por %p86, %p87
      %p89 = scmp.ne.s32.totalorder %s80, %s81
      %p90 = scmp.eq.s32.totalorder %s28, 0
      %p91 = por %p89, %p90
      %p92 = scmp.ne.s32.totalorder %s80, %s81
      %p93 = scmp.eq.s32.totalorder %s29, 1
      %p94 = por %p92, %p93
      %p96 = scmp.ne.s32.totalorder %s81, %s95
      %p97 = scmp.eq.s32.totalorder %s29, 0
      %p98 = por %p96, %p97
      %s100 = sadd.s32 %s99, 1
      %p103 = scmp.eq.s32.totalorder %s23, 1
      %p104 = scmp.ne.s32.totalorder %s99, %s101
      %p105 = scmp.eq.s32.totalorder %s23, 0
      %p106 = por %p104, %p105
      %p107 = scmp.ne.s32.totalorder %s99, %s101
      %p108 = scmp.eq.s32.totalorder %s28, 1
      %p109 = por %p107, %p108
      %p110 = scmp.ne.s32.totalorder %s101, %s102
      %p111 = scmp.eq.s32.totalorder %s28, 0
      %p112 = por %p110, %p111
      %p113 = scmp.ne.s32.totalorder %s101, %s102
      %p114 = scmp.eq.s32.totalorder %s29, 1
      %p115 = por %p113, %p114
      %p117 = scmp.ne.s32.totalorder %s102, %s116
      %p118 = scmp.eq.s32.totalorder %s29, 0
      %p119 = por %p117, %p118
      %s121 = sadd.s32 %s120, 1
      %p124 = scmp.eq.s32.totalorder %s23, 1
      %p125 = scmp.ne.s32.totalorder %s120, %s122
      %p126 = scmp.eq.s32.totalorder %s23, 0
      %p127 = por %p125, %p126
      %p128 = scmp.ne.s32.totalorder %s120, %s122
      %p129 = scmp.eq.s32.totalorder %s28, 1
      %p130 = por %p128, %p129
      %p131 = scmp.ne.s32.totalorder %s122, %s123
      %p132 = scmp.eq.s32.totalorder %s28, 0
      %p133 = por %p131, %p132
      %p134 = scmp.ne.s32.totalorder %s122, %s123
      %p135 = scmp.eq.s32.totalorder %s29, 1
      %p136 = por %p134, %p135
      %p138 = scmp.ne.s32.totalorder %s123, %s137
      %p139 = scmp.eq.s32.totalorder %s29, 0
      %p140 = por %p138, %p139
      %s142 = sadd.s32 %s141, 1
      %p145 = scmp.eq.s32.totalorder %s23, 1
      %p146 = scmp.ne.s32.totalorder %s141, %s143
      %p147 = scmp.eq.s32.totalorder %s23, 0
      %p148 = por %p146, %p147
      %p149 = scmp.ne.s32.totalorder %s141, %s143
      %p150 = scmp.eq.s32.totalorder %s28, 1
      %p151 = por %p149, %p150
      %p152 = scmp.ne.s32.totalorder %s143, %s144
      %p153 = scmp.eq.s32.totalorder %s28, 0
      %p154 = por %p152, %p153
      %p155 = scmp.ne.s32.totalorder %s143, %s144
      %p156 = scmp.eq.s32.totalorder %s29, 1
      %p157 = por %p155, %p156
      %p159 = scmp.ne.s32.totalorder %s144, %s158
      %p160 = scmp.eq.s32.totalorder %s29, 0
      %p161 = por %p159, %p160
      %s163 = sadd.s32 %s162, 1
      %p166 = scmp.eq.s32.totalorder %s23, 1
      %p167 = scmp.ne.s32.totalorder %s162, %s164
      %p168 = scmp.eq.s32.totalorder %s23, 0
      %p169 = por %p167, %p168
      %p170 = scmp.ne.s32.totalorder %s162, %s164
      %p171 = scmp.eq.s32.totalorder %s28, 1
      %p172 = por %p170, %p171
      %p173 = scmp.ne.s32.totalorder %s164, %s165
      %p174 = scmp.eq.s32.totalorder %s28, 0
      %p175 = por %p173, %p174
      %p176 = scmp.ne.s32.totalorder %s164, %s165
      %p177 = scmp.eq.s32.totalorder %s29, 1
      %p178 = por %p176, %p177
      %p180 = scmp.ne.s32.totalorder %s165, %s179
      %p181 = scmp.eq.s32.totalorder %s29, 0
      %p182 = por %p180, %p181
      %s184 = sadd.s32 %s183, 1
      %p187 = scmp.eq.s32.totalorder %s23, 1
      %p188 = scmp.ne.s32.totalorder %s183, %s185
      %p189 = scmp.eq.s32.totalorder %s23, 0
      %p190 = por %p188, %p189
      %p191 = scmp.ne.s32.totalorder %s183, %s185
      %p192 = scmp.eq.s32.totalorder %s28, 1
      %p193 = por %p191, %p192
      %p194 = scmp.ne.s32.totalorder %s185, %s186
      %p195 = scmp.eq.s32.totalorder %s28, 0
      %p196 = por %p194, %p195
      %p197 = scmp.ne.s32.totalorder %s185, %s186
      %p198 = scmp.eq.s32.totalorder %s29, 1
      %p199 = por %p197, %p198
      %p201 = scmp.ne.s32.totalorder %s186, %s200
      %p202 = scmp.eq.s32.totalorder %s29, 0
      %p203 = por %p201, %p202
      %s205 = sadd.s32 %s204, 1
      %p208 = scmp.eq.s32.totalorder %s23, 1
      %p209 = scmp.ne.s32.totalorder %s204, %s206
      %p210 = scmp.eq.s32.totalorder %s23, 0
      %p211 = por %p209, %p210
      %p212 = scmp.ne.s32.totalorder %s204, %s206
      %p213 = scmp.eq.s32.totalorder %s28, 1
      %p214 = por %p212, %p213
      %p215 = scmp.ne.s32.totalorder %s206, %s207
      %p216 = scmp.eq.s32.totalorder %s28, 0
      %p217 = por %p215, %p216
      %p218 = scmp.ne.s32.totalorder %s206, %s207
      %p219 = scmp.eq.s32.totalorder %s29, 1
      %p220 = por %p218, %p219
      %p222 = scmp.ne.s32.totalorder %s207, %s221
      %p223 = scmp.eq.s32.totalorder %s29, 0
      %p224 = por %p222, %p223
      %s226 = sadd.s32 %s225, 1
      %p229 = scmp.eq.s32.totalorder %s23, 1
      %p230 = scmp.ne.s32.totalorder %s225, %s227
      %p231 = scmp.eq.s32.totalorder %s23, 0
      %p232 = por %p230, %p231
      %p233 = scmp.ne.s32.totalorder %s225, %s227
      %p234 = scmp.eq.s32.totalorder %s28, 1
      %p235 = por %p233, %p234
      %p236 = scmp.ne.s32.totalorder %s227, %s228
      %p237 = scmp.eq.s32.totalorder %s28, 0
      %p238 = por %p236, %p237
      %p239 = scmp.ne.s32.totalorder %s227, %s228
      %p240 = scmp.eq.s32.totalorder %s29, 1
      %p241 = por %p239, %p240
      %p243 = scmp.ne.s32.totalorder %s228, %s242
      %p244 = scmp.eq.s32.totalorder %s29, 0
      %p245 = por %p243, %p244
      %s247 = sadd.s32 %s246, 1
      %p250 = scmp.eq.s32.totalorder %s23, 1
      %p251 = scmp.ne.s32.totalorder %s246, %s248
      %p252 = scmp.eq.s32.totalorder %s23, 0
      %p253 = por %p251, %p252
      %p254 = scmp.ne.s32.totalorder %s246, %s248
      %p255 = scmp.eq.s32.totalorder %s28, 1
      %p256 = por %p254, %p255
      %p257 = scmp.ne.s32.totalorder %s248, %s249
      %p258 = scmp.eq.s32.totalorder %s28, 0
      %p259 = por %p257, %p258
      %p260 = scmp.ne.s32.totalorder %s248, %s249
      %p261 = scmp.eq.s32.totalorder %s29, 1
      %p262 = por %p260, %p261
      %p264 = scmp.ne.s32.totalorder %s249, %s263
      %p265 = scmp.eq.s32.totalorder %s29, 0
      %p266 = por %p264, %p265
      %s268 = sadd.s32 %s267, 1
      %p271 = scmp.eq.s32.totalorder %s23, 1
      %p272 = scmp.ne.s32.totalorder %s267, %s269
      %p273 = scmp.eq.s32.totalorder %s23, 0
      %p274 = por %p272, %p273
      %p275 = scmp.ne.s32.totalorder %s267, %s269
      %p276 = scmp.eq.s32.totalorder %s28, 1
      %p277 = por %p275, %p276
      %p278 = scmp.ne.s32.totalorder %s269, %s270
      %p279 = scmp.eq.s32.totalorder %s28, 0
      %p280 = por %p278, %p279
      %p281 = scmp.ne.s32.totalorder %s269, %s270
      %p282 = scmp.eq.s32.totalorder %s29, 1
      %p283 = por %p281, %p282
      %p285 = scmp.ne.s32.totalorder %s270, %s284
      %p286 = scmp.eq.s32.totalorder %s29, 0
      %p287 = por %p285, %p286
      %s289 = sadd.s32 %s288, 1
      %p292 = scmp.eq.s32.totalorder %s23, 1
      %p293 = scmp.ne.s32.totalorder %s288, %s290
      %p294 = scmp.eq.s32.totalorder %s23, 0
      %p295 = por %p293, %p294
      %p296 = scmp.ne.s32.totalorder %s288, %s290
      %p297 = scmp.eq.s32.totalorder %s28, 1
      %p298 = por %p296, %p297
      %p299 = scmp.ne.s32.totalorder %s290, %s291
      %p300 = scmp.eq.s32.totalorder %s28, 0
      %p301 = por %p299, %p300
      %p302 = scmp.ne.s32.totalorder %s290, %s291
      %p303 = scmp.eq.s32.totalorder %s29, 1
      %p304 = por %p302, %p303
      %p306 = scmp.ne.s32.totalorder %s291, %s305
      %p307 = scmp.eq.s32.totalorder %s29, 0
      %p308 = por %p306, %p307
      %s310 = sadd.s32 %s309, 1
      %p313 = scmp.eq.s32.totalorder %s23, 1
      %p314 = scmp.ne.s32.totalorder %s309, %s311
      %p315 = scmp.eq.s32.totalorder %s23, 0
      %p316 = por %p314, %p315
      %p317 = scmp.ne.s32.totalorder %s309, %s311
      %p318 = scmp.eq.s32.totalorder %s28, 1
      %p319 = por %p317, %p318
      %p320 = scmp.ne.s32.totalorder %s311, %s312
      %p321 = scmp.eq.s32.totalorder %s28, 0
      %p322 = por %p320, %p321
      %p323 = scmp.ne.s32.totalorder %s311, %s312
      %p324 = scmp.eq.s32.totalorder %s29, 1
      %p325 = por %p323, %p324
      %p327 = scmp.ne.s32.totalorder %s312, %s326
      %p328 = scmp.eq.s32.totalorder %s29, 0
      %p329 = por %p327, %p328
      %s330 = ssub.s32 %s23, %s30
      %p331 = scmp.eq.s32.totalorder %s330, 0
      %s333 = sadd.s32 %s332, 1
      %s334 = scalar_select %p331, %s332, %s333
      %p337 = pneg %p331
      %p338 = scmp.eq.s32.totalorder %s23, 1
      %p339 = por %p337, %p338
      %p340 = scmp.ne.s32.totalorder %s332, %s335
      %p341 = scmp.eq.s32.totalorder %s23, 0
      %p342 = por %p340, %p341
      %p343 = scmp.ne.s32.totalorder %s332, %s335
      %p344 = scmp.eq.s32.totalorder %s28, 1
      %p345 = por %p343, %p344
      %p346 = scmp.ne.s32.totalorder %s335, %s336
      %p347 = scmp.eq.s32.totalorder %s28, 0
      %p348 = por %p346, %p347
      %p349 = scmp.ne.s32.totalorder %s335, %s336
      %p350 = scmp.eq.s32.totalorder %s29, 1
      %p351 = por %p349, %p350
      %p353 = scmp.ne.s32.totalorder %s336, %s352
      %p354 = scmp.eq.s32.totalorder %s29, 0
      %p355 = por %p353, %p354
      %p356 = scmp.le.s32.totalorder 1, %s23
      %p357 = scmp.lt.s32.totalorder %s23, 3
      %p358 = pnand %p356, %p357
      %p359 = pneg %p358
      // Predicated region
      $region9: #{tpu_custom_call.1} parent=5 // pred_check
        _
      $region10: #{tpu_custom_call.1} parent=5 // pred_check_branch
        %361 = sbr.rel (%p358) target = $region12
      $region11: #{tpu_custom_call.1} parent=5 // pred_region
        %s362 = ssub.s32 %s23, 1
        // Predicated region
        $region13: #{tpu_custom_call.1} parent=11 // pred_check
          %p363 = pneg %p70
        $region14: #{tpu_custom_call.1} parent=11 // pred_check_branch
          %365 = sbr.rel (%p363) target = $region16
        $region15: #{tpu_custom_call.1} parent=11 // pred_region
          _
        $region16: #{tpu_custom_call.1} parent=11 // pred_fallthru
          _
        // Predicated region
        $region17: #{tpu_custom_call.1} parent=11 // pred_check
          %p366 = pneg %p91
        $region18: #{tpu_custom_call.1} parent=11 // pred_check_branch
          %368 = sbr.rel (%p366) target = $region20
        $region19: #{tpu_custom_call.1} parent=11 // pred_region
          _
        $region20: #{tpu_custom_call.1} parent=11 // pred_fallthru
          _
        // Predicated region
        $region21: #{tpu_custom_call.1} parent=11 // pred_check
          %p369 = pneg %p112
        $region22: #{tpu_custom_call.1} parent=11 // pred_check_branch
          %371 = sbr.rel (%p369) target = $region24
        $region23: #{tpu_custom_call.1} parent=11 // pred_region
          _
        $region24: #{tpu_custom_call.1} parent=11 // pred_fallthru
          _
        // Predicated region
        $region25: #{tpu_custom_call.1} parent=11 // pred_check
          %p372 = pneg %p133
        $region26: #{tpu_custom_call.1} parent=11 // pred_check_branch
          %374 = sbr.rel (%p372) target = $region28
        $region27: #{tpu_custom_call.1} parent=11 // pred_region
          _
        $region28: #{tpu_custom_call.1} parent=11 // pred_fallthru
          _
        // Predicated region
        $region29: #{tpu_custom_call.1} parent=11 // pred_check
          %p375 = pneg %p154
        $region30: #{tpu_custom_call.1} parent=11 // pred_check_branch
          %377 = sbr.rel (%p375) target = $region32
        $region31: #{tpu_custom_call.1} parent=11 // pred_region
          _
        $region32: #{tpu_custom_call.1} parent=11 // pred_fallthru
          _
        // Predicated region
        $region33: #{tpu_custom_call.1} parent=11 // pred_check
          %p378 = pneg %p175
        $region34: #{tpu_custom_call.1} parent=11 // pred_check_branch
          %380 = sbr.rel (%p378) target = $region36
        $region35: #{tpu_custom_call.1} parent=11 // pred_region
          _
        $region36: #{tpu_custom_call.1} parent=11 // pred_fallthru
          _
        // Predicated region
        $region37: #{tpu_custom_call.1} parent=11 // pred_check
          %p381 = pneg %p196
        $region38: #{tpu_custom_call.1} parent=11 // pred_check_branch
          %383 = sbr.rel (%p381) target = $region40
        $region39: #{tpu_custom_call.1} parent=11 // pred_region
          _
        $region40: #{tpu_custom_call.1} parent=11 // pred_fallthru
          _
        // Predicated region
        $region41: #{tpu_custom_call.1} parent=11 // pred_check
          %p384 = pneg %p217
        $region42: #{tpu_custom_call.1} parent=11 // pred_check_branch
          %386 = sbr.rel (%p384) target = $region44
        $region43: #{tpu_custom_call.1} parent=11 // pred_region
          _
        $region44: #{tpu_custom_call.1} parent=11 // pred_fallthru
          _
        // Predicated region
        $region45: #{tpu_custom_call.1} parent=11 // pred_check
          %p387 = pneg %p238
        $region46: #{tpu_custom_call.1} parent=11 // pred_check_branch
          %389 = sbr.rel (%p387) target = $region48
        $region47: #{tpu_custom_call.1} parent=11 // pred_region
          _
        $region48: #{tpu_custom_call.1} parent=11 // pred_fallthru
          _
        // Predicated region
        $region49: #{tpu_custom_call.1} parent=11 // pred_check
          %p390 = pneg %p259
        $region50: #{tpu_custom_call.1} parent=11 // pred_check_branch
          %392 = sbr.rel (%p390) target = $region52
        $region51: #{tpu_custom_call.1} parent=11 // pred_region
          _
        $region52: #{tpu_custom_call.1} parent=11 // pred_fallthru
          _
        // Predicated region
        $region53: #{tpu_custom_call.1} parent=11 // pred_check
          %p393 = pneg %p280
        $region54: #{tpu_custom_call.1} parent=11 // pred_check_branch
          %395 = sbr.rel (%p393) target = $region56
        $region55: #{tpu_custom_call.1} parent=11 // pred_region
          _
        $region56: #{tpu_custom_call.1} parent=11 // pred_fallthru
          _
        // Predicated region
        $region57: #{tpu_custom_call.1} parent=11 // pred_check
          %p396 = pneg %p301
        $region58: #{tpu_custom_call.1} parent=11 // pred_check_branch
          %398 = sbr.rel (%p396) target = $region60
        $region59: #{tpu_custom_call.1} parent=11 // pred_region
          _
        $region60: #{tpu_custom_call.1} parent=11 // pred_fallthru
          _
        // Predicated region
        $region61: #{tpu_custom_call.1} parent=11 // pred_check
          %p399 = pneg %p322
        $region62: #{tpu_custom_call.1} parent=11 // pred_check_branch
          %401 = sbr.rel (%p399) target = $region64
        $region63: #{tpu_custom_call.1} parent=11 // pred_region
          _
        $region64: #{tpu_custom_call.1} parent=11 // pred_fallthru
          _
      $region12: #{tpu_custom_call.1} parent=5 // pred_fallthru
        _
      %p402 = scmp.lt.s32.totalorder %s23, 2
      // Predicated region
      $region65: #{tpu_custom_call.1} parent=5 // pred_check
        %p403 = pneg %p402
      $region66: #{tpu_custom_call.1} parent=5 // pred_check_branch
        %405 = sbr.rel (%p403) target = $region68
      $region67: #{tpu_custom_call.1} parent=5 // pred_region
        // Predicated region
        $region69: #{tpu_custom_call.1} parent=67 // pred_check
          %p406 = pneg %p43
        $region70: #{tpu_custom_call.1} parent=67 // pred_check_branch
          %408 = sbr.rel (%p406) target = $region72
        $region71: #{tpu_custom_call.1} parent=67 // pred_region
          %p409 = scmp.lt.s32.totalorder %s23, 1
          %s410 = scalar_select %p409, %s23, 1
          %s411 = smul.addr %s410, 8
          %s412 = scalar_lea.vmem %s0, %s411
        $region72: #{tpu_custom_call.1} parent=67 // pred_fallthru
          _
      $region68: #{tpu_custom_call.1} parent=5 // pred_fallthru
        _
      %p413 = scmp.le.s32.totalorder 1, %s23
      %p414 = scmp.lt.s32.totalorder %s23, 3
      %p415 = pnand %p413, %p414
      %p416 = pneg %p415
      // Predicated region
      $region73: #{tpu_custom_call.1} parent=5 // pred_check
        _
      $region74: #{tpu_custom_call.1} parent=5 // pred_check_branch
        %418 = sbr.rel (%p415) target = $region76
      $region75: #{tpu_custom_call.1} parent=5 // pred_region
        %s419 = ssub.s32 %s23, 1
        %p420 = scmp.lt.s32.totalorder %s28, 1
        %s421 = scalar_select %p420, %s28, 1
        %s422 = smul.addr %s421, 8
        %s423 = scalar_lea.vmem %s0, %s422
        %p424 = pneg %p49
        %p425 = pneg %p46
        %p426 = pneg %p70
        %p427 = pneg %p67
        %p428 = pneg %p91
        %p429 = pneg %p88
        %p430 = pneg %p112
        %p431 = pneg %p109
        %p432 = pneg %p133
        %p433 = pneg %p130
        %p434 = pneg %p154
        %p435 = pneg %p151
        %p436 = pneg %p175
        %p437 = pneg %p172
        %p438 = pneg %p196
        %p439 = pneg %p193
        %p440 = pneg %p217
        %p441 = pneg %p214
        %p442 = pneg %p238
        %p443 = pneg %p235
        %p444 = pneg %p259
        %p445 = pneg %p256
        %p446 = pneg %p280
        %p447 = pneg %p277
        %p448 = pneg %p301
        %p449 = pneg %p298
        %p450 = pneg %p322
        %p451 = pneg %p319
        %p452 = pneg %p348
        %p453 = pneg %p345
        %s454 = sand.u32 %s335, 1
        %s455 = scalar_lea.sflag [#allocation3], %s454
        %s456 = sand.u32 %s335, 1
        %s457 = smul.addr %s456, 8
        %s458 = scalar_lea.vmem [#allocation2], %s457
        %p459 = scmp.lt.s32.totalorder %s28, 1
        %s460 = scalar_select %p459, %s28, 1
        %s461 = smul.addr %s460, 8
        %s462 = scalar_lea.vmem %s0, %s461
        %v463 = vld [vmem:[%s462] sm:$0xff]
        %v464 = vld [vmem:[%s1] sm:$0x1]
        %v465 = vld [vmem:[%s2] sm:$0x1]
        %vm466 = vcmask 261120
        %v467 = vsel %vm466, %v463, 0.0
        %468 = vadd.xlane.f32.xlu0 %v467
        %v469 = vpop.xlane.xlu0 %468
        %v470 = vrcp.pop 32.0
        %v471 = vmul.f32 %v469, %v470
        %v472 = vmul.f32 %v463, %v463
        %v473 = vsel %vm466, %v472, 0.0
        %474 = vadd.xlane.f32.xlu0 %v473
        %v475 = vpop.xlane.xlu0 %474
        %v476 = vmul.f32 %v475, %v470
        %v477 = vmul.f32 %v471, %v471
        %v478 = vsub.f32 %v476, %v477
        %v479 = vmax.f32 %v478, 0.0
        %v480 = vadd.f32 %v479, 1e-05
        %v481 = vrsqrt.pop %v480
        %v482 = vsub.f32 %v463, %v471
        %v483 = vmul.f32 %v482, %v481
        %v485 = vlaneseq
        %v486 = vshrl.u32 %v485, 7
        %v487 = vsub.s32 0, %v486
        %v488 = vrot.slane %v464, %v487
        %v490 = vmul.f32 %v483, %v488
        %v492 = vlaneseq
        %v493 = vshrl.u32 %v492, 7
        %v494 = vsub.s32 0, %v493
        %v495 = vrot.slane %v465, %v494
        %v497 = vadd.f32 %v490, %v495
        %v498 = vld [vmem:[%s6] sm:$0xff]
        %v499 = vld [vmem:[%s6 + $0x8] sm:$0xff]
        %v500 = vld [vmem:[%s6 + $0x10] sm:$0xff]
        %v501 = vld [vmem:[%s6 + $0x18] sm:$0xff]
        %v502 = vld [vmem:[%s7] sm:$0x1]
        %v504 = vlaneseq
        %v505 = vshrl.u32 %v504, 7
        %v506 = vsub.s32 0, %v505
        %v507 = vrot.slane %v502, %v506
        %v510 = vsel %vm466, %v497, 0
        %512 = vmatprep.subr.mxu0 0.0
        %513 = vmatpush1.msra.mxu0 %v498
        %514 = vmatprep.subr.mxu0 0.0
        %515 = vmatpush1.msra.mxu0 %v499
        %516 = vmatprep.subr.mxu0 0.0
        %517 = vmatpush1.msra.mxu0 %v500
        %518 = vmatprep.subr.mxu0 0.0
        %519 = vmatpush1.msra.mxu0 %v501
        %520 = vmatprep.subr.mxu0 0.0
        %521 = vmatpush1.msra.mxu0 0.0
        %522 = vmatprep.subr.mxu0 0.0
        %523 = vmatpush1.msra.mxu0 0.0
        %524 = vmatprep.subr.mxu0 0.0
        %525 = vmatpush1.msra.mxu0 0.0
        %526 = vmatprep.subr.mxu0 0.0
        %527 = vmatpush1.msra.mxu0 0.0
        %528 = vmatprep.subr.mxu0 0.0
        %529 = vmatpush1.msra.mxu0 0.0
        %530 = vmatprep.subr.mxu0 0.0
        %531 = vmatpush1.msra.mxu0 0.0
        %532 = vmatprep.subr.mxu0 0.0
        %533 = vmatpush1.msra.mxu0 0.0
        %534 = vmatprep.subr.mxu0 0.0
        %535 = vmatpush1.msra.mxu0 0.0
        %536 = vmatprep.subr.mxu0 0.0
        %537 = vmatpush1.msra.mxu0 0.0
        %538 = vmatprep.subr.mxu0 0.0
        %539 = vmatpush1.msra.mxu0 0.0
        %540 = vmatprep.subr.mxu0 0.0
        %541 = vmatpush1.msra.mxu0 0.0
        %542 = vmatprep.subr.mxu0 0.0
        %543 = vmatpush1.msra.mxu0 0.0
        %544 = vmatprep.subr.mxu0 0.0
        %545 = vmatpush1.msra.mxu0 0.0
        %546 = vmatprep.subr.mxu0 0.0
        %547 = vmatpush1.msra.mxu0 0.0
        %548 = vmatprep.subr.mxu0 0.0
        %549 = vmatpush1.msra.mxu0 0.0
        %550 = vmatprep.subr.mxu0 0.0
        %551 = vmatpush1.msra.mxu0 0.0
        %552 = vmatprep.subr.mxu0 0.0
        %553 = vmatpush1.msra.mxu0 0.0
        %554 = vmatprep.subr.mxu0 0.0
        %555 = vmatpush1.msra.mxu0 0.0
        %556 = vmatprep.subr.mxu0 0.0
        %557 = vmatpush1.msra.mxu0 0.0
        %558 = vmatprep.subr.mxu0 0.0
        %559 = vmatpush1.msra.mxu0 0.0
        %560 = vmatprep.subr.mxu0 0.0
        %561 = vmatpush1.msra.mxu0 0.0
        %562 = vmatprep.subr.mxu0 0.0
        %563 = vmatpush1.msra.mxu0 0.0
        %564 = vmatprep.subr.mxu0 0.0
        %565 = vmatpush1.msra.mxu0 0.0
        %566 = vmatprep.subr.mxu0 0.0
        %567 = vmatpush1.msra.mxu0 0.0
        %568 = vmatprep.subr.mxu0 0.0
        %569 = vmatpush1.msra.mxu0 0.0
        %570 = vmatprep.subr.mxu0 0.0
        %571 = vmatpush1.msra.mxu0 0.0
        %572 = vmatprep.subr.mxu0 0.0
        %573 = vmatpush1.msra.mxu0 0.0
        %574 = vmatprep.subr.mxu0 0.0
        %575 = vmatpush1.msra.mxu0 0.0
        %576 = vmatprep.mubr.f32.mxu0 0.0
        %577 = vmatmul.mubr.f32.gmra.mrb[0].mxu0 %v510
        %v578 = vpop.f32.mrb[0].mxu0
        %v579 = vadd.f32 %v507, %v578
        %v580 = vpop.f32.mrb[0].mxu0
        %581 = vdwg.mxu0
        %v582 = vld [vmem:[%s5] sm:$0xff]
        %584 = vrot.lane.b32.xlu0 %v579, 96
        %v585 = vpop.permute.xlu0 %584
        %vm586 = vcmask 64512
        %v587 = vsel %vm586, %v579, 0
        %v589 = vsel %vm586, %v585, 0
        %591 = vmatprep.subr.mxu0 0.0
        %592 = vmatpush1.xpose.msra.mxu0 %v589
        %593 = vmatprep.subr.mxu0 0.0
        %594 = vmatpush1.xpose.msra.mxu0 0.0
        %595 = vmatprep.subr.mxu0 0.0
        %596 = vmatpush1.xpose.msra.mxu0 0.0
        %597 = vmatprep.subr.mxu0 0.0
        %598 = vmatpush1.xpose.msra.mxu0 0.0
        %599 = vmatprep.subr.mxu0 0.0
        %600 = vmatpush1.xpose.msra.mxu0 0.0
        %601 = vmatprep.subr.mxu0 0.0
        %602 = vmatpush1.xpose.msra.mxu0 0.0
        %603 = vmatprep.subr.mxu0 0.0
        %604 = vmatpush1.xpose.msra.mxu0 0.0
        %605 = vmatprep.subr.mxu0 0.0
        %606 = vmatpush1.xpose.msra.mxu0 0.0
        %607 = vmatprep.subr.mxu0 0.0
        %608 = vmatpush1.xpose.msra.mxu0 0.0
        %609 = vmatprep.subr.mxu0 0.0
        %610 = vmatpush1.xpose.msra.mxu0 0.0
        %611 = vmatprep.subr.mxu0 0.0
        %612 = vmatpush1.xpose.msra.mxu0 0.0
        %613 = vmatprep.subr.mxu0 0.0
        %614 = vmatpush1.xpose.msra.mxu0 0.0
        %615 = vmatprep.subr.mxu0 0.0
        %616 = vmatpush1.xpose.msra.mxu0 0.0
        %617 = vmatprep.subr.mxu0 0.0
        %618 = vmatpush1.xpose.msra.mxu0 0.0
        %619 = vmatprep.subr.mxu0 0.0
        %620 = vmatpush1.xpose.msra.mxu0 0.0
        %621 = vmatprep.subr.mxu0 0.0
        %622 = vmatpush1.xpose.msra.mxu0 0.0
        %623 = vmatprep.subr.mxu0 0.0
        %624 = vmatpush1.xpose.msra.mxu0 0.0
        %625 = vmatprep.subr.mxu0 0.0
        %626 = vmatpush1.xpose.msra.mxu0 0.0
        %627 = vmatprep.subr.mxu0 0.0
        %628 = vmatpush1.xpose.msra.mxu0 0.0
        %629 = vmatprep.subr.mxu0 0.0
        %630 = vmatpush1.xpose.msra.mxu0 0.0
        %631 = vmatprep.subr.mxu0 0.0
        %632 = vmatpush1.xpose.msra.mxu0 0.0
        %633 = vmatprep.subr.mxu0 0.0
        %634 = vmatpush1.xpose.msra.mxu0 0.0
        %635 = vmatprep.subr.mxu0 0.0
        %636 = vmatpush1.xpose.msra.mxu0 0.0
        %637 = vmatprep.subr.mxu0 0.0
        %638 = vmatpush1.xpose.msra.mxu0 0.0
        %639 = vmatprep.subr.mxu0 0.0
        %640 = vmatpush1.xpose.msra.mxu0 0.0
        %641 = vmatprep.subr.mxu0 0.0
        %642 = vmatpush1.xpose.msra.mxu0 0.0
        %643 = vmatprep.subr.mxu0 0.0
        %644 = vmatpush1.xpose.msra.mxu0 0.0
        %645 = vmatprep.subr.mxu0 0.0
        %646 = vmatpush1.xpose.msra.mxu0 0.0
        %647 = vmatprep.subr.mxu0 0.0
        %648 = vmatpush1.xpose.msra.mxu0 0.0
        %649 = vmatprep.subr.mxu0 0.0
        %650 = vmatpush1.xpose.msra.mxu0 0.0
        %651 = vmatprep.subr.mxu0 0.0
        %652 = vmatpush1.xpose.msra.mxu0 0.0
        %653 = vmatprep.subr.mxu0 0.0
        %654 = vmatpush1.xpose.msra.mxu0 0.0
        %655 = vmatprep.mubr.f32.mxu0 0.0
        %656 = vmatmul.mubr.f32.gmra.mrb[0].mxu0 %v587
        %v657 = vpop.f32.mrb[0].mxu0
        %v658 = vadd.f32 %v582, %v657
        %v659 = vpop.f32.mrb[0].mxu0
        %660 = vdwg.mxu0
        %v661 = vsel %vm586, %v658, -inf
        %662 = vmax.xlane.f32.xlu0 %v661
        %v663 = vpop.xlane.xlu0 %662
        %v664 = vsub.f32 %v658, %v663
        %v665 = vmul.f32 %v664, 1.442695
        %v666 = vpow.pop %v665
        %v667 = vsel %vm586, %v666, 0.0
        %668 = vadd.xlane.f32.xlu0 %v667
        %v669 = vpop.xlane.xlu0 %668
        %670 = vrot.lane.b32.xlu0 %v579, 64
        %v671 = vpop.permute.xlu0 %670
        %v674 = vsel %vm586, %v666, 0
        %676 = vmatprep.subr.mxu0 0.0
        %677 = vmatpush1.msra.mxu0 %v671
        %678 = vmatprep.subr.mxu0 0.0
        %679 = vmatpush1.msra.mxu0 0.0
        %680 = vmatprep.subr.mxu0 0.0
        %681 = vmatpush1.msra.mxu0 0.0
        %682 = vmatprep.subr.mxu0 0.0
        %683 = vmatpush1.msra.mxu0 0.0
        %684 = vmatprep.subr.mxu0 0.0
        %685 = vmatpush1.msra.mxu0 0.0
        %686 = vmatprep.subr.mxu0 0.0
        %687 = vmatpush1.msra.mxu0 0.0
        %688 = vmatprep.subr.mxu0 0.0
        %689 = vmatpush1.msra.mxu0 0.0
        %690 = vmatprep.subr.mxu0 0.0
        %691 = vmatpush1.msra.mxu0 0.0
        %692 = vmatprep.subr.mxu0 0.0
        %693 = vmatpush1.msra.mxu0 0.0
        %694 = vmatprep.subr.mxu0 0.0
        %695 = vmatpush1.msra.mxu0 0.0
        %696 = vmatprep.subr.mxu0 0.0
        %697 = vmatpush1.msra.mxu0 0.0
        %698 = vmatprep.subr.mxu0 0.0
        %699 = vmatpush1.msra.mxu0 0.0
        %700 = vmatprep.subr.mxu0 0.0
        %701 = vmatpush1.msra.mxu0 0.0
        %702 = vmatprep.subr.mxu0 0.0
        %703 = vmatpush1.msra.mxu0 0.0
        %704 = vmatprep.subr.mxu0 0.0
        %705 = vmatpush1.msra.mxu0 0.0
        %706 = vmatprep.subr.mxu0 0.0
        %707 = vmatpush1.msra.mxu0 0.0
        %708 = vmatprep.subr.mxu0 0.0
        %709 = vmatpush1.msra.mxu0 0.0
        %710 = vmatprep.subr.mxu0 0.0
        %711 = vmatpush1.msra.mxu0 0.0
        %712 = vmatprep.subr.mxu0 0.0
        %713 = vmatpush1.msra.mxu0 0.0
        %714 = vmatprep.subr.mxu0 0.0
        %715 = vmatpush1.msra.mxu0 0.0
        %716 = vmatprep.subr.mxu0 0.0
        %717 = vmatpush1.msra.mxu0 0.0
        %718 = vmatprep.subr.mxu0 0.0
        %719 = vmatpush1.msra.mxu0 0.0
        %720 = vmatprep.subr.mxu0 0.0
        %721 = vmatpush1.msra.mxu0 0.0
        %722 = vmatprep.subr.mxu0 0.0
        %723 = vmatpush1.msra.mxu0 0.0
        %724 = vmatprep.subr.mxu0 0.0
        %725 = vmatpush1.msra.mxu0 0.0
        %726 = vmatprep.subr.mxu0 0.0
        %727 = vmatpush1.msra.mxu0 0.0
        %728 = vmatprep.subr.mxu0 0.0
        %729 = vmatpush1.msra.mxu0 0.0
        %730 = vmatprep.subr.mxu0 0.0
        %731 = vmatpush1.msra.mxu0 0.0
        %732 = vmatprep.subr.mxu0 0.0
        %733 = vmatpush1.msra.mxu0 0.0
        %734 = vmatprep.subr.mxu0 0.0
        %735 = vmatpush1.msra.mxu0 0.0
        %736 = vmatprep.subr.mxu0 0.0
        %737 = vmatpush1.msra.mxu0 0.0
        %738 = vmatprep.subr.mxu0 0.0
        %739 = vmatpush1.msra.mxu0 0.0
        %740 = vmatprep.mubr.f32.mxu0 0.0
        %741 = vmatmul.mubr.f32.gmra.mrb[0].mxu0 %v674
        %v742 = vpop.f32.mrb[0].mxu0
        %v743 = vadd.f32 0.0, %v742
        %v744 = vpop.f32.mrb[0].mxu0
        %745 = vdwg.mxu0
        %v746 = vrcp.pop %v669
        %v747 = vmul.f32 %v743, %v746
        %v748 = vld [vmem:[%s8] sm:$0xff]
        %749 = vrot.lane.b32.xlu0 %v579, 120
        %v750 = vpop.permute.xlu0 %749
        %751 = vrot.lane.b32.xlu0 %v579, 88
        %v752 = vpop.permute.xlu0 %751
        %v753 = vsel %vm586, %v750, 0
        %v755 = vsel %vm586, %v752, 0
        %757 = vmatprep.subr.mxu0 0.0
        %758 = vmatpush1.xpose.msra.mxu0 %v755
        %759 = vmatprep.subr.mxu0 0.0
        %760 = vmatpush1.xpose.msra.mxu0 0.0
        %761 = vmatprep.subr.mxu0 0.0
        %762 = vmatpush1.xpose.msra.mxu0 0.0
        %763 = vmatprep.subr.mxu0 0.0
        %764 = vmatpush1.xpose.msra.mxu0 0.0
        %765 = vmatprep.subr.mxu0 0.0
        %766 = vmatpush1.xpose.msra.mxu0 0.0
        %767 = vmatprep.subr.mxu0 0.0
        %768 = vmatpush1.xpose.msra.mxu0 0.0
        %769 = vmatprep.subr.mxu0 0.0
        %770 = vmatpush1.xpose.msra.mxu0 0.0
        %771 = vmatprep.subr.mxu0 0.0
        %772 = vmatpush1.xpose.msra.mxu0 0.0
        %773 = vmatprep.subr.mxu0 0.0
        %774 = vmatpush1.xpose.msra.mxu0 0.0
        %775 = vmatprep.subr.mxu0 0.0
        %776 = vmatpush1.xpose.msra.mxu0 0.0
        %777 = vmatprep.subr.mxu0 0.0
        %778 = vmatpush1.xpose.msra.mxu0 0.0
        %779 = vmatprep.subr.mxu0 0.0
        %780 = vmatpush1.xpose.msra.mxu0 0.0
        %781 = vmatprep.subr.mxu0 0.0
        %782 = vmatpush1.xpose.msra.mxu0 0.0
        %783 = vmatprep.subr.mxu0 0.0
        %784 = vmatpush1.xpose.msra.mxu0 0.0
        %785 = vmatprep.subr.mxu0 0.0
        %786 = vmatpush1.xpose.msra.mxu0 0.0
        %787 = vmatprep.subr.mxu0 0.0
        %788 = vmatpush1.xpose.msra.mxu0 0.0
        %789 = vmatprep.subr.mxu0 0.0
        %790 = vmatpush1.xpose.msra.mxu0 0.0
        %791 = vmatprep.subr.mxu0 0.0
        %792 = vmatpush1.xpose.msra.mxu0 0.0
        %793 = vmatprep.subr.mxu0 0.0
        %794 = vmatpush1.xpose.msra.mxu0 0.0
        %795 = vmatprep.subr.mxu0 0.0
        %796 = vmatpush1.xpose.msra.mxu0 0.0
        %797 = vmatprep.subr.mxu0 0.0
        %798 = vmatpush1.xpose.msra.mxu0 0.0
        %799 = vmatprep.subr.mxu0 0.0
        %800 = vmatpush1.xpose.msra.mxu0 0.0
        %801 = vmatprep.subr.mxu0 0.0
        %802 = vmatpush1.xpose.msra.mxu0 0.0
        %803 = vmatprep.subr.mxu0 0.0
        %804 = vmatpush1.xpose.msra.mxu0 0.0
        %805 = vmatprep.subr.mxu0 0.0
        %806 = vmatpush1.xpose.msra.mxu0 0.0
        %807 = vmatprep.subr.mxu0 0.0
        %808 = vmatpush1.xpose.msra.mxu0 0.0
        %809 = vmatprep.subr.mxu0 0.0
        %810 = vmatpush1.xpose.msra.mxu0 0.0
        %811 = vmatprep.subr.mxu0 0.0
        %812 = vmatpush1.xpose.msra.mxu0 0.0
        %813 = vmatprep.subr.mxu0 0.0
        %814 = vmatpush1.xpose.msra.mxu0 0.0
        %815 = vmatprep.subr.mxu0 0.0
        %816 = vmatpush1.xpose.msra.mxu0 0.0
        %817 = vmatprep.subr.mxu0 0.0
        %818 = vmatpush1.xpose.msra.mxu0 0.0
        %819 = vmatprep.subr.mxu0 0.0
        %820 = vmatpush1.xpose.msra.mxu0 0.0
        %821 = vmatprep.mubr.f32.mxu0 0.0
        %822 = vmatmul.mubr.f32.gmra.mrb[0].mxu0 %v753
        %v823 = vpop.f32.mrb[0].mxu0
        %v824 = vadd.f32 %v582, %v823
        %v825 = vpop.f32.mrb[0].mxu0
        %826 = vdwg.mxu0
        %v827 = vsel %vm586, %v824, -inf
        %828 = vmax.xlane.f32.xlu0 %v827
        %v829 = vpop.xlane.xlu0 %828
        %v830 = vsub.f32 %v824, %v829
        %v831 = vmul.f32 %v830, 1.442695
        %v832 = vpow.pop %v831
        %v833 = vsel %vm586, %v832, 0.0
        %834 = vadd.xlane.f32.xlu0 %v833
        %v835 = vpop.xlane.xlu0 %834
        %836 = vrot.lane.b32.xlu0 %v579, 56
        %v837 = vpop.permute.xlu0 %836
        %v840 = vsel %vm586, %v832, 0
        %842 = vmatprep.subr.mxu0 0.0
        %843 = vmatpush1.msra.mxu0 %v837
        %844 = vmatprep.subr.mxu0 0.0
        %845 = vmatpush1.msra.mxu0 0.0
        %846 = vmatprep.subr.mxu0 0.0
        %847 = vmatpush1.msra.mxu0 0.0
        %848 = vmatprep.subr.mxu0 0.0
        %849 = vmatpush1.msra.mxu0 0.0
        %850 = vmatprep.subr.mxu0 0.0
        %851 = vmatpush1.msra.mxu0 0.0
        %852 = vmatprep.subr.mxu0 0.0
        %853 = vmatpush1.msra.mxu0 0.0
        %854 = vmatprep.subr.mxu0 0.0
        %855 = vmatpush1.msra.mxu0 0.0
        %856 = vmatprep.subr.mxu0 0.0
        %857 = vmatpush1.msra.mxu0 0.0
        %858 = vmatprep.subr.mxu0 0.0
        %859 = vmatpush1.msra.mxu0 0.0
        %860 = vmatprep.subr.mxu0 0.0
        %861 = vmatpush1.msra.mxu0 0.0
        %862 = vmatprep.subr.mxu0 0.0
        %863 = vmatpush1.msra.mxu0 0.0
        %864 = vmatprep.subr.mxu0 0.0
        %865 = vmatpush1.msra.mxu0 0.0
        %866 = vmatprep.subr.mxu0 0.0
        %867 = vmatpush1.msra.mxu0 0.0
        %868 = vmatprep.subr.mxu0 0.0
        %869 = vmatpush1.msra.mxu0 0.0
        %870 = vmatprep.subr.mxu0 0.0
        %871 = vmatpush1.msra.mxu0 0.0
        %872 = vmatprep.subr.mxu0 0.0
        %873 = vmatpush1.msra.mxu0 0.0
        %874 = vmatprep.subr.mxu0 0.0
        %875 = vmatpush1.msra.mxu0 0.0
        %876 = vmatprep.subr.mxu0 0.0
        %877 = vmatpush1.msra.mxu0 0.0
        %878 = vmatprep.subr.mxu0 0.0
        %879 = vmatpush1.msra.mxu0 0.0
        %880 = vmatprep.subr.mxu0 0.0
        %881 = vmatpush1.msra.mxu0 0.0
        %882 = vmatprep.subr.mxu0 0.0
        %883 = vmatpush1.msra.mxu0 0.0
        %884 = vmatprep.subr.mxu0 0.0
        %885 = vmatpush1.msra.mxu0 0.0
        %886 = vmatprep.subr.mxu0 0.0
        %887 = vmatpush1.msra.mxu0 0.0
        %888 = vmatprep.subr.mxu0 0.0
        %889 = vmatpush1.msra.mxu0 0.0
        %890 = vmatprep.subr.mxu0 0.0
        %891 = vmatpush1.msra.mxu0 0.0
        %892 = vmatprep.subr.mxu0 0.0
        %893 = vmatpush1.msra.mxu0 0.0
        %894 = vmatprep.subr.mxu0 0.0
        %895 = vmatpush1.msra.mxu0 0.0
        %896 = vmatprep.subr.mxu0 0.0
        %897 = vmatpush1.msra.mxu0 0.0
        %898 = vmatprep.subr.mxu0 0.0
        %899 = vmatpush1.msra.mxu0 0.0
        %900 = vmatprep.subr.mxu0 0.0
        %901 = vmatpush1.msra.mxu0 0.0
        %902 = vmatprep.subr.mxu0 0.0
        %903 = vmatpush1.msra.mxu0 0.0
        %904 = vmatprep.subr.mxu0 0.0
        %905 = vmatpush1.msra.mxu0 0.0
        %906 = vmatprep.mubr.f32.mxu0 0.0
        %907 = vmatmul.mubr.f32.gmra.mrb[0].mxu0 %v840
        %v908 = vpop.f32.mrb[0].mxu0
        %v909 = vadd.f32 0.0, %v908
        %v910 = vpop.f32.mrb[0].mxu0
        %911 = vdwg.mxu0
        %v912 = vrcp.pop %v835
        %v913 = vmul.f32 %v909, %v912
        %v914 = vld [vmem:[%s8 + $0x8] sm:$0xff]
        %v916 = vsel %vm586, %v913, 0
        %918 = vmatprep.subr.mxu0 0.0
        %919 = vmatpush1.msra.mxu0 %v914
        %920 = vmatprep.subr.mxu0 0.0
        %921 = vmatpush1.msra.mxu0 0.0
        %922 = vmatprep.subr.mxu0 0.0
        %923 = vmatpush1.msra.mxu0 0.0
        %924 = vmatprep.subr.mxu0 0.0
        %925 = vmatpush1.msra.mxu0 0.0
        %926 = vmatprep.subr.mxu0 0.0
        %927 = vmatpush1.msra.mxu0 0.0
        %928 = vmatprep.subr.mxu0 0.0
        %929 = vmatpush1.msra.mxu0 0.0
        %930 = vmatprep.subr.mxu0 0.0
        %931 = vmatpush1.msra.mxu0 0.0
        %932 = vmatprep.subr.mxu0 0.0
        %933 = vmatpush1.msra.mxu0 0.0
        %934 = vmatprep.subr.mxu0 0.0
        %935 = vmatpush1.msra.mxu0 0.0
        %936 = vmatprep.subr.mxu0 0.0
        %937 = vmatpush1.msra.mxu0 0.0
        %938 = vmatprep.subr.mxu0 0.0
        %939 = vmatpush1.msra.mxu0 0.0
        %940 = vmatprep.subr.mxu0 0.0
        %941 = vmatpush1.msra.mxu0 0.0
        %942 = vmatprep.subr.mxu0 0.0
        %943 = vmatpush1.msra.mxu0 0.0
        %944 = vmatprep.subr.mxu0 0.0
        %945 = vmatpush1.msra.mxu0 0.0
        %946 = vmatprep.subr.mxu0 0.0
        %947 = vmatpush1.msra.mxu0 0.0
        %948 = vmatprep.subr.mxu0 0.0
        %949 = vmatpush1.msra.mxu0 0.0
        %950 = vmatprep.subr.mxu0 0.0
        %951 = vmatpush1.msra.mxu0 0.0
        %952 = vmatprep.subr.mxu0 0.0
        %953 = vmatpush1.msra.mxu0 0.0
        %954 = vmatprep.subr.mxu0 0.0
        %955 = vmatpush1.msra.mxu0 0.0
        %956 = vmatprep.subr.mxu0 0.0
        %957 = vmatpush1.msra.mxu0 0.0
        %958 = vmatprep.subr.mxu0 0.0
        %959 = vmatpush1.msra.mxu0 0.0
        %960 = vmatprep.subr.mxu0 0.0
        %961 = vmatpush1.msra.mxu0 0.0
        %962 = vmatprep.subr.mxu0 0.0
        %963 = vmatpush1.msra.mxu0 0.0
        %964 = vmatprep.subr.mxu0 0.0
        %965 = vmatpush1.msra.mxu0 0.0
        %966 = vmatprep.subr.mxu0 0.0
        %967 = vmatpush1.msra.mxu0 0.0
        %968 = vmatprep.subr.mxu0 0.0
        %969 = vmatpush1.msra.mxu0 0.0
        %970 = vmatprep.subr.mxu0 0.0
        %971 = vmatpush1.msra.mxu0 0.0
        %972 = vmatprep.subr.mxu0 0.0
        %973 = vmatpush1.msra.mxu0 0.0
        %974 = vmatprep.subr.mxu0 0.0
        %975 = vmatpush1.msra.mxu0 0.0
        %976 = vmatprep.subr.mxu0 0.0
        %977 = vmatpush1.msra.mxu0 0.0
        %978 = vmatprep.subr.mxu0 0.0
        %979 = vmatpush1.msra.mxu0 0.0
        %980 = vmatprep.subr.mxu0 0.0
        %981 = vmatpush1.msra.mxu0 0.0
        %982 = vmatprep.mubr.f32.mxu0 0.0
        %983 = vmatmul.mubr.f32.gmra.mrb[0].mxu0 %v916
        %v984 = vpop.f32.mrb[0].mxu0
        %v985 = vadd.f32 0.0, %v984
        %v986 = vpop.f32.mrb[0].mxu0
        %987 = vdwg.mxu0
        %v989 = vsel %vm586, %v747, 0
        %991 = vmatprep.subr.mxu0 0.0
        %992 = vmatpush1.msra.mxu0 %v748
        %993 = vmatprep.subr.mxu0 0.0
        %994 = vmatpush1.msra.mxu0 0.0
        %995 = vmatprep.subr.mxu0 0.0
        %996 = vmatpush1.msra.mxu0 0.0
        %997 = vmatprep.subr.mxu0 0.0
        %998 = vmatpush1.msra.mxu0 0.0
        %999 = vmatprep.subr.mxu0 0.0
        %1000 = vmatpush1.msra.mxu0 0.0
        %1001 = vmatprep.subr.mxu0 0.0
        %1002 = vmatpush1.msra.mxu0 0.0
        %1003 = vmatprep.subr.mxu0 0.0
        %1004 = vmatpush1.msra.mxu0 0.0
        %1005 = vmatprep.subr.mxu0 0.0
        %1006 = vmatpush1.msra.mxu0 0.0
        %1007 = vmatprep.subr.mxu0 0.0
        %1008 = vmatpush1.msra.mxu0 0.0
        %1009 = vmatprep.subr.mxu0 0.0
        %1010 = vmatpush1.msra.mxu0 0.0
        %1011 = vmatprep.subr.mxu0 0.0
        %1012 = vmatpush1.msra.mxu0 0.0
        %1013 = vmatprep.subr.mxu0 0.0
        %1014 = vmatpush1.msra.mxu0 0.0
        %1015 = vmatprep.subr.mxu0 0.0
        %1016 = vmatpush1.msra.mxu0 0.0
        %1017 = vmatprep.subr.mxu0 0.0
        %1018 = vmatpush1.msra.mxu0 0.0
        %1019 = vmatprep.subr.mxu0 0.0
        %1020 = vmatpush1.msra.mxu0 0.0
        %1021 = vmatprep.subr.mxu0 0.0
        %1022 = vmatpush1.msra.mxu0 0.0
        %1023 = vmatprep.subr.mxu0 0.0
        %1024 = vmatpush1.msra.mxu0 0.0
        %1025 = vmatprep.subr.mxu0 0.0
        %1026 = vmatpush1.msra.mxu0 0.0
        %1027 = vmatprep.subr.mxu0 0.0
        %1028 = vmatpush1.msra.mxu0 0.0
        %1029 = vmatprep.subr.mxu0 0.0
        %1030 = vmatpush1.msra.mxu0 0.0
        %1031 = vmatprep.subr.mxu0 0.0
        %1032 = vmatpush1.msra.mxu0 0.0
        %1033 = vmatprep.subr.mxu0 0.0
        %1034 = vmatpush1.msra.mxu0 0.0
        %1035 = vmatprep.subr.mxu0 0.0
        %1036 = vmatpush1.msra.mxu0 0.0
        %1037 = vmatprep.subr.mxu0 0.0
        %1038 = vmatpush1.msra.mxu0 0.0
        %1039 = vmatprep.subr.mxu0 0.0
        %1040 = vmatpush1.msra.mxu0 0.0
        %1041 = vmatprep.subr.mxu0 0.0
        %1042 = vmatpush1.msra.mxu0 0.0
        %1043 = vmatprep.subr.mxu0 0.0
        %1044 = vmatpush1.msra.mxu0 0.0
        %1045 = vmatprep.subr.mxu0 0.0
        %1046 = vmatpush1.msra.mxu0 0.0
        %1047 = vmatprep.subr.mxu0 0.0
        %1048 = vmatpush1.msra.mxu0 0.0
        %1049 = vmatprep.subr.mxu0 0.0
        %1050 = vmatpush1.msra.mxu0 0.0
        %1051 = vmatprep.subr.mxu0 0.0
        %1052 = vmatpush1.msra.mxu0 0.0
        %1053 = vmatprep.subr.mxu0 0.0
        %1054 = vmatpush1.msra.mxu0 0.0
        %1055 = vmatprep.mubr.f32.mxu0 0.0
        %1056 = vmatmul.mubr.f32.gmra.mrb[0].mxu0 %v989
        %v1057 = vpop.f32.mrb[0].mxu0
        %v1058 = vadd.f32 %v985, %v1057
        %v1059 = vpop.f32.mrb[0].mxu0
        %1060 = vdwg.mxu0
        %1061 = vrot.lane.b32.xlu0 %v579, 112
        %v1062 = vpop.permute.xlu0 %1061
        %1063 = vrot.lane.b32.xlu0 %v579, 80
        %v1064 = vpop.permute.xlu0 %1063
        %v1065 = vsel %vm586, %v1062, 0
        %v1067 = vsel %vm586, %v1064, 0
        %1069 = vmatprep.subr.mxu0 0.0
        %1070 = vmatpush1.xpose.msra.mxu0 %v1067
        %1071 = vmatprep.subr.mxu0 0.0
        %1072 = vmatpush1.xpose.msra.mxu0 0.0
        %1073 = vmatprep.subr.mxu0 0.0
        %1074 = vmatpush1.xpose.msra.mxu0 0.0
        %1075 = vmatprep.subr.mxu0 0.0
        %1076 = vmatpush1.xpose.msra.mxu0 0.0
        %1077 = vmatprep.subr.mxu0 0.0
        %1078 = vmatpush1.xpose.msra.mxu0 0.0
        %1079 = vmatprep.subr.mxu0 0.0
        %1080 = vmatpush1.xpose.msra.mxu0 0.0
        %1081 = vmatprep.subr.mxu0 0.0
        %1082 = vmatpush1.xpose.msra.mxu0 0.0
        %1083 = vmatprep.subr.mxu0 0.0
        %1084 = vmatpush1.xpose.msra.mxu0 0.0
        %1085 = vmatprep.subr.mxu0 0.0
        %1086 = vmatpush1.xpose.msra.mxu0 0.0
        %1087 = vmatprep.subr.mxu0 0.0
        %1088 = vmatpush1.xpose.msra.mxu0 0.0
        %1089 = vmatprep.subr.mxu0 0.0
        %1090 = vmatpush1.xpose.msra.mxu0 0.0
        %1091 = vmatprep.subr.mxu0 0.0
        %1092 = vmatpush1.xpose.msra.mxu0 0.0
        %1093 = vmatprep.subr.mxu0 0.0
        %1094 = vmatpush1.xpose.msra.mxu0 0.0
        %1095 = vmatprep.subr.mxu0 0.0
        %1096 = vmatpush1.xpose.msra.mxu0 0.0
        %1097 = vmatprep.subr.mxu0 0.0
        %1098 = vmatpush1.xpose.msra.mxu0 0.0
        %1099 = vmatprep.subr.mxu0 0.0
        %1100 = vmatpush1.xpose.msra.mxu0 0.0
        %1101 = vmatprep.subr.mxu0 0.0
        %1102 = vmatpush1.xpose.msra.mxu0 0.0
        %1103 = vmatprep.subr.mxu0 0.0
        %1104 = vmatpush1.xpose.msra.mxu0 0.0
        %1105 = vmatprep.subr.mxu0 0.0
        %1106 = vmatpush1.xpose.msra.mxu0 0.0
        %1107 = vmatprep.subr.mxu0 0.0
        %1108 = vmatpush1.xpose.msra.mxu0 0.0
        %1109 = vmatprep.subr.mxu0 0.0
        %1110 = vmatpush1.xpose.msra.mxu0 0.0
        %1111 = vmatprep.subr.mxu0 0.0
        %1112 = vmatpush1.xpose.msra.mxu0 0.0
        %1113 = vmatprep.subr.mxu0 0.0
        %1114 = vmatpush1.xpose.msra.mxu0 0.0
        %1115 = vmatprep.subr.mxu0 0.0
        %1116 = vmatpush1.xpose.msra.mxu0 0.0
        %1117 = vmatprep.subr.mxu0 0.0
        %1118 = vmatpush1.xpose.msra.mxu0 0.0
        %1119 = vmatprep.subr.mxu0 0.0
        %1120 = vmatpush1.xpose.msra.mxu0 0.0
        %1121 = vmatprep.subr.mxu0 0.0
        %1122 = vmatpush1.xpose.msra.mxu0 0.0
        %1123 = vmatprep.subr.mxu0 0.0
        %1124 = vmatpush1.xpose.msra.mxu0 0.0
        %1125 = vmatprep.subr.mxu0 0.0
        %1126 = vmatpush1.xpose.msra.mxu0 0.0
        %1127 = vmatprep.subr.mxu0 0.0
        %1128 = vmatpush1.xpose.msra.mxu0 0.0
        %1129 = vmatprep.subr.mxu0 0.0
        %1130 = vmatpush1.xpose.msra.mxu0 0.0
        %1131 = vmatprep.subr.mxu0 0.0
        %1132 = vmatpush1.xpose.msra.mxu0 0.0
        %1133 = vmatprep.mubr.f32.mxu0 0.0
        %1134 = vmatmul.mubr.f32.gmra.mrb[0].mxu0 %v1065
        %v1135 = vpop.f32.mrb[0].mxu0
        %v1136 = vadd.f32 %v582, %v1135
        %v1137 = vpop.f32.mrb[0].mxu0
        %1138 = vdwg.mxu0
        %v1139 = vsel %vm586, %v1136, -inf
        %1140 = vmax.xlane.f32.xlu0 %v1139
        %v1141 = vpop.xlane.xlu0 %1140
        %v1142 = vsub.f32 %v1136, %v1141
        %v1143 = vmul.f32 %v1142, 1.442695
        %v1144 = vpow.pop %v1143
        %v1145 = vsel %vm586, %v1144, 0.0
        %1146 = vadd.xlane.f32.xlu0 %v1145
        %v1147 = vpop.xlane.xlu0 %1146
        %1148 = vrot.lane.b32.xlu0 %v579, 48
        %v1149 = vpop.permute.xlu0 %1148
        %v1152 = vsel %vm586, %v1144, 0
        %1154 = vmatprep.subr.mxu0 0.0
        %1155 = vmatpush1.msra.mxu0 %v1149
        %1156 = vmatprep.subr.mxu0 0.0
        %1157 = vmatpush1.msra.mxu0 0.0
        %1158 = vmatprep.subr.mxu0 0.0
        %1159 = vmatpush1.msra.mxu0 0.0
        %1160 = vmatprep.subr.mxu0 0.0
        %1161 = vmatpush1.msra.mxu0 0.0
        %1162 = vmatprep.subr.mxu0 0.0
        %1163 = vmatpush1.msra.mxu0 0.0
        %1164 = vmatprep.subr.mxu0 0.0
        %1165 = vmatpush1.msra.mxu0 0.0
        %1166 = vmatprep.subr.mxu0 0.0
        %1167 = vmatpush1.msra.mxu0 0.0
        %1168 = vmatprep.subr.mxu0 0.0
        %1169 = vmatpush1.msra.mxu0 0.0
        %1170 = vmatprep.subr.mxu0 0.0
        %1171 = vmatpush1.msra.mxu0 0.0
        %1172 = vmatprep.subr.mxu0 0.0
        %1173 = vmatpush1.msra.mxu0 0.0
        %1174 = vmatprep.subr.mxu0 0.0
        %1175 = vmatpush1.msra.mxu0 0.0
        %1176 = vmatprep.subr.mxu0 0.0
        %1177 = vmatpush1.msra.mxu0 0.0
        %1178 = vmatprep.subr.mxu0 0.0
        %1179 = vmatpush1.msra.mxu0 0.0
        %1180 = vmatprep.subr.mxu0 0.0
        %1181 = vmatpush1.msra.mxu0 0.0
        %1182 = vmatprep.subr.mxu0 0.0
        %1183 = vmatpush1.msra.mxu0 0.0
        %1184 = vmatprep.subr.mxu0 0.0
        %1185 = vmatpush1.msra.mxu0 0.0
        %1186 = vmatprep.subr.mxu0 0.0
        %1187 = vmatpush1.msra.mxu0 0.0
        %1188 = vmatprep.subr.mxu0 0.0
        %1189 = vmatpush1.msra.mxu0 0.0
        %1190 = vmatprep.subr.mxu0 0.0
        %1191 = vmatpush1.msra.mxu0 0.0
        %1192 = vmatprep.subr.mxu0 0.0
        %1193 = vmatpush1.msra.mxu0 0.0
        %1194 = vmatprep.subr.mxu0 0.0
        %1195 = vmatpush1.msra.mxu0 0.0
        %1196 = vmatprep.subr.mxu0 0.0
        %1197 = vmatpush1.msra.mxu0 0.0
        %1198 = vmatprep.subr.mxu0 0.0
        %1199 = vmatpush1.msra.mxu0 0.0
        %1200 = vmatprep.subr.mxu0 0.0
        %1201 = vmatpush1.msra.mxu0 0.0
        %1202 = vmatprep.subr.mxu0 0.0
        %1203 = vmatpush1.msra.mxu0 0.0
        %1204 = vmatprep.subr.mxu0 0.0
        %1205 = vmatpush1.msra.mxu0 0.0
        %1206 = vmatprep.subr.mxu0 0.0
        %1207 = vmatpush1.msra.mxu0 0.0
        %1208 = vmatprep.subr.mxu0 0.0
        %1209 = vmatpush1.msra.mxu0 0.0
        %1210 = vmatprep.subr.mxu0 0.0
        %1211 = vmatpush1.msra.mxu0 0.0
        %1212 = vmatprep.subr.mxu0 0.0
        %1213 = vmatpush1.msra.mxu0 0.0
        %1214 = vmatprep.subr.mxu0 0.0
        %1215 = vmatpush1.msra.mxu0 0.0
        %1216 = vmatprep.subr.mxu0 0.0
        %1217 = vmatpush1.msra.mxu0 0.0
        %1218 = vmatprep.mubr.f32.mxu0 0.0
        %1219 = vmatmul.mubr.f32.gmra.mrb[0].mxu0 %v1152
        %v1220 = vpop.f32.mrb[0].mxu0
        %v1221 = vadd.f32 0.0, %v1220
        %v1222 = vpop.f32.mrb[0].mxu0
        %1223 = vdwg.mxu0
        %v1224 = vrcp.pop %v1147
        %v1225 = vmul.f32 %v1221, %v1224
        %v1226 = vld [vmem:[%s8 + $0x10] sm:$0xff]
        %v1228 = vsel %vm586, %v1225, 0
        %1230 = vmatprep.subr.mxu0 0.0
        %1231 = vmatpush1.msra.mxu0 %v1226
        %1232 = vmatprep.subr.mxu0 0.0
        %1233 = vmatpush1.msra.mxu0 0.0
        %1234 = vmatprep.subr.mxu0 0.0
        %1235 = vmatpush1.msra.mxu0 0.0
        %1236 = vmatprep.subr.mxu0 0.0
        %1237 = vmatpush1.msra.mxu0 0.0
        %1238 = vmatprep.subr.mxu0 0.0
        %1239 = vmatpush1.msra.mxu0 0.0
        %1240 = vmatprep.subr.mxu0 0.0
        %1241 = vmatpush1.msra.mxu0 0.0
        %1242 = vmatprep.subr.mxu0 0.0
        %1243 = vmatpush1.msra.mxu0 0.0
        %1244 = vmatprep.subr.mxu0 0.0
        %1245 = vmatpush1.msra.mxu0 0.0
        %1246 = vmatprep.subr.mxu0 0.0
        %1247 = vmatpush1.msra.mxu0 0.0
        %1248 = vmatprep.subr.mxu0 0.0
        %1249 = vmatpush1.msra.mxu0 0.0
        %1250 = vmatprep.subr.mxu0 0.0
        %1251 = vmatpush1.msra.mxu0 0.0
        %1252 = vmatprep.subr.mxu0 0.0
        %1253 = vmatpush1.msra.mxu0 0.0
        %1254 = vmatprep.subr.mxu0 0.0
        %1255 = vmatpush1.msra.mxu0 0.0
        %1256 = vmatprep.subr.mxu0 0.0
        %1257 = vmatpush1.msra.mxu0 0.0
        %1258 = vmatprep.subr.mxu0 0.0
        %1259 = vmatpush1.msra.mxu0 0.0
        %1260 = vmatprep.subr.mxu0 0.0
        %1261 = vmatpush1.msra.mxu0 0.0
        %1262 = vmatprep.subr.mxu0 0.0
        %1263 = vmatpush1.msra.mxu0 0.0
        %1264 = vmatprep.subr.mxu0 0.0
        %1265 = vmatpush1.msra.mxu0 0.0
        %1266 = vmatprep.subr.mxu0 0.0
        %1267 = vmatpush1.msra.mxu0 0.0
        %1268 = vmatprep.subr.mxu0 0.0
        %1269 = vmatpush1.msra.mxu0 0.0
        %1270 = vmatprep.subr.mxu0 0.0
        %1271 = vmatpush1.msra.mxu0 0.0
        %1272 = vmatprep.subr.mxu0 0.0
        %1273 = vmatpush1.msra.mxu0 0.0
        %1274 = vmatprep.subr.mxu0 0.0
        %1275 = vmatpush1.msra.mxu0 0.0
        %1276 = vmatprep.subr.mxu0 0.0
        %1277 = vmatpush1.msra.mxu0 0.0
        %1278 = vmatprep.subr.mxu0 0.0
        %1279 = vmatpush1.msra.mxu0 0.0
        %1280 = vmatprep.subr.mxu0 0.0
        %1281 = vmatpush1.msra.mxu0 0.0
        %1282 = vmatprep.subr.mxu0 0.0
        %1283 = vmatpush1.msra.mxu0 0.0
        %1284 = vmatprep.subr.mxu0 0.0
        %1285 = vmatpush1.msra.mxu0 0.0
        %1286 = vmatprep.subr.mxu0 0.0
        %1287 = vmatpush1.msra.mxu0 0.0
        %1288 = vmatprep.subr.mxu0 0.0
        %1289 = vmatpush1.msra.mxu0 0.0
        %1290 = vmatprep.subr.mxu0 0.0
        %1291 = vmatpush1.msra.mxu0 0.0
        %1292 = vmatprep.subr.mxu0 0.0
        %1293 = vmatpush1.msra.mxu0 0.0
        %1294 = vmatprep.mubr.f32.mxu0 0.0
        %1295 = vmatmul.mubr.f32.gmra.mrb[0].mxu0 %v1228
        %v1296 = vpop.f32.mrb[0].mxu0
        %v1297 = vadd.f32 0.0, %v1296
        %v1298 = vpop.f32.mrb[0].mxu0
        %1299 = vdwg.mxu0
        %v1300 = vadd.f32 %v1058, %v1297
        %1301 = vrot.lane.b32.xlu0 %v579, 104
        %v1302 = vpop.permute.xlu0 %1301
        %1303 = vrot.lane.b32.xlu0 %v579, 72
        %v1304 = vpop.permute.xlu0 %1303
        %v1305 = vsel %vm586, %v1302, 0
        %v1307 = vsel %vm586, %v1304, 0
        %1309 = vmatprep.subr.mxu0 0.0
        %1310 = vmatpush1.xpose.msra.mxu0 %v1307
        %1311 = vmatprep.subr.mxu0 0.0
        %1312 = vmatpush1.xpose.msra.mxu0 0.0
        %1313 = vmatprep.subr.mxu0 0.0
        %1314 = vmatpush1.xpose.msra.mxu0 0.0
        %1315 = vmatprep.subr.mxu0 0.0
        %1316 = vmatpush1.xpose.msra.mxu0 0.0
        %1317 = vmatprep.subr.mxu0 0.0
        %1318 = vmatpush1.xpose.msra.mxu0 0.0
        %1319 = vmatprep.subr.mxu0 0.0
        %1320 = vmatpush1.xpose.msra.mxu0 0.0
        %1321 = vmatprep.subr.mxu0 0.0
        %1322 = vmatpush1.xpose.msra.mxu0 0.0
        %1323 = vmatprep.subr.mxu0 0.0
        %1324 = vmatpush1.xpose.msra.mxu0 0.0
        %1325 = vmatprep.subr.mxu0 0.0
        %1326 = vmatpush1.xpose.msra.mxu0 0.0
        %1327 = vmatprep.subr.mxu0 0.0
        %1328 = vmatpush1.xpose.msra.mxu0 0.0
        %1329 = vmatprep.subr.mxu0 0.0
        %1330 = vmatpush1.xpose.msra.mxu0 0.0
        %1331 = vmatprep.subr.mxu0 0.0
        %1332 = vmatpush1.xpose.msra.mxu0 0.0
        %1333 = vmatprep.subr.mxu0 0.0
        %1334 = vmatpush1.xpose.msra.mxu0 0.0
        %1335 = vmatprep.subr.mxu0 0.0
        %1336 = vmatpush1.xpose.msra.mxu0 0.0
        %1337 = vmatprep.subr.mxu0 0.0
        %1338 = vmatpush1.xpose.msra.mxu0 0.0
        %1339 = vmatprep.subr.mxu0 0.0
        %1340 = vmatpush1.xpose.msra.mxu0 0.0
        %1341 = vmatprep.subr.mxu0 0.0
        %1342 = vmatpush1.xpose.msra.mxu0 0.0
        %1343 = vmatprep.subr.mxu0 0.0
        %1344 = vmatpush1.xpose.msra.mxu0 0.0
        %1345 = vmatprep.subr.mxu0 0.0
        %1346 = vmatpush1.xpose.msra.mxu0 0.0
        %1347 = vmatprep.subr.mxu0 0.0
        %1348 = vmatpush1.xpose.msra.mxu0 0.0
        %1349 = vmatprep.subr.mxu0 0.0
        %1350 = vmatpush1.xpose.msra.mxu0 0.0
        %1351 = vmatprep.subr.mxu0 0.0
        %1352 = vmatpush1.xpose.msra.mxu0 0.0
        %1353 = vmatprep.subr.mxu0 0.0
        %1354 = vmatpush1.xpose.msra.mxu0 0.0
        %1355 = vmatprep.subr.mxu0 0.0
        %1356 = vmatpush1.xpose.msra.mxu0 0.0
        %1357 = vmatprep.subr.mxu0 0.0
        %1358 = vmatpush1.xpose.msra.mxu0 0.0
        %1359 = vmatprep.subr.mxu0 0.0
        %1360 = vmatpush1.xpose.msra.mxu0 0.0
        %1361 = vmatprep.subr.mxu0 0.0
        %1362 = vmatpush1.xpose.msra.mxu0 0.0
        %1363 = vmatprep.subr.mxu0 0.0
        %1364 = vmatpush1.xpose.msra.mxu0 0.0
        %1365 = vmatprep.subr.mxu0 0.0
        %1366 = vmatpush1.xpose.msra.mxu0 0.0
        %1367 = vmatprep.subr.mxu0 0.0
        %1368 = vmatpush1.xpose.msra.mxu0 0.0
        %1369 = vmatprep.subr.mxu0 0.0
        %1370 = vmatpush1.xpose.msra.mxu0 0.0
        %1371 = vmatprep.subr.mxu0 0.0
        %1372 = vmatpush1.xpose.msra.mxu0 0.0
        %1373 = vmatprep.mubr.f32.mxu0 0.0
        %1374 = vmatmul.mubr.f32.gmra.mrb[0].mxu0 %v1305
        %v1375 = vpop.f32.mrb[0].mxu0
        %v1376 = vadd.f32 %v582, %v1375
        %v1377 = vpop.f32.mrb[0].mxu0
        %1378 = vdwg.mxu0
        %v1379 = vsel %vm586, %v1376, -inf
        %1380 = vmax.xlane.f32.xlu0 %v1379
        %v1381 = vpop.xlane.xlu0 %1380
        %v1382 = vsub.f32 %v1376, %v1381
        %v1383 = vmul.f32 %v1382, 1.442695
        %v1384 = vpow.pop %v1383
        %v1385 = vsel %vm586, %v1384, 0.0
        %1386 = vadd.xlane.f32.xlu0 %v1385
        %v1387 = vpop.xlane.xlu0 %1386
        %1388 = vrot.lane.b32.xlu0 %v579, 40
        %v1389 = vpop.permute.xlu0 %1388
        %v1392 = vsel %vm586, %v1384, 0
        %1394 = vmatprep.subr.mxu0 0.0
        %1395 = vmatpush1.msra.mxu0 %v1389
        %1396 = vmatprep.subr.mxu0 0.0
        %1397 = vmatpush1.msra.mxu0 0.0
        %1398 = vmatprep.subr.mxu0 0.0
        %1399 = vmatpush1.msra.mxu0 0.0
        %1400 = vmatprep.subr.mxu0 0.0
        %1401 = vmatpush1.msra.mxu0 0.0
        %1402 = vmatprep.subr.mxu0 0.0
        %1403 = vmatpush1.msra.mxu0 0.0
        %1404 = vmatprep.subr.mxu0 0.0
        %1405 = vmatpush1.msra.mxu0 0.0
        %1406 = vmatprep.subr.mxu0 0.0
        %1407 = vmatpush1.msra.mxu0 0.0
        %1408 = vmatprep.subr.mxu0 0.0
        %1409 = vmatpush1.msra.mxu0 0.0
        %1410 = vmatprep.subr.mxu0 0.0
        %1411 = vmatpush1.msra.mxu0 0.0
        %1412 = vmatprep.subr.mxu0 0.0
        %1413 = vmatpush1.msra.mxu0 0.0
        %1414 = vmatprep.subr.mxu0 0.0
        %1415 = vmatpush1.msra.mxu0 0.0
        %1416 = vmatprep.subr.mxu0 0.0
        %1417 = vmatpush1.msra.mxu0 0.0
        %1418 = vmatprep.subr.mxu0 0.0
        %1419 = vmatpush1.msra.mxu0 0.0
        %1420 = vmatprep.subr.mxu0 0.0
        %1421 = vmatpush1.msra.mxu0 0.0
        %1422 = vmatprep.subr.mxu0 0.0
        %1423 = vmatpush1.msra.mxu0 0.0
        %1424 = vmatprep.subr.mxu0 0.0
        %1425 = vmatpush1.msra.mxu0 0.0
        %1426 = vmatprep.subr.mxu0 0.0
        %1427 = vmatpush1.msra.mxu0 0.0
        %1428 = vmatprep.subr.mxu0 0.0
        %1429 = vmatpush1.msra.mxu0 0.0
        %1430 = vmatprep.subr.mxu0 0.0
        %1431 = vmatpush1.msra.mxu0 0.0
        %1432 = vmatprep.subr.mxu0 0.0
        %1433 = vmatpush1.msra.mxu0 0.0
        %1434 = vmatprep.subr.mxu0 0.0
        %1435 = vmatpush1.msra.mxu0 0.0
        %1436 = vmatprep.subr.mxu0 0.0
        %1437 = vmatpush1.msra.mxu0 0.0
        %1438 = vmatprep.subr.mxu0 0.0
        %1439 = vmatpush1.msra.mxu0 0.0
        %1440 = vmatprep.subr.mxu0 0.0
        %1441 = vmatpush1.msra.mxu0 0.0
        %1442 = vmatprep.subr.mxu0 0.0
        %1443 = vmatpush1.msra.mxu0 0.0
        %1444 = vmatprep.subr.mxu0 0.0
        %1445 = vmatpush1.msra.mxu0 0.0
        %1446 = vmatprep.subr.mxu0 0.0
        %1447 = vmatpush1.msra.mxu0 0.0
        %1448 = vmatprep.subr.mxu0 0.0
        %1449 = vmatpush1.msra.mxu0 0.0
        %1450 = vmatprep.subr.mxu0 0.0
        %1451 = vmatpush1.msra.mxu0 0.0
        %1452 = vmatprep.subr.mxu0 0.0
        %1453 = vmatpush1.msra.mxu0 0.0
        %1454 = vmatprep.subr.mxu0 0.0
        %1455 = vmatpush1.msra.mxu0 0.0
        %1456 = vmatprep.subr.mxu0 0.0
        %1457 = vmatpush1.msra.mxu0 0.0
        %1458 = vmatprep.mubr.f32.mxu0 0.0
        %1459 = vmatmul.mubr.f32.gmra.mrb[0].mxu0 %v1392
        %v1460 = vpop.f32.mrb[0].mxu0
        %v1461 = vadd.f32 0.0, %v1460
        %v1462 = vpop.f32.mrb[0].mxu0
        %1463 = vdwg.mxu0
        %v1464 = vrcp.pop %v1387
        %v1465 = vmul.f32 %v1461, %v1464
        %v1466 = vld [vmem:[%s8 + $0x18] sm:$0xff]
        %v1468 = vsel %vm586, %v1465, 0
        %1470 = vmatprep.subr.mxu0 0.0
        %1471 = vmatpush1.msra.mxu0 %v1466
        %1472 = vmatprep.subr.mxu0 0.0
        %1473 = vmatpush1.msra.mxu0 0.0
        %1474 = vmatprep.subr.mxu0 0.0
        %1475 = vmatpush1.msra.mxu0 0.0
        %1476 = vmatprep.subr.mxu0 0.0
        %1477 = vmatpush1.msra.mxu0 0.0
        %1478 = vmatprep.subr.mxu0 0.0
        %1479 = vmatpush1.msra.mxu0 0.0
        %1480 = vmatprep.subr.mxu0 0.0
        %1481 = vmatpush1.msra.mxu0 0.0
        %1482 = vmatprep.subr.mxu0 0.0
        %1483 = vmatpush1.msra.mxu0 0.0
        %1484 = vmatprep.subr.mxu0 0.0
        %1485 = vmatpush1.msra.mxu0 0.0
        %1486 = vmatprep.subr.mxu0 0.0
        %1487 = vmatpush1.msra.mxu0 0.0
        %1488 = vmatprep.subr.mxu0 0.0
        %1489 = vmatpush1.msra.mxu0 0.0
        %1490 = vmatprep.subr.mxu0 0.0
        %1491 = vmatpush1.msra.mxu0 0.0
        %1492 = vmatprep.subr.mxu0 0.0
        %1493 = vmatpush1.msra.mxu0 0.0
        %1494 = vmatprep.subr.mxu0 0.0
        %1495 = vmatpush1.msra.mxu0 0.0
        %1496 = vmatprep.subr.mxu0 0.0
        %1497 = vmatpush1.msra.mxu0 0.0
        %1498 = vmatprep.subr.mxu0 0.0
        %1499 = vmatpush1.msra.mxu0 0.0
        %1500 = vmatprep.subr.mxu0 0.0
        %1501 = vmatpush1.msra.mxu0 0.0
        %1502 = vmatprep.subr.mxu0 0.0
        %1503 = vmatpush1.msra.mxu0 0.0
        %1504 = vmatprep.subr.mxu0 0.0
        %1505 = vmatpush1.msra.mxu0 0.0
        %1506 = vmatprep.subr.mxu0 0.0
        %1507 = vmatpush1.msra.mxu0 0.0
        %1508 = vmatprep.subr.mxu0 0.0
        %1509 = vmatpush1.msra.mxu0 0.0
        %1510 = vmatprep.subr.mxu0 0.0
        %1511 = vmatpush1.msra.mxu0 0.0
        %1512 = vmatprep.subr.mxu0 0.0
        %1513 = vmatpush1.msra.mxu0 0.0
        %1514 = vmatprep.subr.mxu0 0.0
        %1515 = vmatpush1.msra.mxu0 0.0
        %1516 = vmatprep.subr.mxu0 0.0
        %1517 = vmatpush1.msra.mxu0 0.0
        %1518 = vmatprep.subr.mxu0 0.0
        %1519 = vmatpush1.msra.mxu0 0.0
        %1520 = vmatprep.subr.mxu0 0.0
        %1521 = vmatpush1.msra.mxu0 0.0
        %1522 = vmatprep.subr.mxu0 0.0
        %1523 = vmatpush1.msra.mxu0 0.0
        %1524 = vmatprep.subr.mxu0 0.0
        %1525 = vmatpush1.msra.mxu0 0.0
        %1526 = vmatprep.subr.mxu0 0.0
        %1527 = vmatpush1.msra.mxu0 0.0
        %1528 = vmatprep.subr.mxu0 0.0
        %1529 = vmatpush1.msra.mxu0 0.0
        %1530 = vmatprep.subr.mxu0 0.0
        %1531 = vmatpush1.msra.mxu0 0.0
        %1532 = vmatprep.subr.mxu0 0.0
        %1533 = vmatpush1.msra.mxu0 0.0
        %1534 = vmatprep.mubr.f32.mxu0 0.0
        %1535 = vmatmul.mubr.f32.gmra.mrb[0].mxu0 %v1468
        %v1536 = vpop.f32.mrb[0].mxu0
        %v1537 = vadd.f32 0.0, %v1536
        %v1538 = vpop.f32.mrb[0].mxu0
        %1539 = vdwg.mxu0
        %v1540 = vadd.f32 %v1300, %v1537
        %v1541 = vadd.f32 %v463, %v1540
        %v1542 = vld [vmem:[%s9] sm:$0x1]
        %v1544 = vlaneseq
        %v1545 = vshrl.u32 %v1544, 7
        %v1546 = vsub.s32 0, %v1545
        %v1547 = vrot.slane %v1542, %v1546
        %v1549 = vadd.f32 %v1541, %v1547
        %v1550 = vld [vmem:[%s3] sm:$0x1]
        %v1551 = vld [vmem:[%s4] sm:$0x1]
        %v1552 = vsel %vm466, %v1549, 0.0
        %1553 = vadd.xlane.f32.xlu0 %v1552
        %v1554 = vpop.xlane.xlu0 %1553
        %v1555 = vmul.f32 %v1554, %v470
        %v1556 = vmul.f32 %v1549, %v1549
        %v1557 = vsel %vm466, %v1556, 0.0
        %1558 = vadd.xlane.f32.xlu0 %v1557
        %v1559 = vpop.xlane.xlu0 %1558
        %v1560 = vmul.f32 %v1559, %v470
        %v1561 = vmul.f32 %v1555, %v1555
        %v1562 = vsub.f32 %v1560, %v1561
        %v1563 = vmax.f32 %v1562, 0.0
        %v1564 = vadd.f32 %v1563, 1e-05
        %v1565 = vrsqrt.pop %v1564
        %v1566 = vsub.f32 %v1549, %v1555
        %v1567 = vmul.f32 %v1566, %v1565
        %v1569 = vlaneseq
        %v1570 = vshrl.u32 %v1569, 7
        %v1571 = vsub.s32 0, %v1570
        %v1572 = vrot.slane %v1550, %v1571
        %v1574 = vmul.f32 %v1567, %v1572
        %v1576 = vlaneseq
        %v1577 = vshrl.u32 %v1576, 7
        %v1578 = vsub.s32 0, %v1577
        %v1579 = vrot.slane %v1551, %v1578
        %v1581 = vadd.f32 %v1574, %v1579
        %v1582 = vld [vmem:[%s10] sm:$0xff]
        %v1583 = vld [vmem:[%s10 + $0x8] sm:$0xff]
        %v1584 = vld [vmem:[%s10 + $0x10] sm:$0xff]
        %v1585 = vld [vmem:[%s10 + $0x18] sm:$0xff]
        %v1586 = vld [vmem:[%s11] sm:$0x1]
        %v1588 = vlaneseq
        %v1589 = vshrl.u32 %v1588, 7
        %v1590 = vsub.s32 0, %v1589
        %v1591 = vrot.slane %v1586, %v1590
        %v1594 = vsel %vm466, %v1581, 0
        %1596 = vmatprep.subr.mxu0 0.0
        %1597 = vmatpush1.msra.mxu0 %v1582
        %1598 = vmatprep.subr.mxu0 0.0
        %1599 = vmatpush1.msra.mxu0 %v1583
        %1600 = vmatprep.subr.mxu0 0.0
        %1601 = vmatpush1.msra.mxu0 %v1584
        %1602 = vmatprep.subr.mxu0 0.0
        %1603 = vmatpush1.msra.mxu0 %v1585
        %1604 = vmatprep.subr.mxu0 0.0
        %1605 = vmatpush1.msra.mxu0 0.0
        %1606 = vmatprep.subr.mxu0 0.0
        %1607 = vmatpush1.msra.mxu0 0.0
        %1608 = vmatprep.subr.mxu0 0.0
        %1609 = vmatpush1.msra.mxu0 0.0
        %1610 = vmatprep.subr.mxu0 0.0
        %1611 = vmatpush1.msra.mxu0 0.0
        %1612 = vmatprep.subr.mxu0 0.0
        %1613 = vmatpush1.msra.mxu0 0.0
        %1614 = vmatprep.subr.mxu0 0.0
        %1615 = vmatpush1.msra.mxu0 0.0
        %1616 = vmatprep.subr.mxu0 0.0
        %1617 = vmatpush1.msra.mxu0 0.0
        %1618 = vmatprep.subr.mxu0 0.0
        %1619 = vmatpush1.msra.mxu0 0.0
        %1620 = vmatprep.subr.mxu0 0.0
        %1621 = vmatpush1.msra.mxu0 0.0
        %1622 = vmatprep.subr.mxu0 0.0
        %1623 = vmatpush1.msra.mxu0 0.0
        %1624 = vmatprep.subr.mxu0 0.0
        %1625 = vmatpush1.msra.mxu0 0.0
        %1626 = vmatprep.subr.mxu0 0.0
        %1627 = vmatpush1.msra.mxu0 0.0
        %1628 = vmatprep.subr.mxu0 0.0
        %1629 = vmatpush1.msra.mxu0 0.0
        %1630 = vmatprep.subr.mxu0 0.0
        %1631 = vmatpush1.msra.mxu0 0.0
        %1632 = vmatprep.subr.mxu0 0.0
        %1633 = vmatpush1.msra.mxu0 0.0
        %1634 = vmatprep.subr.mxu0 0.0
        %1635 = vmatpush1.msra.mxu0 0.0
        %1636 = vmatprep.subr.mxu0 0.0
        %1637 = vmatpush1.msra.mxu0 0.0
        %1638 = vmatprep.subr.mxu0 0.0
        %1639 = vmatpush1.msra.mxu0 0.0
        %1640 = vmatprep.subr.mxu0 0.0
        %1641 = vmatpush1.msra.mxu0 0.0
        %1642 = vmatprep.subr.mxu0 0.0
        %1643 = vmatpush1.msra.mxu0 0.0
        %1644 = vmatprep.subr.mxu0 0.0
        %1645 = vmatpush1.msra.mxu0 0.0
        %1646 = vmatprep.subr.mxu0 0.0
        %1647 = vmatpush1.msra.mxu0 0.0
        %1648 = vmatprep.subr.mxu0 0.0
        %1649 = vmatpush1.msra.mxu0 0.0
        %1650 = vmatprep.subr.mxu0 0.0
        %1651 = vmatpush1.msra.mxu0 0.0
        %1652 = vmatprep.subr.mxu0 0.0
        %1653 = vmatpush1.msra.mxu0 0.0
        %1654 = vmatprep.subr.mxu0 0.0
        %1655 = vmatpush1.msra.mxu0 0.0
        %1656 = vmatprep.subr.mxu0 0.0
        %1657 = vmatpush1.msra.mxu0 0.0
        %1658 = vmatprep.subr.mxu0 0.0
        %1659 = vmatpush1.msra.mxu0 0.0
        %1660 = vmatprep.mubr.f32.mxu0 0.0
        %1661 = vmatmul.mubr.f32.gmra.mrb[0].mxu0 %v1594
        %v1662 = vpop.f32.mrb[0].mxu0
        %v1663 = vadd.f32 %v1591, %v1662
        %v1664 = vpop.f32.mrb[0].mxu0
        %1665 = vdwg.mxu0
        %v1666 = vmul.f32 %v1663, 0.5
        %v1667 = vmul.f32 %v1663, 0.70710677
        %vm1668 = vcmp.ge.f32.partialorder %v1667, 0.0
        %v1669 = vsub.f32 0.0, %v1667
        %v1670 = vsel %vm1668, %v1667, %v1669
        %v1671 = vmul.f32 %v1670, 0.3275911
        %v1672 = vadd.f32 %v1671, 1.0
        %v1673 = vrcp.pop %v1672
        %v1674 = vmul.f32 1.0, %v1673
        %v1675 = vmul.f32 %v1674, 1.0614054
        %v1676 = vadd.f32 %v1675, -1.4531521
        %v1677 = vmul.f32 %v1676, %v1674
        %v1678 = vadd.f32 %v1677, 1.4214138
        %v1679 = vmul.f32 %v1678, %v1674
        %v1680 = vadd.f32 %v1679, -0.28449672
        %v1681 = vmul.f32 %v1680, %v1674
        %v1682 = vadd.f32 %v1681, 0.2548296
        %v1683 = vmul.f32 %v1682, %v1674
        %v1684 = vsub.f32 0.0, %v1670
        %v1685 = vmul.f32 %v1684, %v1670
        %v1686 = vmul.f32 %v1685, 1.442695
        %v1687 = vpow.pop %v1686
        %v1688 = vmul.f32 %v1683, %v1687
        %v1689 = vsub.f32 1.0, %v1688
        %v1690 = vsub.f32 0.0, %v1689
        %v1691 = vsel %vm1668, %v1689, %v1690
        %v1692 = vadd.f32 %v1691, 1.0
        %v1693 = vmul.f32 %v1666, %v1692
        %v1694 = vld [vmem:[%s12] sm:$0xff]
        %v1695 = vld [vmem:[%s12 + $0x8] sm:$0xff]
        %v1696 = vld [vmem:[%s12 + $0x10] sm:$0xff]
        %v1697 = vld [vmem:[%s12 + $0x18] sm:$0xff]
        %v1698 = vld [vmem:[%s12 + $0x20] sm:$0xff]
        %v1699 = vld [vmem:[%s12 + $0x28] sm:$0xff]
        %v1700 = vld [vmem:[%s12 + $0x30] sm:$0xff]
        %v1701 = vld [vmem:[%s12 + $0x38] sm:$0xff]
        %v1702 = vld [vmem:[%s12 + $0x40] sm:$0xff]
        %v1703 = vld [vmem:[%s12 + $0x48] sm:$0xff]
        %v1704 = vld [vmem:[%s12 + $0x50] sm:$0xff]
        %v1705 = vld [vmem:[%s12 + $0x58] sm:$0xff]
        %v1706 = vld [vmem:[%s12 + $0x60] sm:$0xff]
        %v1707 = vld [vmem:[%s12 + $0x68] sm:$0xff]
        %v1708 = vld [vmem:[%s12 + $0x70] sm:$0xff]
        %v1709 = vld [vmem:[%s12 + $0x78] sm:$0xff]
        %v1710 = vld [vmem:[%s13] sm:$0x1]
        %v1712 = vlaneseq
        %v1713 = vshrl.u32 %v1712, 7
        %v1714 = vsub.s32 0, %v1713
        %v1715 = vrot.slane %v1710, %v1714
        %1717 = vmatprep.subr.mxu0 0.0
        %1718 = vmatpush1.msra.mxu0 %v1694
        %1719 = vmatprep.subr.mxu0 0.0
        %1720 = vmatpush1.msra.mxu0 %v1695
        %1721 = vmatprep.subr.mxu0 0.0
        %1722 = vmatpush1.msra.mxu0 %v1696
        %1723 = vmatprep.subr.mxu0 0.0
        %1724 = vmatpush1.msra.mxu0 %v1697
        %1725 = vmatprep.subr.mxu0 0.0
        %1726 = vmatpush1.msra.mxu0 %v1698
        %1727 = vmatprep.subr.mxu0 0.0
        %1728 = vmatpush1.msra.mxu0 %v1699
        %1729 = vmatprep.subr.mxu0 0.0
        %1730 = vmatpush1.msra.mxu0 %v1700
        %1731 = vmatprep.subr.mxu0 0.0
        %1732 = vmatpush1.msra.mxu0 %v1701
        %1733 = vmatprep.subr.mxu0 0.0
        %1734 = vmatpush1.msra.mxu0 %v1702
        %1735 = vmatprep.subr.mxu0 0.0
        %1736 = vmatpush1.msra.mxu0 %v1703
        %1737 = vmatprep.subr.mxu0 0.0
        %1738 = vmatpush1.msra.mxu0 %v1704
        %1739 = vmatprep.subr.mxu0 0.0
        %1740 = vmatpush1.msra.mxu0 %v1705
        %1741 = vmatprep.subr.mxu0 0.0
        %1742 = vmatpush1.msra.mxu0 %v1706
        %1743 = vmatprep.subr.mxu0 0.0
        %1744 = vmatpush1.msra.mxu0 %v1707
        %1745 = vmatprep.subr.mxu0 0.0
        %1746 = vmatpush1.msra.mxu0 %v1708
        %1747 = vmatprep.subr.mxu0 0.0
        %1748 = vmatpush1.msra.mxu0 %v1709
        %1749 = vmatprep.subr.mxu0 0.0
        %1750 = vmatpush1.msra.mxu0 0.0
        %1751 = vmatprep.subr.mxu0 0.0
        %1752 = vmatpush1.msra.mxu0 0.0
        %1753 = vmatprep.subr.mxu0 0.0
        %1754 = vmatpush1.msra.mxu0 0.0
        %1755 = vmatprep.subr.mxu0 0.0
        %1756 = vmatpush1.msra.mxu0 0.0
        %1757 = vmatprep.subr.mxu0 0.0
        %1758 = vmatpush1.msra.mxu0 0.0
        %1759 = vmatprep.subr.mxu0 0.0
        %1760 = vmatpush1.msra.mxu0 0.0
        %1761 = vmatprep.subr.mxu0 0.0
        %1762 = vmatpush1.msra.mxu0 0.0
        %1763 = vmatprep.subr.mxu0 0.0
        %1764 = vmatpush1.msra.mxu0 0.0
        %1765 = vmatprep.subr.mxu0 0.0
        %1766 = vmatpush1.msra.mxu0 0.0
        %1767 = vmatprep.subr.mxu0 0.0
        %1768 = vmatpush1.msra.mxu0 0.0
        %1769 = vmatprep.subr.mxu0 0.0
        %1770 = vmatpush1.msra.mxu0 0.0
        %1771 = vmatprep.subr.mxu0 0.0
        %1772 = vmatpush1.msra.mxu0 0.0
        %1773 = vmatprep.subr.mxu0 0.0
        %1774 = vmatpush1.msra.mxu0 0.0
        %1775 = vmatprep.subr.mxu0 0.0
        %1776 = vmatpush1.msra.mxu0 0.0
        %1777 = vmatprep.subr.mxu0 0.0
        %1778 = vmatpush1.msra.mxu0 0.0
        %1779 = vmatprep.subr.mxu0 0.0
        %1780 = vmatpush1.msra.mxu0 0.0
        %1781 = vmatprep.mubr.f32.mxu0 0.0
        %1782 = vmatmul.mubr.f32.gmra.mrb[0].mxu0 %v1693
        %v1783 = vpop.f32.mrb[0].mxu0
        %v1784 = vadd.f32 %v1715, %v1783
        %v1785 = vpop.f32.mrb[0].mxu0
        %1786 = vdwg.mxu0
        %v1787 = vadd.f32 %v1549, %v1784
        %1788 = vst.msk [vmem:[%s458] sm:$0xff] %vm466, %v1787
        %s1789 = sand.u32 %s335, 1
        %s1790 = scalar_lea.sflag [#allocation3], %s1789
        %s1791 = sand.u32 %s335, 1
        %s1792 = smul.addr %s1791, 8
        %s1793 = scalar_lea.vmem [#allocation2], %s1792
        // Predicated region
        $region77: #{tpu_custom_call.1} parent=75 // pred_check
          %p1794 = pneg %p345
        $region78: #{tpu_custom_call.1} parent=75 // pred_check_branch
          %1796 = sbr.rel (%p1794) target = $region80
        $region79: #{tpu_custom_call.1} parent=75 // pred_region
          %s1798 = ssub.s32 128, 128
          %1799 = vsyncadd %s1790, %s1798
          %s1800 = smul.addr %s28, 128
          %s1801 = scalar_lea.hbm %s14, %s1800
          %s1803 = sshll.u32 %s1793, 4
          %s1804 = int_to_ptr.vmem [resolvable:$true] %s1803
          %1806 = dma.vmem_to_hbm [thread:$0]  %s1804, 128, %s1801, %s1790
        $region80: #{tpu_custom_call.1} parent=75 // pred_fallthru
          _
      $region76: #{tpu_custom_call.1} parent=5 // pred_fallthru
        _
      %p1807 = scmp.le.s32.totalorder 2, %s23
      // Predicated region
      $region81: #{tpu_custom_call.1} parent=5 // pred_check
        %p1808 = pneg %p1807
      $region82: #{tpu_custom_call.1} parent=5 // pred_check_branch
        %1810 = sbr.rel (%p1808) target = $region84
      $region83: #{tpu_custom_call.1} parent=5 // pred_region
        %s1811 = ssub.s32 %s23, 2
        // Predicated region
        $region85: #{tpu_custom_call.1} parent=83 // pred_check
          %p1812 = pneg %p351
        $region86: #{tpu_custom_call.1} parent=83 // pred_check_branch
          %1814 = sbr.rel (%p1812) target = $region88
        $region87: #{tpu_custom_call.1} parent=83 // pred_region
          %s1815 = sand.u32 %s336, 1
          %s1816 = scalar_lea.sflag [#allocation3], %s1815
          %s1817 = sand.u32 %s336, 1
          %s1818 = smul.addr %s1817, 8
          %s1819 = scalar_lea.vmem [#allocation2], %s1818
          %1820 = dma.done %s1816, 128
        $region88: #{tpu_custom_call.1} parent=83 // pred_fallthru
          _
      $region84: #{tpu_custom_call.1} parent=5 // pred_fallthru
        _
    $region6: #{tpu_custom_call.1} parent=1 // loop_footer
      %s27 = sadd.s32 1, %s23
    $region7: #{tpu_custom_call.1} parent=1 // loop_footer_branch
      %22 = sbr.rel target = $region3
    $region8: #{tpu_custom_call.1} parent=1 // loop_exit
      _
    %1821 = vsyncpa [#allocation3], 1
    %s1822 = scalar_lea.sflag [#allocation3], 1
    %1823 = vsyncpa %s1822, 1

</llo_original>
